<compile_context>
chip_gen: v7x
topology: tpu7x:2x2x1
jax: 0.10.0
libtpu: 0.0.40
codegen_flags: <defaults>
</compile_context>

<pallas_src>
import numpy as np
import jax
import jax.numpy as jnp
from jax.experimental import pallas as pl
from jax.experimental.pallas import tpu as pltpu


def _make_deepar_kernel(B, F, H, L, T, S):
    """Builds the kernel body. All sizes are static Python ints."""
    T_total = T + S
    G = 4 * H  # gate width on the lane axis

    def kernel(*refs):
        # ---- unpack refs --------------------------------------------------
        feats_ref, y_ref, eps_ref, w0t_ref, b0_ref = refs[:5]
        idx = 5
        upper = []
        for _ in range(L - 1):
            upper.append((refs[idx], refs[idx + 1]))      # (W^T (2H,4H), b (1,4H))
            idx += 2
        wht_ref, bh_ref = refs[idx], refs[idx + 1]
        idx += 2
        mu_ref, sig_ref, ypred_ref = refs[idx], refs[idx + 1], refs[idx + 2]

        # ---- hoist loop-invariant loads & broadcasts (done once) -----------
        w0t = w0t_ref[...]                                       # (F+1+H, 4H)
        b0 = jnp.broadcast_to(b0_ref[...], (B, G))               # (B, 4H)
        wbs = [(w[...], jnp.broadcast_to(b[...], (B, G))) for (w, b) in upper]
        wht = wht_ref[...]                                       # (H, 2)
        bh = jnp.broadcast_to(bh_ref[...], (B, 2))               # (B, 2)

        def lstm_cell(gates, c_prev):
            # PyTorch gate order along the lane axis: i, f, g, o
            i_g = jax.nn.sigmoid(gates[:, 0 * H:1 * H])
            f_g = jax.nn.sigmoid(gates[:, 1 * H:2 * H])
            g_g = jnp.tanh(gates[:, 2 * H:3 * H])
            o_g = jax.nn.sigmoid(gates[:, 3 * H:4 * H])
            c_new = f_g * c_prev + i_g * g_g
            h_new = o_g * jnp.tanh(c_new)
            return h_new, c_new

        # recurrent state as flat per-layer (B, H) values
        h = [jnp.zeros((B, H), jnp.float32) for _ in range(L)]
        c = [jnp.zeros((B, H), jnp.float32) for _ in range(L)]
        ysamp = jnp.zeros((B, 1), jnp.float32)

        # Fully unrolled recurrence: T_total is small & static, which gives the
        # scheduler cross-iteration visibility and turns teacher/sample
        # switching into compile-time branches (no jnp.where on the hot path).
        for s in range(T_total):
            if s == 0:
                ynext = jnp.zeros((B, 1), jnp.float32)
            elif s <= T:
                ynext = y_ref[:, s - 1:s]              # teacher forcing
            else:
                ynext = ysamp                          # autoregressive feedback

            xfeat = feats_ref[s]                       # (B, F)

            # ----- LSTM layer 0: one fused dot over [x | y | h0] ------------
            x0 = jnp.concatenate([xfeat, ynext, h[0]], axis=1)   # (B, F+1+H)
            gates = jnp.dot(x0, w0t, preferred_element_type=jnp.float32) + b0
            h[0], c[0] = lstm_cell(gates, c[0])

            # ----- LSTM layers 1..L-1: one fused dot over [h_below | h_l] ---
            for l in range(1, L):
                wlt, bl = wbs[l - 1]
                xl = jnp.concatenate([h[l - 1], h[l]], axis=1)   # (B, 2H)
                gates = jnp.dot(xl, wlt, preferred_element_type=jnp.float32) + bl
                h[l], c[l] = lstm_cell(gates, c[l])

            # ----- Gaussian likelihood head (mu & sigma fused: one dot) -----
            hs = jnp.maximum(h[L - 1], 0.0)                              # relu
            head = jnp.dot(hs, wht, preferred_element_type=jnp.float32) + bh
            mu = head[:, 0:1]                                            # (B, 1)
            sig_lin = head[:, 1:2]
            # numerically-stable softplus + eps
            sigma = (jnp.maximum(sig_lin, 0.0)
                     + jnp.log1p(jnp.exp(-jnp.abs(sig_lin))) + 1e-6)

            mu_ref[:, s:s + 1] = mu
            sig_ref[:, s:s + 1] = sigma

            if s >= T:
                # Gaussian sample with host-provided standard-normal noise
                eps = eps_ref[:, s - T:s - T + 1]                        # (B, 1)
                ysamp = mu + sigma * eps
                ypred_ref[:, s - T:s - T + 1] = ysamp

    return kernel


def init_deepar_params(key, input_size, embedding_size, hidden_size, num_layers):
    """Deterministic parameter init mimicking PyTorch default uniform init."""
    F, E, H, L = input_size, embedding_size, hidden_size, num_layers
    keys = iter(jax.random.split(key, 8 + 4 * L))

    def u(shape, fan_in):
        bound = 1.0 / float(np.sqrt(fan_in))
        return jax.random.uniform(next(keys), shape, jnp.float32, -bound, bound)

    p = {
        "we": u((E, 1), 1),          # nn.Linear(1, E).weight
        "be": u((E,), 1),            # nn.Linear(1, E).bias
        "lstm": [],
        "wmu": u((1, H), H),         # Gaussian.mu_layer
        "bmu": u((1,), H),
        "wsig": u((1, H), H),        # Gaussian.sigma_layer
        "bsig": u((1,), H),
    }
    for l in range(L):
        in_l = (E + F) if l == 0 else H
        p["lstm"].append(dict(
            w_ih=u((4 * H, in_l), H),
            w_hh=u((4 * H, H), H),
            b_ih=u((4 * H,), H),
            b_hh=u((4 * H,), H),
        ))
    return p


def deepar_forward(params, X, y, Xf, eps):
    """
    X:   (B, T, F)   training features
    y:   (B, T)      training targets (teacher forcing)
    Xf:  (B, S, F)   future features
    eps: (B, T+S)    standard-normal noise (only the last S columns are used)
    Returns (ypred (B,S), mu (B,T+S), sigma (B,T+S)) — matches PyTorch DeepAR.forward.
    """
    B, T, F = X.shape
    _, S, F2 = Xf.shape
    assert F == F2
    T_total = T + S
    H = params["wmu"].shape[1]
    L = len(params["lstm"])

    # features time-major with batch on sublanes / features on lanes
    feats = jnp.concatenate([X, Xf], axis=1).astype(jnp.float32)    # (B, T_total, F)
    feats_t = jnp.transpose(feats, (1, 0, 2))                       # (T_total, B, F)

    # ---- fold the input embedding + fuse per-layer weights (pass W^T) ------
    l0 = params["lstm"][0]
    w_x = l0["w_ih"][:, :F]                 # (4H, F)  columns acting on x features
    w_y = l0["w_ih"][:, F:]                 # (4H, E)  columns acting on y embedding
    # input_embed(y) = y * we + be  =>  W_y @ embed(y) = (W_y @ we) * y + W_y @ be
    w_y_eff = w_y @ params["we"]                            # (4H, 1)
    b0 = l0["b_ih"] + l0["b_hh"] + w_y @ params["be"]       # (4H,)
    w0 = jnp.concatenate([w_x, w_y_eff, l0["w_hh"]], axis=1)   # (4H, F+1+H)

    inputs = [feats_t,
              y.astype(jnp.float32),                        # (B, T)
              eps[:, T:].astype(jnp.float32),               # (B, S)
              jnp.transpose(w0),                            # (F+1+H, 4H)
              b0.reshape(1, 4 * H)]
    for l in range(1, L):
        pls = params["lstm"][l]
        wl = jnp.concatenate([pls["w_ih"], pls["w_hh"]], axis=1)    # (4H, 2H)
        inputs += [jnp.transpose(wl),
                   (pls["b_ih"] + pls["b_hh"]).reshape(1, 4 * H)]
    w_head = jnp.concatenate([params["wmu"], params["wsig"]], axis=0)   # (2, H)
    b_head = jnp.concatenate([params["bmu"], params["bsig"]], axis=0)   # (2,)
    inputs += [jnp.transpose(w_head), b_head.reshape(1, 2)]

    kernel = _make_deepar_kernel(B, F, H, L, T, S)
    vmem = pl.BlockSpec(memory_space=pltpu.MemorySpace.VMEM)
    out_shape = (jax.ShapeDtypeStruct((B, T_total), jnp.float32),   # mu
                 jax.ShapeDtypeStruct((B, T_total), jnp.float32),   # sigma
                 jax.ShapeDtypeStruct((B, S), jnp.float32))         # ypred

    # Footprint is ~100 KiB, so no vmem_limit override is needed (safe on
    # v7x's 64 MiB VMEM as well).
    # TODO(synk): for production sizes add a "parallel" batch grid axis
    # (megacore / multi-TC) and an "arbitrary" time grid axis with pipelined
    # feats/eps/output chunks and h/c in VMEM scratch.
    mu, sigma, ypred = pl.pallas_call(
        kernel,
        out_shape=out_shape,
        in_specs=[vmem] * len(inputs),
        out_specs=(vmem, vmem, vmem),
    )(*inputs)
    return ypred, mu, sigma


if __name__ == "__main__":
    # small shapes consistent with the module's forward
    B, T, S, F = 4, 8, 4, 4          # num_ts, num_obs_to_train, seq_len, num_features
    E, H, L = 8, 32, 2               # embedding_size, hidden_size, num_layers (4H = 128)

    key = jax.random.PRNGKey(0)
    kp, kx, ky, kxf, ke = jax.random.split(key, 5)
    params = init_deepar_params(kp, F, E, H, L)

    X = jax.random.normal(kx, (B, T, F), jnp.float32)
    y = jax.random.normal(ky, (B, T), jnp.float32)
    Xf = jax.random.normal(kxf, (B, S, F), jnp.float32)
    eps = jax.random.normal(ke, (B, T + S), jnp.float32)   # Gaussian sampling noise

    ypred, mu, sigma = deepar_forward(params, X, y, Xf, eps)
    jax.block_until_ready((ypred, mu, sigma))

    assert ypred.shape == (B, S)
    assert mu.shape == (B, T + S)
    assert sigma.shape == (B, T + S)
    assert bool(jnp.all(jnp.isfinite(mu))) and bool(jnp.all(sigma > 0))
    # TODO(synk): NegativeBinomial likelihood branch ('nb') not implemented; the
    # reference default ('g', Gaussian) path is fully implemented.
    print("KERNEL_OK")
</pallas_src>

<mosaic_0001>
module attributes {stable_mosaic.version = 11 : i64} {
  func.func @kernel(%arg0: memref<12x4x4xf32, #tpu.memory_space<vmem>>, %arg1: memref<4x8xf32, #tpu.memory_space<vmem>>, %arg2: memref<4x4xf32, #tpu.memory_space<vmem>>, %arg3: memref<37x128xf32, #tpu.memory_space<vmem>>, %arg4: memref<1x128xf32, #tpu.memory_space<vmem>>, %arg5: memref<64x128xf32, #tpu.memory_space<vmem>>, %arg6: memref<1x128xf32, #tpu.memory_space<vmem>>, %arg7: memref<32x2xf32, #tpu.memory_space<vmem>>, %arg8: memref<1x2xf32, #tpu.memory_space<vmem>>, %arg9: memref<4x12xf32, #tpu.memory_space<vmem>>, %arg10: memref<4x12xf32, #tpu.memory_space<vmem>>, %arg11: memref<4x4xf32, #tpu.memory_space<vmem>>) attributes {dimension_semantics = [], scalar_prefetch = 0 : i64, scratch_operands = 0 : i64, tpu.core_type = #tpu.core_type<tc>} {
    %c0 = arith.constant 0 : index
    %c0_0 = arith.constant 0 : index
    %0 = vector.load %arg3[%c0, %c0_0] : memref<37x128xf32, #tpu.memory_space<vmem>>, vector<37x128xf32>
    %c0_1 = arith.constant 0 : index
    %c0_2 = arith.constant 0 : index
    %1 = vector.load %arg4[%c0_1, %c0_2] : memref<1x128xf32, #tpu.memory_space<vmem>>, vector<1x128xf32>
    %2 = vector.shape_cast %1 : vector<1x128xf32> to vector<1x128xf32>
    %3 = vector.broadcast %2 : vector<1x128xf32> to vector<4x128xf32>
    %c0_3 = arith.constant 0 : index
    %c0_4 = arith.constant 0 : index
    %4 = vector.load %arg5[%c0_3, %c0_4] : memref<64x128xf32, #tpu.memory_space<vmem>>, vector<64x128xf32>
    %c0_5 = arith.constant 0 : index
    %c0_6 = arith.constant 0 : index
    %5 = vector.load %arg6[%c0_5, %c0_6] : memref<1x128xf32, #tpu.memory_space<vmem>>, vector<1x128xf32>
    %6 = vector.shape_cast %5 : vector<1x128xf32> to vector<1x128xf32>
    %7 = vector.broadcast %6 : vector<1x128xf32> to vector<4x128xf32>
    %c0_7 = arith.constant 0 : index
    %c0_8 = arith.constant 0 : index
    %8 = vector.load %arg7[%c0_7, %c0_8] : memref<32x2xf32, #tpu.memory_space<vmem>>, vector<32x2xf32>
    %c0_9 = arith.constant 0 : index
    %c0_10 = arith.constant 0 : index
    %9 = vector.load %arg8[%c0_9, %c0_10] : memref<1x2xf32, #tpu.memory_space<vmem>>, vector<1x2xf32>
    %10 = vector.shape_cast %9 : vector<1x2xf32> to vector<1x2xf32>
    %11 = vector.broadcast %10 : vector<1x2xf32> to vector<4x2xf32>
    %cst = arith.constant 0.000000e+00 : f32
    %12 = vector.broadcast %cst : f32 to vector<4x32xf32>
    %cst_11 = arith.constant 0.000000e+00 : f32
    %13 = vector.broadcast %cst_11 : f32 to vector<4x32xf32>
    %cst_12 = arith.constant 0.000000e+00 : f32
    %14 = vector.broadcast %cst_12 : f32 to vector<4x32xf32>
    %cst_13 = arith.constant 0.000000e+00 : f32
    %15 = vector.broadcast %cst_13 : f32 to vector<4x32xf32>
    %cst_14 = arith.constant 0.000000e+00 : f32
    %16 = vector.broadcast %cst_14 : f32 to vector<4x1xf32>
    %c0_15 = arith.constant 0 : index
    %c0_16 = arith.constant 0 : index
    %c0_17 = arith.constant 0 : index
    %17 = vector.load %arg0[%c0_15, %c0_16, %c0_17] : memref<12x4x4xf32, #tpu.memory_space<vmem>>, vector<1x4x4xf32>
    %18 = vector.shape_cast %17 : vector<1x4x4xf32> to vector<4x4xf32>
    %19 = tpu.concatenate %18, %16, %12 in 1 : vector<4x4xf32>, vector<4x1xf32>, vector<4x32xf32> -> vector<4x37xf32>
    %cst_18 = arith.constant dense<0.000000e+00> : vector<4x128xf32>
    %20 = tpu.matmul %19, %0, %cst_18 {dimension_numbers = #tpu.dot_dimension_numbers<[1], [0], [0], [1], [0, 0, 1, 1], [], []>} : vector<4x37xf32>, vector<37x128xf32>, vector<4x128xf32> -> vector<4x128xf32>
    %21 = arith.addf %20, %3 : vector<4x128xf32>
    %22 = vector.extract_strided_slice %21 {offsets = [0, 0], sizes = [4, 32], strides = [1, 1]} : vector<4x128xf32> to vector<4x32xf32>
    %23 = arith.negf %22 : vector<4x32xf32>
    %24 = math.exp %23 : vector<4x32xf32>
    %cst_19 = arith.constant 1.000000e+00 : f32
    %25 = vector.broadcast %cst_19 : f32 to vector<4x32xf32>
    %26 = arith.addf %25, %24 : vector<4x32xf32>
    %27 = arith.divf %25, %26 : vector<4x32xf32>
    %28 = vector.extract_strided_slice %21 {offsets = [0, 32], sizes = [4, 32], strides = [1, 1]} : vector<4x128xf32> to vector<4x32xf32>
    %29 = arith.negf %28 : vector<4x32xf32>
    %30 = math.exp %29 : vector<4x32xf32>
    %cst_20 = arith.constant 1.000000e+00 : f32
    %31 = vector.broadcast %cst_20 : f32 to vector<4x32xf32>
    %32 = arith.addf %31, %30 : vector<4x32xf32>
    %33 = arith.divf %31, %32 : vector<4x32xf32>
    %34 = vector.extract_strided_slice %21 {offsets = [0, 64], sizes = [4, 32], strides = [1, 1]} : vector<4x128xf32> to vector<4x32xf32>
    %35 = math.tanh %34 : vector<4x32xf32>
    %36 = vector.extract_strided_slice %21 {offsets = [0, 96], sizes = [4, 32], strides = [1, 1]} : vector<4x128xf32> to vector<4x32xf32>
    %37 = arith.negf %36 : vector<4x32xf32>
    %38 = math.exp %37 : vector<4x32xf32>
    %cst_21 = arith.constant 1.000000e+00 : f32
    %39 = vector.broadcast %cst_21 : f32 to vector<4x32xf32>
    %40 = arith.addf %39, %38 : vector<4x32xf32>
    %41 = arith.divf %39, %40 : vector<4x32xf32>
    %42 = arith.mulf %33, %14 : vector<4x32xf32>
    %43 = arith.mulf %27, %35 : vector<4x32xf32>
    %44 = arith.addf %42, %43 : vector<4x32xf32>
    %45 = math.tanh %44 : vector<4x32xf32>
    %46 = arith.mulf %41, %45 : vector<4x32xf32>
    %47 = tpu.concatenate %46, %13 in 1 : vector<4x32xf32>, vector<4x32xf32> -> vector<4x64xf32>
    %cst_22 = arith.constant dense<0.000000e+00> : vector<4x128xf32>
    %48 = tpu.matmul %47, %4, %cst_22 {dimension_numbers = #tpu.dot_dimension_numbers<[1], [0], [0], [1], [0, 0, 1, 1], [], []>} : vector<4x64xf32>, vector<64x128xf32>, vector<4x128xf32> -> vector<4x128xf32>
    %49 = arith.addf %48, %7 : vector<4x128xf32>
    %50 = vector.extract_strided_slice %49 {offsets = [0, 0], sizes = [4, 32], strides = [1, 1]} : vector<4x128xf32> to vector<4x32xf32>
    %51 = arith.negf %50 : vector<4x32xf32>
    %52 = math.exp %51 : vector<4x32xf32>
    %cst_23 = arith.constant 1.000000e+00 : f32
    %53 = vector.broadcast %cst_23 : f32 to vector<4x32xf32>
    %54 = arith.addf %53, %52 : vector<4x32xf32>
    %55 = arith.divf %53, %54 : vector<4x32xf32>
    %56 = vector.extract_strided_slice %49 {offsets = [0, 32], sizes = [4, 32], strides = [1, 1]} : vector<4x128xf32> to vector<4x32xf32>
    %57 = arith.negf %56 : vector<4x32xf32>
    %58 = math.exp %57 : vector<4x32xf32>
    %cst_24 = arith.constant 1.000000e+00 : f32
    %59 = vector.broadcast %cst_24 : f32 to vector<4x32xf32>
    %60 = arith.addf %59, %58 : vector<4x32xf32>
    %61 = arith.divf %59, %60 : vector<4x32xf32>
    %62 = vector.extract_strided_slice %49 {offsets = [0, 64], sizes = [4, 32], strides = [1, 1]} : vector<4x128xf32> to vector<4x32xf32>
    %63 = math.tanh %62 : vector<4x32xf32>
    %64 = vector.extract_strided_slice %49 {offsets = [0, 96], sizes = [4, 32], strides = [1, 1]} : vector<4x128xf32> to vector<4x32xf32>
    %65 = arith.negf %64 : vector<4x32xf32>
    %66 = math.exp %65 : vector<4x32xf32>
    %cst_25 = arith.constant 1.000000e+00 : f32
    %67 = vector.broadcast %cst_25 : f32 to vector<4x32xf32>
    %68 = arith.addf %67, %66 : vector<4x32xf32>
    %69 = arith.divf %67, %68 : vector<4x32xf32>
    %70 = arith.mulf %61, %15 : vector<4x32xf32>
    %71 = arith.mulf %55, %63 : vector<4x32xf32>
    %72 = arith.addf %70, %71 : vector<4x32xf32>
    %73 = math.tanh %72 : vector<4x32xf32>
    %74 = arith.mulf %69, %73 : vector<4x32xf32>
    %cst_26 = arith.constant 0.000000e+00 : f32
    %75 = vector.broadcast %cst_26 : f32 to vector<4x32xf32>
    %76 = arith.maximumf %74, %75 : vector<4x32xf32>
    %cst_27 = arith.constant dense<0.000000e+00> : vector<4x2xf32>
    %77 = tpu.matmul %76, %8, %cst_27 {dimension_numbers = #tpu.dot_dimension_numbers<[1], [0], [0], [1], [0, 0, 1, 1], [], []>} : vector<4x32xf32>, vector<32x2xf32>, vector<4x2xf32> -> vector<4x2xf32>
    %78 = arith.addf %77, %11 : vector<4x2xf32>
    %79 = vector.extract_strided_slice %78 {offsets = [0, 0], sizes = [4, 1], strides = [1, 1]} : vector<4x2xf32> to vector<4x1xf32>
    %80 = vector.extract_strided_slice %78 {offsets = [0, 1], sizes = [4, 1], strides = [1, 1]} : vector<4x2xf32> to vector<4x1xf32>
    %cst_28 = arith.constant 0.000000e+00 : f32
    %81 = vector.broadcast %cst_28 : f32 to vector<4x1xf32>
    %82 = arith.maximumf %80, %81 : vector<4x1xf32>
    %83 = math.absf %80 : vector<4x1xf32>
    %cst_29 = arith.constant 0.000000e+00 : f32
    %84 = vector.broadcast %cst_29 : f32 to vector<4x1xf32>
    %85 = arith.subf %84, %83 : vector<4x1xf32>
    %86 = math.exp %85 : vector<4x1xf32>
    %87 = math.log1p %86 : vector<4x1xf32>
    %88 = arith.addf %82, %87 : vector<4x1xf32>
    %cst_30 = arith.constant 9.99999997E-7 : f32
    %89 = vector.broadcast %cst_30 : f32 to vector<4x1xf32>
    %90 = arith.addf %88, %89 : vector<4x1xf32>
    %c0_31 = arith.constant 0 : index
    %c0_32 = arith.constant 0 : index
    %91 = vector.load %arg9[%c0_31, %c0_32] : memref<4x12xf32, #tpu.memory_space<vmem>>, vector<4x1xf32>
    tpu.vector_store %arg9[%c0_31, %c0_32], %79 {strides = array<i32>} : memref<4x12xf32, #tpu.memory_space<vmem>>, vector<4x1xf32>,
    %c0_33 = arith.constant 0 : index
    %c0_34 = arith.constant 0 : index
    %92 = vector.load %arg10[%c0_33, %c0_34] : memref<4x12xf32, #tpu.memory_space<vmem>>, vector<4x1xf32>
    tpu.vector_store %arg10[%c0_33, %c0_34], %90 {strides = array<i32>} : memref<4x12xf32, #tpu.memory_space<vmem>>, vector<4x1xf32>,
    %c0_35 = arith.constant 0 : index
    %c0_36 = arith.constant 0 : index
    %93 = vector.load %arg1[%c0_35, %c0_36] : memref<4x8xf32, #tpu.memory_space<vmem>>, vector<4x1xf32>
    %c1 = arith.constant 1 : index
    %c0_37 = arith.constant 0 : index
    %c0_38 = arith.constant 0 : index
    %94 = vector.load %arg0[%c1, %c0_37, %c0_38] : memref<12x4x4xf32, #tpu.memory_space<vmem>>, vector<1x4x4xf32>
    %95 = vector.shape_cast %94 : vector<1x4x4xf32> to vector<4x4xf32>
    %96 = tpu.concatenate %95, %93, %46 in 1 : vector<4x4xf32>, vector<4x1xf32>, vector<4x32xf32> -> vector<4x37xf32>
    %cst_39 = arith.constant dense<0.000000e+00> : vector<4x128xf32>
    %97 = tpu.matmul %96, %0, %cst_39 {dimension_numbers = #tpu.dot_dimension_numbers<[1], [0], [0], [1], [0, 0, 1, 1], [], []>} : vector<4x37xf32>, vector<37x128xf32>, vector<4x128xf32> -> vector<4x128xf32>
    %98 = arith.addf %97, %3 : vector<4x128xf32>
    %99 = vector.extract_strided_slice %98 {offsets = [0, 0], sizes = [4, 32], strides = [1, 1]} : vector<4x128xf32> to vector<4x32xf32>
    %100 = arith.negf %99 : vector<4x32xf32>
    %101 = math.exp %100 : vector<4x32xf32>
    %cst_40 = arith.constant 1.000000e+00 : f32
    %102 = vector.broadcast %cst_40 : f32 to vector<4x32xf32>
    %103 = arith.addf %102, %101 : vector<4x32xf32>
    %104 = arith.divf %102, %103 : vector<4x32xf32>
    %105 = vector.extract_strided_slice %98 {offsets = [0, 32], sizes = [4, 32], strides = [1, 1]} : vector<4x128xf32> to vector<4x32xf32>
    %106 = arith.negf %105 : vector<4x32xf32>
    %107 = math.exp %106 : vector<4x32xf32>
    %cst_41 = arith.constant 1.000000e+00 : f32
    %108 = vector.broadcast %cst_41 : f32 to vector<4x32xf32>
    %109 = arith.addf %108, %107 : vector<4x32xf32>
    %110 = arith.divf %108, %109 : vector<4x32xf32>
    %111 = vector.extract_strided_slice %98 {offsets = [0, 64], sizes = [4, 32], strides = [1, 1]} : vector<4x128xf32> to vector<4x32xf32>
    %112 = math.tanh %111 : vector<4x32xf32>
    %113 = vector.extract_strided_slice %98 {offsets = [0, 96], sizes = [4, 32], strides = [1, 1]} : vector<4x128xf32> to vector<4x32xf32>
    %114 = arith.negf %113 : vector<4x32xf32>
    %115 = math.exp %114 : vector<4x32xf32>
    %cst_42 = arith.constant 1.000000e+00 : f32
    %116 = vector.broadcast %cst_42 : f32 to vector<4x32xf32>
    %117 = arith.addf %116, %115 : vector<4x32xf32>
    %118 = arith.divf %116, %117 : vector<4x32xf32>
    %119 = arith.mulf %110, %44 : vector<4x32xf32>
    %120 = arith.mulf %104, %112 : vector<4x32xf32>
    %121 = arith.addf %119, %120 : vector<4x32xf32>
    %122 = math.tanh %121 : vector<4x32xf32>
    %123 = arith.mulf %118, %122 : vector<4x32xf32>
    %124 = tpu.concatenate %123, %74 in 1 : vector<4x32xf32>, vector<4x32xf32> -> vector<4x64xf32>
    %cst_43 = arith.constant dense<0.000000e+00> : vector<4x128xf32>
    %125 = tpu.matmul %124, %4, %cst_43 {dimension_numbers = #tpu.dot_dimension_numbers<[1], [0], [0], [1], [0, 0, 1, 1], [], []>} : vector<4x64xf32>, vector<64x128xf32>, vector<4x128xf32> -> vector<4x128xf32>
    %126 = arith.addf %125, %7 : vector<4x128xf32>
    %127 = vector.extract_strided_slice %126 {offsets = [0, 0], sizes = [4, 32], strides = [1, 1]} : vector<4x128xf32> to vector<4x32xf32>
    %128 = arith.negf %127 : vector<4x32xf32>
    %129 = math.exp %128 : vector<4x32xf32>
    %cst_44 = arith.constant 1.000000e+00 : f32
    %130 = vector.broadcast %cst_44 : f32 to vector<4x32xf32>
    %131 = arith.addf %130, %129 : vector<4x32xf32>
    %132 = arith.divf %130, %131 : vector<4x32xf32>
    %133 = vector.extract_strided_slice %126 {offsets = [0, 32], sizes = [4, 32], strides = [1, 1]} : vector<4x128xf32> to vector<4x32xf32>
    %134 = arith.negf %133 : vector<4x32xf32>
    %135 = math.exp %134 : vector<4x32xf32>
    %cst_45 = arith.constant 1.000000e+00 : f32
    %136 = vector.broadcast %cst_45 : f32 to vector<4x32xf32>
    %137 = arith.addf %136, %135 : vector<4x32xf32>
    %138 = arith.divf %136, %137 : vector<4x32xf32>
    %139 = vector.extract_strided_slice %126 {offsets = [0, 64], sizes = [4, 32], strides = [1, 1]} : vector<4x128xf32> to vector<4x32xf32>
    %140 = math.tanh %139 : vector<4x32xf32>
    %141 = vector.extract_strided_slice %126 {offsets = [0, 96], sizes = [4, 32], strides = [1, 1]} : vector<4x128xf32> to vector<4x32xf32>
    %142 = arith.negf %141 : vector<4x32xf32>
    %143 = math.exp %142 : vector<4x32xf32>
    %cst_46 = arith.constant 1.000000e+00 : f32
    %144 = vector.broadcast %cst_46 : f32 to vector<4x32xf32>
    %145 = arith.addf %144, %143 : vector<4x32xf32>
    %146 = arith.divf %144, %145 : vector<4x32xf32>
    %147 = arith.mulf %138, %72 : vector<4x32xf32>
    %148 = arith.mulf %132, %140 : vector<4x32xf32>
    %149 = arith.addf %147, %148 : vector<4x32xf32>
    %150 = math.tanh %149 : vector<4x32xf32>
    %151 = arith.mulf %146, %150 : vector<4x32xf32>
    %cst_47 = arith.constant 0.000000e+00 : f32
    %152 = vector.broadcast %cst_47 : f32 to vector<4x32xf32>
    %153 = arith.maximumf %151, %152 : vector<4x32xf32>
    %cst_48 = arith.constant dense<0.000000e+00> : vector<4x2xf32>
    %154 = tpu.matmul %153, %8, %cst_48 {dimension_numbers = #tpu.dot_dimension_numbers<[1], [0], [0], [1], [0, 0, 1, 1], [], []>} : vector<4x32xf32>, vector<32x2xf32>, vector<4x2xf32> -> vector<4x2xf32>
    %155 = arith.addf %154, %11 : vector<4x2xf32>
    %156 = vector.extract_strided_slice %155 {offsets = [0, 0], sizes = [4, 1], strides = [1, 1]} : vector<4x2xf32> to vector<4x1xf32>
    %157 = vector.extract_strided_slice %155 {offsets = [0, 1], sizes = [4, 1], strides = [1, 1]} : vector<4x2xf32> to vector<4x1xf32>
    %cst_49 = arith.constant 0.000000e+00 : f32
    %158 = vector.broadcast %cst_49 : f32 to vector<4x1xf32>
    %159 = arith.maximumf %157, %158 : vector<4x1xf32>
    %160 = math.absf %157 : vector<4x1xf32>
    %cst_50 = arith.constant 0.000000e+00 : f32
    %161 = vector.broadcast %cst_50 : f32 to vector<4x1xf32>
    %162 = arith.subf %161, %160 : vector<4x1xf32>
    %163 = math.exp %162 : vector<4x1xf32>
    %164 = math.log1p %163 : vector<4x1xf32>
    %165 = arith.addf %159, %164 : vector<4x1xf32>
    %cst_51 = arith.constant 9.99999997E-7 : f32
    %166 = vector.broadcast %cst_51 : f32 to vector<4x1xf32>
    %167 = arith.addf %165, %166 : vector<4x1xf32>
    %c0_52 = arith.constant 0 : index
    %c1_53 = arith.constant 1 : index
    %168 = vector.load %arg9[%c0_52, %c1_53] : memref<4x12xf32, #tpu.memory_space<vmem>>, vector<4x1xf32>
    tpu.vector_store %arg9[%c0_52, %c1_53], %156 {strides = array<i32>} : memref<4x12xf32, #tpu.memory_space<vmem>>, vector<4x1xf32>,
    %c0_54 = arith.constant 0 : index
    %c1_55 = arith.constant 1 : index
    %169 = vector.load %arg10[%c0_54, %c1_55] : memref<4x12xf32, #tpu.memory_space<vmem>>, vector<4x1xf32>
    tpu.vector_store %arg10[%c0_54, %c1_55], %167 {strides = array<i32>} : memref<4x12xf32, #tpu.memory_space<vmem>>, vector<4x1xf32>,
    %c0_56 = arith.constant 0 : index
    %c1_57 = arith.constant 1 : index
    %170 = vector.load %arg1[%c0_56, %c1_57] : memref<4x8xf32, #tpu.memory_space<vmem>>, vector<4x1xf32>
    %c2 = arith.constant 2 : index
    %c0_58 = arith.constant 0 : index
    %c0_59 = arith.constant 0 : index
    %171 = vector.load %arg0[%c2, %c0_58, %c0_59] : memref<12x4x4xf32, #tpu.memory_space<vmem>>, vector<1x4x4xf32>
    %172 = vector.shape_cast %171 : vector<1x4x4xf32> to vector<4x4xf32>
    %173 = tpu.concatenate %172, %170, %123 in 1 : vector<4x4xf32>, vector<4x1xf32>, vector<4x32xf32> -> vector<4x37xf32>
    %cst_60 = arith.constant dense<0.000000e+00> : vector<4x128xf32>
    %174 = tpu.matmul %173, %0, %cst_60 {dimension_numbers = #tpu.dot_dimension_numbers<[1], [0], [0], [1], [0, 0, 1, 1], [], []>} : vector<4x37xf32>, vector<37x128xf32>, vector<4x128xf32> -> vector<4x128xf32>
    %175 = arith.addf %174, %3 : vector<4x128xf32>
    %176 = vector.extract_strided_slice %175 {offsets = [0, 0], sizes = [4, 32], strides = [1, 1]} : vector<4x128xf32> to vector<4x32xf32>
    %177 = arith.negf %176 : vector<4x32xf32>
    %178 = math.exp %177 : vector<4x32xf32>
    %cst_61 = arith.constant 1.000000e+00 : f32
    %179 = vector.broadcast %cst_61 : f32 to vector<4x32xf32>
    %180 = arith.addf %179, %178 : vector<4x32xf32>
    %181 = arith.divf %179, %180 : vector<4x32xf32>
    %182 = vector.extract_strided_slice %175 {offsets = [0, 32], sizes = [4, 32], strides = [1, 1]} : vector<4x128xf32> to vector<4x32xf32>
    %183 = arith.negf %182 : vector<4x32xf32>
    %184 = math.exp %183 : vector<4x32xf32>
    %cst_62 = arith.constant 1.000000e+00 : f32
    %185 = vector.broadcast %cst_62 : f32 to vector<4x32xf32>
    %186 = arith.addf %185, %184 : vector<4x32xf32>
    %187 = arith.divf %185, %186 : vector<4x32xf32>
    %188 = vector.extract_strided_slice %175 {offsets = [0, 64], sizes = [4, 32], strides = [1, 1]} : vector<4x128xf32> to vector<4x32xf32>
    %189 = math.tanh %188 : vector<4x32xf32>
    %190 = vector.extract_strided_slice %175 {offsets = [0, 96], sizes = [4, 32], strides = [1, 1]} : vector<4x128xf32> to vector<4x32xf32>
    %191 = arith.negf %190 : vector<4x32xf32>
    %192 = math.exp %191 : vector<4x32xf32>
    %cst_63 = arith.constant 1.000000e+00 : f32
    %193 = vector.broadcast %cst_63 : f32 to vector<4x32xf32>
    %194 = arith.addf %193, %192 : vector<4x32xf32>
    %195 = arith.divf %193, %194 : vector<4x32xf32>
    %196 = arith.mulf %187, %121 : vector<4x32xf32>
    %197 = arith.mulf %181, %189 : vector<4x32xf32>
    %198 = arith.addf %196, %197 : vector<4x32xf32>
    %199 = math.tanh %198 : vector<4x32xf32>
    %200 = arith.mulf %195, %199 : vector<4x32xf32>
    %201 = tpu.concatenate %200, %151 in 1 : vector<4x32xf32>, vector<4x32xf32> -> vector<4x64xf32>
    %cst_64 = arith.constant dense<0.000000e+00> : vector<4x128xf32>
    %202 = tpu.matmul %201, %4, %cst_64 {dimension_numbers = #tpu.dot_dimension_numbers<[1], [0], [0], [1], [0, 0, 1, 1], [], []>} : vector<4x64xf32>, vector<64x128xf32>, vector<4x128xf32> -> vector<4x128xf32>
    %203 = arith.addf %202, %7 : vector<4x128xf32>
    %204 = vector.extract_strided_slice %203 {offsets = [0, 0], sizes = [4, 32], strides = [1, 1]} : vector<4x128xf32> to vector<4x32xf32>
    %205 = arith.negf %204 : vector<4x32xf32>
    %206 = math.exp %205 : vector<4x32xf32>
    %cst_65 = arith.constant 1.000000e+00 : f32
    %207 = vector.broadcast %cst_65 : f32 to vector<4x32xf32>
    %208 = arith.addf %207, %206 : vector<4x32xf32>
    %209 = arith.divf %207, %208 : vector<4x32xf32>
    %210 = vector.extract_strided_slice %203 {offsets = [0, 32], sizes = [4, 32], strides = [1, 1]} : vector<4x128xf32> to vector<4x32xf32>
    %211 = arith.negf %210 : vector<4x32xf32>
    %212 = math.exp %211 : vector<4x32xf32>
    %cst_66 = arith.constant 1.000000e+00 : f32
    %213 = vector.broadcast %cst_66 : f32 to vector<4x32xf32>
    %214 = arith.addf %213, %212 : vector<4x32xf32>
    %215 = arith.divf %213, %214 : vector<4x32xf32>
    %216 = vector.extract_strided_slice %203 {offsets = [0, 64], sizes = [4, 32], strides = [1, 1]} : vector<4x128xf32> to vector<4x32xf32>
    %217 = math.tanh %216 : vector<4x32xf32>
    %218 = vector.extract_strided_slice %203 {offsets = [0, 96], sizes = [4, 32], strides = [1, 1]} : vector<4x128xf32> to vector<4x32xf32>
    %219 = arith.negf %218 : vector<4x32xf32>
    %220 = math.exp %219 : vector<4x32xf32>
    %cst_67 = arith.constant 1.000000e+00 : f32
    %221 = vector.broadcast %cst_67 : f32 to vector<4x32xf32>
    %222 = arith.addf %221, %220 : vector<4x32xf32>
    %223 = arith.divf %221, %222 : vector<4x32xf32>
    %224 = arith.mulf %215, %149 : vector<4x32xf32>
    %225 = arith.mulf %209, %217 : vector<4x32xf32>
    %226 = arith.addf %224, %225 : vector<4x32xf32>
    %227 = math.tanh %226 : vector<4x32xf32>
    %228 = arith.mulf %223, %227 : vector<4x32xf32>
    %cst_68 = arith.constant 0.000000e+00 : f32
    %229 = vector.broadcast %cst_68 : f32 to vector<4x32xf32>
    %230 = arith.maximumf %228, %229 : vector<4x32xf32>
    %cst_69 = arith.constant dense<0.000000e+00> : vector<4x2xf32>
    %231 = tpu.matmul %230, %8, %cst_69 {dimension_numbers = #tpu.dot_dimension_numbers<[1], [0], [0], [1], [0, 0, 1, 1], [], []>} : vector<4x32xf32>, vector<32x2xf32>, vector<4x2xf32> -> vector<4x2xf32>
    %232 = arith.addf %231, %11 : vector<4x2xf32>
    %233 = vector.extract_strided_slice %232 {offsets = [0, 0], sizes = [4, 1], strides = [1, 1]} : vector<4x2xf32> to vector<4x1xf32>
    %234 = vector.extract_strided_slice %232 {offsets = [0, 1], sizes = [4, 1], strides = [1, 1]} : vector<4x2xf32> to vector<4x1xf32>
    %cst_70 = arith.constant 0.000000e+00 : f32
    %235 = vector.broadcast %cst_70 : f32 to vector<4x1xf32>
    %236 = arith.maximumf %234, %235 : vector<4x1xf32>
    %237 = math.absf %234 : vector<4x1xf32>
    %cst_71 = arith.constant 0.000000e+00 : f32
    %238 = vector.broadcast %cst_71 : f32 to vector<4x1xf32>
    %239 = arith.subf %238, %237 : vector<4x1xf32>
    %240 = math.exp %239 : vector<4x1xf32>
    %241 = math.log1p %240 : vector<4x1xf32>
    %242 = arith.addf %236, %241 : vector<4x1xf32>
    %cst_72 = arith.constant 9.99999997E-7 : f32
    %243 = vector.broadcast %cst_72 : f32 to vector<4x1xf32>
    %244 = arith.addf %242, %243 : vector<4x1xf32>
    %c0_73 = arith.constant 0 : index
    %c2_74 = arith.constant 2 : index
    %245 = vector.load %arg9[%c0_73, %c2_74] : memref<4x12xf32, #tpu.memory_space<vmem>>, vector<4x1xf32>
    tpu.vector_store %arg9[%c0_73, %c2_74], %233 {strides = array<i32>} : memref<4x12xf32, #tpu.memory_space<vmem>>, vector<4x1xf32>,
    %c0_75 = arith.constant 0 : index
    %c2_76 = arith.constant 2 : index
    %246 = vector.load %arg10[%c0_75, %c2_76] : memref<4x12xf32, #tpu.memory_space<vmem>>, vector<4x1xf32>
    tpu.vector_store %arg10[%c0_75, %c2_76], %244 {strides = array<i32>} : memref<4x12xf32, #tpu.memory_space<vmem>>, vector<4x1xf32>,
    %c0_77 = arith.constant 0 : index
    %c2_78 = arith.constant 2 : index
    %247 = vector.load %arg1[%c0_77, %c2_78] : memref<4x8xf32, #tpu.memory_space<vmem>>, vector<4x1xf32>
    %c3 = arith.constant 3 : index
    %c0_79 = arith.constant 0 : index
    %c0_80 = arith.constant 0 : index
    %248 = vector.load %arg0[%c3, %c0_79, %c0_80] : memref<12x4x4xf32, #tpu.memory_space<vmem>>, vector<1x4x4xf32>
    %249 = vector.shape_cast %248 : vector<1x4x4xf32> to vector<4x4xf32>
    %250 = tpu.concatenate %249, %247, %200 in 1 : vector<4x4xf32>, vector<4x1xf32>, vector<4x32xf32> -> vector<4x37xf32>
    %cst_81 = arith.constant dense<0.000000e+00> : vector<4x128xf32>
    %251 = tpu.matmul %250, %0, %cst_81 {dimension_numbers = #tpu.dot_dimension_numbers<[1], [0], [0], [1], [0, 0, 1, 1], [], []>} : vector<4x37xf32>, vector<37x128xf32>, vector<4x128xf32> -> vector<4x128xf32>
    %252 = arith.addf %251, %3 : vector<4x128xf32>
    %253 = vector.extract_strided_slice %252 {offsets = [0, 0], sizes = [4, 32], strides = [1, 1]} : vector<4x128xf32> to vector<4x32xf32>
    %254 = arith.negf %253 : vector<4x32xf32>
    %255 = math.exp %254 : vector<4x32xf32>
    %cst_82 = arith.constant 1.000000e+00 : f32
    %256 = vector.broadcast %cst_82 : f32 to vector<4x32xf32>
    %257 = arith.addf %256, %255 : vector<4x32xf32>
    %258 = arith.divf %256, %257 : vector<4x32xf32>
    %259 = vector.extract_strided_slice %252 {offsets = [0, 32], sizes = [4, 32], strides = [1, 1]} : vector<4x128xf32> to vector<4x32xf32>
    %260 = arith.negf %259 : vector<4x32xf32>
    %261 = math.exp %260 : vector<4x32xf32>
    %cst_83 = arith.constant 1.000000e+00 : f32
    %262 = vector.broadcast %cst_83 : f32 to vector<4x32xf32>
    %263 = arith.addf %262, %261 : vector<4x32xf32>
    %264 = arith.divf %262, %263 : vector<4x32xf32>
    %265 = vector.extract_strided_slice %252 {offsets = [0, 64], sizes = [4, 32], strides = [1, 1]} : vector<4x128xf32> to vector<4x32xf32>
    %266 = math.tanh %265 : vector<4x32xf32>
    %267 = vector.extract_strided_slice %252 {offsets = [0, 96], sizes = [4, 32], strides = [1, 1]} : vector<4x128xf32> to vector<4x32xf32>
    %268 = arith.negf %267 : vector<4x32xf32>
    %269 = math.exp %268 : vector<4x32xf32>
    %cst_84 = arith.constant 1.000000e+00 : f32
    %270 = vector.broadcast %cst_84 : f32 to vector<4x32xf32>
    %271 = arith.addf %270, %269 : vector<4x32xf32>
    %272 = arith.divf %270, %271 : vector<4x32xf32>
    %273 = arith.mulf %264, %198 : vector<4x32xf32>
    %274 = arith.mulf %258, %266 : vector<4x32xf32>
    %275 = arith.addf %273, %274 : vector<4x32xf32>
    %276 = math.tanh %275 : vector<4x32xf32>
    %277 = arith.mulf %272, %276 : vector<4x32xf32>
    %278 = tpu.concatenate %277, %228 in 1 : vector<4x32xf32>, vector<4x32xf32> -> vector<4x64xf32>
    %cst_85 = arith.constant dense<0.000000e+00> : vector<4x128xf32>
    %279 = tpu.matmul %278, %4, %cst_85 {dimension_numbers = #tpu.dot_dimension_numbers<[1], [0], [0], [1], [0, 0, 1, 1], [], []>} : vector<4x64xf32>, vector<64x128xf32>, vector<4x128xf32> -> vector<4x128xf32>
    %280 = arith.addf %279, %7 : vector<4x128xf32>
    %281 = vector.extract_strided_slice %280 {offsets = [0, 0], sizes = [4, 32], strides = [1, 1]} : vector<4x128xf32> to vector<4x32xf32>
    %282 = arith.negf %281 : vector<4x32xf32>
    %283 = math.exp %282 : vector<4x32xf32>
    %cst_86 = arith.constant 1.000000e+00 : f32
    %284 = vector.broadcast %cst_86 : f32 to vector<4x32xf32>
    %285 = arith.addf %284, %283 : vector<4x32xf32>
    %286 = arith.divf %284, %285 : vector<4x32xf32>
    %287 = vector.extract_strided_slice %280 {offsets = [0, 32], sizes = [4, 32], strides = [1, 1]} : vector<4x128xf32> to vector<4x32xf32>
    %288 = arith.negf %287 : vector<4x32xf32>
    %289 = math.exp %288 : vector<4x32xf32>
    %cst_87 = arith.constant 1.000000e+00 : f32
    %290 = vector.broadcast %cst_87 : f32 to vector<4x32xf32>
    %291 = arith.addf %290, %289 : vector<4x32xf32>
    %292 = arith.divf %290, %291 : vector<4x32xf32>
    %293 = vector.extract_strided_slice %280 {offsets = [0, 64], sizes = [4, 32], strides = [1, 1]} : vector<4x128xf32> to vector<4x32xf32>
    %294 = math.tanh %293 : vector<4x32xf32>
    %295 = vector.extract_strided_slice %280 {offsets = [0, 96], sizes = [4, 32], strides = [1, 1]} : vector<4x128xf32> to vector<4x32xf32>
    %296 = arith.negf %295 : vector<4x32xf32>
    %297 = math.exp %296 : vector<4x32xf32>
    %cst_88 = arith.constant 1.000000e+00 : f32
    %298 = vector.broadcast %cst_88 : f32 to vector<4x32xf32>
    %299 = arith.addf %298, %297 : vector<4x32xf32>
    %300 = arith.divf %298, %299 : vector<4x32xf32>
    %301 = arith.mulf %292, %226 : vector<4x32xf32>
    %302 = arith.mulf %286, %294 : vector<4x32xf32>
    %303 = arith.addf %301, %302 : vector<4x32xf32>
    %304 = math.tanh %303 : vector<4x32xf32>
    %305 = arith.mulf %300, %304 : vector<4x32xf32>
    %cst_89 = arith.constant 0.000000e+00 : f32
    %306 = vector.broadcast %cst_89 : f32 to vector<4x32xf32>
    %307 = arith.maximumf %305, %306 : vector<4x32xf32>
    %cst_90 = arith.constant dense<0.000000e+00> : vector<4x2xf32>
    %308 = tpu.matmul %307, %8, %cst_90 {dimension_numbers = #tpu.dot_dimension_numbers<[1], [0], [0], [1], [0, 0, 1, 1], [], []>} : vector<4x32xf32>, vector<32x2xf32>, vector<4x2xf32> -> vector<4x2xf32>
    %309 = arith.addf %308, %11 : vector<4x2xf32>
    %310 = vector.extract_strided_slice %309 {offsets = [0, 0], sizes = [4, 1], strides = [1, 1]} : vector<4x2xf32> to vector<4x1xf32>
    %311 = vector.extract_strided_slice %309 {offsets = [0, 1], sizes = [4, 1], strides = [1, 1]} : vector<4x2xf32> to vector<4x1xf32>
    %cst_91 = arith.constant 0.000000e+00 : f32
    %312 = vector.broadcast %cst_91 : f32 to vector<4x1xf32>
    %313 = arith.maximumf %311, %312 : vector<4x1xf32>
    %314 = math.absf %311 : vector<4x1xf32>
    %cst_92 = arith.constant 0.000000e+00 : f32
    %315 = vector.broadcast %cst_92 : f32 to vector<4x1xf32>
    %316 = arith.subf %315, %314 : vector<4x1xf32>
    %317 = math.exp %316 : vector<4x1xf32>
    %318 = math.log1p %317 : vector<4x1xf32>
    %319 = arith.addf %313, %318 : vector<4x1xf32>
    %cst_93 = arith.constant 9.99999997E-7 : f32
    %320 = vector.broadcast %cst_93 : f32 to vector<4x1xf32>
    %321 = arith.addf %319, %320 : vector<4x1xf32>
    %c0_94 = arith.constant 0 : index
    %c3_95 = arith.constant 3 : index
    %322 = vector.load %arg9[%c0_94, %c3_95] : memref<4x12xf32, #tpu.memory_space<vmem>>, vector<4x1xf32>
    tpu.vector_store %arg9[%c0_94, %c3_95], %310 {strides = array<i32>} : memref<4x12xf32, #tpu.memory_space<vmem>>, vector<4x1xf32>,
    %c0_96 = arith.constant 0 : index
    %c3_97 = arith.constant 3 : index
    %323 = vector.load %arg10[%c0_96, %c3_97] : memref<4x12xf32, #tpu.memory_space<vmem>>, vector<4x1xf32>
    tpu.vector_store %arg10[%c0_96, %c3_97], %321 {strides = array<i32>} : memref<4x12xf32, #tpu.memory_space<vmem>>, vector<4x1xf32>,
    %c0_98 = arith.constant 0 : index
    %c3_99 = arith.constant 3 : index
    %324 = vector.load %arg1[%c0_98, %c3_99] : memref<4x8xf32, #tpu.memory_space<vmem>>, vector<4x1xf32>
    %c4 = arith.constant 4 : index
    %c0_100 = arith.constant 0 : index
    %c0_101 = arith.constant 0 : index
    %325 = vector.load %arg0[%c4, %c0_100, %c0_101] : memref<12x4x4xf32, #tpu.memory_space<vmem>>, vector<1x4x4xf32>
    %326 = vector.shape_cast %325 : vector<1x4x4xf32> to vector<4x4xf32>
    %327 = tpu.concatenate %326, %324, %277 in 1 : vector<4x4xf32>, vector<4x1xf32>, vector<4x32xf32> -> vector<4x37xf32>
    %cst_102 = arith.constant dense<0.000000e+00> : vector<4x128xf32>
    %328 = tpu.matmul %327, %0, %cst_102 {dimension_numbers = #tpu.dot_dimension_numbers<[1], [0], [0], [1], [0, 0, 1, 1], [], []>} : vector<4x37xf32>, vector<37x128xf32>, vector<4x128xf32> -> vector<4x128xf32>
    %329 = arith.addf %328, %3 : vector<4x128xf32>
    %330 = vector.extract_strided_slice %329 {offsets = [0, 0], sizes = [4, 32], strides = [1, 1]} : vector<4x128xf32> to vector<4x32xf32>
    %331 = arith.negf %330 : vector<4x32xf32>
    %332 = math.exp %331 : vector<4x32xf32>
    %cst_103 = arith.constant 1.000000e+00 : f32
    %333 = vector.broadcast %cst_103 : f32 to vector<4x32xf32>
    %334 = arith.addf %333, %332 : vector<4x32xf32>
    %335 = arith.divf %333, %334 : vector<4x32xf32>
    %336 = vector.extract_strided_slice %329 {offsets = [0, 32], sizes = [4, 32], strides = [1, 1]} : vector<4x128xf32> to vector<4x32xf32>
    %337 = arith.negf %336 : vector<4x32xf32>
    %338 = math.exp %337 : vector<4x32xf32>
    %cst_104 = arith.constant 1.000000e+00 : f32
    %339 = vector.broadcast %cst_104 : f32 to vector<4x32xf32>
    %340 = arith.addf %339, %338 : vector<4x32xf32>
    %341 = arith.divf %339, %340 : vector<4x32xf32>
    %342 = vector.extract_strided_slice %329 {offsets = [0, 64], sizes = [4, 32], strides = [1, 1]} : vector<4x128xf32> to vector<4x32xf32>
    %343 = math.tanh %342 : vector<4x32xf32>
    %344 = vector.extract_strided_slice %329 {offsets = [0, 96], sizes = [4, 32], strides = [1, 1]} : vector<4x128xf32> to vector<4x32xf32>
    %345 = arith.negf %344 : vector<4x32xf32>
    %346 = math.exp %345 : vector<4x32xf32>
    %cst_105 = arith.constant 1.000000e+00 : f32
    %347 = vector.broadcast %cst_105 : f32 to vector<4x32xf32>
    %348 = arith.addf %347, %346 : vector<4x32xf32>
    %349 = arith.divf %347, %348 : vector<4x32xf32>
    %350 = arith.mulf %341, %275 : vector<4x32xf32>
    %351 = arith.mulf %335, %343 : vector<4x32xf32>
    %352 = arith.addf %350, %351 : vector<4x32xf32>
    %353 = math.tanh %352 : vector<4x32xf32>
    %354 = arith.mulf %349, %353 : vector<4x32xf32>
    %355 = tpu.concatenate %354, %305 in 1 : vector<4x32xf32>, vector<4x32xf32> -> vector<4x64xf32>
    %cst_106 = arith.constant dense<0.000000e+00> : vector<4x128xf32>
    %356 = tpu.matmul %355, %4, %cst_106 {dimension_numbers = #tpu.dot_dimension_numbers<[1], [0], [0], [1], [0, 0, 1, 1], [], []>} : vector<4x64xf32>, vector<64x128xf32>, vector<4x128xf32> -> vector<4x128xf32>
    %357 = arith.addf %356, %7 : vector<4x128xf32>
    %358 = vector.extract_strided_slice %357 {offsets = [0, 0], sizes = [4, 32], strides = [1, 1]} : vector<4x128xf32> to vector<4x32xf32>
    %359 = arith.negf %358 : vector<4x32xf32>
    %360 = math.exp %359 : vector<4x32xf32>
    %cst_107 = arith.constant 1.000000e+00 : f32
    %361 = vector.broadcast %cst_107 : f32 to vector<4x32xf32>
    %362 = arith.addf %361, %360 : vector<4x32xf32>
    %363 = arith.divf %361, %362 : vector<4x32xf32>
    %364 = vector.extract_strided_slice %357 {offsets = [0, 32], sizes = [4, 32], strides = [1, 1]} : vector<4x128xf32> to vector<4x32xf32>
    %365 = arith.negf %364 : vector<4x32xf32>
    %366 = math.exp %365 : vector<4x32xf32>
    %cst_108 = arith.constant 1.000000e+00 : f32
    %367 = vector.broadcast %cst_108 : f32 to vector<4x32xf32>
    %368 = arith.addf %367, %366 : vector<4x32xf32>
    %369 = arith.divf %367, %368 : vector<4x32xf32>
    %370 = vector.extract_strided_slice %357 {offsets = [0, 64], sizes = [4, 32], strides = [1, 1]} : vector<4x128xf32> to vector<4x32xf32>
    %371 = math.tanh %370 : vector<4x32xf32>
    %372 = vector.extract_strided_slice %357 {offsets = [0, 96], sizes = [4, 32], strides = [1, 1]} : vector<4x128xf32> to vector<4x32xf32>
    %373 = arith.negf %372 : vector<4x32xf32>
    %374 = math.exp %373 : vector<4x32xf32>
    %cst_109 = arith.constant 1.000000e+00 : f32
    %375 = vector.broadcast %cst_109 : f32 to vector<4x32xf32>
    %376 = arith.addf %375, %374 : vector<4x32xf32>
    %377 = arith.divf %375, %376 : vector<4x32xf32>
    %378 = arith.mulf %369, %303 : vector<4x32xf32>
    %379 = arith.mulf %363, %371 : vector<4x32xf32>
    %380 = arith.addf %378, %379 : vector<4x32xf32>
    %381 = math.tanh %380 : vector<4x32xf32>
    %382 = arith.mulf %377, %381 : vector<4x32xf32>
    %cst_110 = arith.constant 0.000000e+00 : f32
    %383 = vector.broadcast %cst_110 : f32 to vector<4x32xf32>
    %384 = arith.maximumf %382, %383 : vector<4x32xf32>
    %cst_111 = arith.constant dense<0.000000e+00> : vector<4x2xf32>
    %385 = tpu.matmul %384, %8, %cst_111 {dimension_numbers = #tpu.dot_dimension_numbers<[1], [0], [0], [1], [0, 0, 1, 1], [], []>} : vector<4x32xf32>, vector<32x2xf32>, vector<4x2xf32> -> vector<4x2xf32>
    %386 = arith.addf %385, %11 : vector<4x2xf32>
    %387 = vector.extract_strided_slice %386 {offsets = [0, 0], sizes = [4, 1], strides = [1, 1]} : vector<4x2xf32> to vector<4x1xf32>
    %388 = vector.extract_strided_slice %386 {offsets = [0, 1], sizes = [4, 1], strides = [1, 1]} : vector<4x2xf32> to vector<4x1xf32>
    %cst_112 = arith.constant 0.000000e+00 : f32
    %389 = vector.broadcast %cst_112 : f32 to vector<4x1xf32>
    %390 = arith.maximumf %388, %389 : vector<4x1xf32>
    %391 = math.absf %388 : vector<4x1xf32>
    %cst_113 = arith.constant 0.000000e+00 : f32
    %392 = vector.broadcast %cst_113 : f32 to vector<4x1xf32>
    %393 = arith.subf %392, %391 : vector<4x1xf32>
    %394 = math.exp %393 : vector<4x1xf32>
    %395 = math.log1p %394 : vector<4x1xf32>
    %396 = arith.addf %390, %395 : vector<4x1xf32>
    %cst_114 = arith.constant 9.99999997E-7 : f32
    %397 = vector.broadcast %cst_114 : f32 to vector<4x1xf32>
    %398 = arith.addf %396, %397 : vector<4x1xf32>
    %c0_115 = arith.constant 0 : index
    %c4_116 = arith.constant 4 : index
    %399 = vector.load %arg9[%c0_115, %c4_116] : memref<4x12xf32, #tpu.memory_space<vmem>>, vector<4x1xf32>
    tpu.vector_store %arg9[%c0_115, %c4_116], %387 {strides = array<i32>} : memref<4x12xf32, #tpu.memory_space<vmem>>, vector<4x1xf32>,
    %c0_117 = arith.constant 0 : index
    %c4_118 = arith.constant 4 : index
    %400 = vector.load %arg10[%c0_117, %c4_118] : memref<4x12xf32, #tpu.memory_space<vmem>>, vector<4x1xf32>
    tpu.vector_store %arg10[%c0_117, %c4_118], %398 {strides = array<i32>} : memref<4x12xf32, #tpu.memory_space<vmem>>, vector<4x1xf32>,
    %c0_119 = arith.constant 0 : index
    %c4_120 = arith.constant 4 : index
    %401 = vector.load %arg1[%c0_119, %c4_120] : memref<4x8xf32, #tpu.memory_space<vmem>>, vector<4x1xf32>
    %c5 = arith.constant 5 : index
    %c0_121 = arith.constant 0 : index
    %c0_122 = arith.constant 0 : index
    %402 = vector.load %arg0[%c5, %c0_121, %c0_122] : memref<12x4x4xf32, #tpu.memory_space<vmem>>, vector<1x4x4xf32>
    %403 = vector.shape_cast %402 : vector<1x4x4xf32> to vector<4x4xf32>
    %404 = tpu.concatenate %403, %401, %354 in 1 : vector<4x4xf32>, vector<4x1xf32>, vector<4x32xf32> -> vector<4x37xf32>
    %cst_123 = arith.constant dense<0.000000e+00> : vector<4x128xf32>
    %405 = tpu.matmul %404, %0, %cst_123 {dimension_numbers = #tpu.dot_dimension_numbers<[1], [0], [0], [1], [0, 0, 1, 1], [], []>} : vector<4x37xf32>, vector<37x128xf32>, vector<4x128xf32> -> vector<4x128xf32>
    %406 = arith.addf %405, %3 : vector<4x128xf32>
    %407 = vector.extract_strided_slice %406 {offsets = [0, 0], sizes = [4, 32], strides = [1, 1]} : vector<4x128xf32> to vector<4x32xf32>
    %408 = arith.negf %407 : vector<4x32xf32>
    %409 = math.exp %408 : vector<4x32xf32>
    %cst_124 = arith.constant 1.000000e+00 : f32
    %410 = vector.broadcast %cst_124 : f32 to vector<4x32xf32>
    %411 = arith.addf %410, %409 : vector<4x32xf32>
    %412 = arith.divf %410, %411 : vector<4x32xf32>
    %413 = vector.extract_strided_slice %406 {offsets = [0, 32], sizes = [4, 32], strides = [1, 1]} : vector<4x128xf32> to vector<4x32xf32>
    %414 = arith.negf %413 : vector<4x32xf32>
    %415 = math.exp %414 : vector<4x32xf32>
    %cst_125 = arith.constant 1.000000e+00 : f32
    %416 = vector.broadcast %cst_125 : f32 to vector<4x32xf32>
    %417 = arith.addf %416, %415 : vector<4x32xf32>
    %418 = arith.divf %416, %417 : vector<4x32xf32>
    %419 = vector.extract_strided_slice %406 {offsets = [0, 64], sizes = [4, 32], strides = [1, 1]} : vector<4x128xf32> to vector<4x32xf32>
    %420 = math.tanh %419 : vector<4x32xf32>
    %421 = vector.extract_strided_slice %406 {offsets = [0, 96], sizes = [4, 32], strides = [1, 1]} : vector<4x128xf32> to vector<4x32xf32>
    %422 = arith.negf %421 : vector<4x32xf32>
    %423 = math.exp %422 : vector<4x32xf32>
    %cst_126 = arith.constant 1.000000e+00 : f32
    %424 = vector.broadcast %cst_126 : f32 to vector<4x32xf32>
    %425 = arith.addf %424, %423 : vector<4x32xf32>
    %426 = arith.divf %424, %425 : vector<4x32xf32>
    %427 = arith.mulf %418, %352 : vector<4x32xf32>
    %428 = arith.mulf %412, %420 : vector<4x32xf32>
    %429 = arith.addf %427, %428 : vector<4x32xf32>
    %430 = math.tanh %429 : vector<4x32xf32>
    %431 = arith.mulf %426, %430 : vector<4x32xf32>
    %432 = tpu.concatenate %431, %382 in 1 : vector<4x32xf32>, vector<4x32xf32> -> vector<4x64xf32>
    %cst_127 = arith.constant dense<0.000000e+00> : vector<4x128xf32>
    %433 = tpu.matmul %432, %4, %cst_127 {dimension_numbers = #tpu.dot_dimension_numbers<[1], [0], [0], [1], [0, 0, 1, 1], [], []>} : vector<4x64xf32>, vector<64x128xf32>, vector<4x128xf32> -> vector<4x128xf32>
    %434 = arith.addf %433, %7 : vector<4x128xf32>
    %435 = vector.extract_strided_slice %434 {offsets = [0, 0], sizes = [4, 32], strides = [1, 1]} : vector<4x128xf32> to vector<4x32xf32>
    %436 = arith.negf %435 : vector<4x32xf32>
    %437 = math.exp %436 : vector<4x32xf32>
    %cst_128 = arith.constant 1.000000e+00 : f32
    %438 = vector.broadcast %cst_128 : f32 to vector<4x32xf32>
    %439 = arith.addf %438, %437 : vector<4x32xf32>
    %440 = arith.divf %438, %439 : vector<4x32xf32>
    %441 = vector.extract_strided_slice %434 {offsets = [0, 32], sizes = [4, 32], strides = [1, 1]} : vector<4x128xf32> to vector<4x32xf32>
    %442 = arith.negf %441 : vector<4x32xf32>
    %443 = math.exp %442 : vector<4x32xf32>
    %cst_129 = arith.constant 1.000000e+00 : f32
    %444 = vector.broadcast %cst_129 : f32 to vector<4x32xf32>
    %445 = arith.addf %444, %443 : vector<4x32xf32>
    %446 = arith.divf %444, %445 : vector<4x32xf32>
    %447 = vector.extract_strided_slice %434 {offsets = [0, 64], sizes = [4, 32], strides = [1, 1]} : vector<4x128xf32> to vector<4x32xf32>
    %448 = math.tanh %447 : vector<4x32xf32>
    %449 = vector.extract_strided_slice %434 {offsets = [0, 96], sizes = [4, 32], strides = [1, 1]} : vector<4x128xf32> to vector<4x32xf32>
    %450 = arith.negf %449 : vector<4x32xf32>
    %451 = math.exp %450 : vector<4x32xf32>
    %cst_130 = arith.constant 1.000000e+00 : f32
    %452 = vector.broadcast %cst_130 : f32 to vector<4x32xf32>
    %453 = arith.addf %452, %451 : vector<4x32xf32>
    %454 = arith.divf %452, %453 : vector<4x32xf32>
    %455 = arith.mulf %446, %380 : vector<4x32xf32>
    %456 = arith.mulf %440, %448 : vector<4x32xf32>
    %457 = arith.addf %455, %456 : vector<4x32xf32>
    %458 = math.tanh %457 : vector<4x32xf32>
    %459 = arith.mulf %454, %458 : vector<4x32xf32>
    %cst_131 = arith.constant 0.000000e+00 : f32
    %460 = vector.broadcast %cst_131 : f32 to vector<4x32xf32>
    %461 = arith.maximumf %459, %460 : vector<4x32xf32>
    %cst_132 = arith.constant dense<0.000000e+00> : vector<4x2xf32>
    %462 = tpu.matmul %461, %8, %cst_132 {dimension_numbers = #tpu.dot_dimension_numbers<[1], [0], [0], [1], [0, 0, 1, 1], [], []>} : vector<4x32xf32>, vector<32x2xf32>, vector<4x2xf32> -> vector<4x2xf32>
    %463 = arith.addf %462, %11 : vector<4x2xf32>
    %464 = vector.extract_strided_slice %463 {offsets = [0, 0], sizes = [4, 1], strides = [1, 1]} : vector<4x2xf32> to vector<4x1xf32>
    %465 = vector.extract_strided_slice %463 {offsets = [0, 1], sizes = [4, 1], strides = [1, 1]} : vector<4x2xf32> to vector<4x1xf32>
    %cst_133 = arith.constant 0.000000e+00 : f32
    %466 = vector.broadcast %cst_133 : f32 to vector<4x1xf32>
    %467 = arith.maximumf %465, %466 : vector<4x1xf32>
    %468 = math.absf %465 : vector<4x1xf32>
    %cst_134 = arith.constant 0.000000e+00 : f32
    %469 = vector.broadcast %cst_134 : f32 to vector<4x1xf32>
    %470 = arith.subf %469, %468 : vector<4x1xf32>
    %471 = math.exp %470 : vector<4x1xf32>
    %472 = math.log1p %471 : vector<4x1xf32>
    %473 = arith.addf %467, %472 : vector<4x1xf32>
    %cst_135 = arith.constant 9.99999997E-7 : f32
    %474 = vector.broadcast %cst_135 : f32 to vector<4x1xf32>
    %475 = arith.addf %473, %474 : vector<4x1xf32>
    %c0_136 = arith.constant 0 : index
    %c5_137 = arith.constant 5 : index
    %476 = vector.load %arg9[%c0_136, %c5_137] : memref<4x12xf32, #tpu.memory_space<vmem>>, vector<4x1xf32>
    tpu.vector_store %arg9[%c0_136, %c5_137], %464 {strides = array<i32>} : memref<4x12xf32, #tpu.memory_space<vmem>>, vector<4x1xf32>,
    %c0_138 = arith.constant 0 : index
    %c5_139 = arith.constant 5 : index
    %477 = vector.load %arg10[%c0_138, %c5_139] : memref<4x12xf32, #tpu.memory_space<vmem>>, vector<4x1xf32>
    tpu.vector_store %arg10[%c0_138, %c5_139], %475 {strides = array<i32>} : memref<4x12xf32, #tpu.memory_space<vmem>>, vector<4x1xf32>,
    %c0_140 = arith.constant 0 : index
    %c5_141 = arith.constant 5 : index
    %478 = vector.load %arg1[%c0_140, %c5_141] : memref<4x8xf32, #tpu.memory_space<vmem>>, vector<4x1xf32>
    %c6 = arith.constant 6 : index
    %c0_142 = arith.constant 0 : index
    %c0_143 = arith.constant 0 : index
    %479 = vector.load %arg0[%c6, %c0_142, %c0_143] : memref<12x4x4xf32, #tpu.memory_space<vmem>>, vector<1x4x4xf32>
    %480 = vector.shape_cast %479 : vector<1x4x4xf32> to vector<4x4xf32>
    %481 = tpu.concatenate %480, %478, %431 in 1 : vector<4x4xf32>, vector<4x1xf32>, vector<4x32xf32> -> vector<4x37xf32>
    %cst_144 = arith.constant dense<0.000000e+00> : vector<4x128xf32>
    %482 = tpu.matmul %481, %0, %cst_144 {dimension_numbers = #tpu.dot_dimension_numbers<[1], [0], [0], [1], [0, 0, 1, 1], [], []>} : vector<4x37xf32>, vector<37x128xf32>, vector<4x128xf32> -> vector<4x128xf32>
    %483 = arith.addf %482, %3 : vector<4x128xf32>
    %484 = vector.extract_strided_slice %483 {offsets = [0, 0], sizes = [4, 32], strides = [1, 1]} : vector<4x128xf32> to vector<4x32xf32>
    %485 = arith.negf %484 : vector<4x32xf32>
    %486 = math.exp %485 : vector<4x32xf32>
    %cst_145 = arith.constant 1.000000e+00 : f32
    %487 = vector.broadcast %cst_145 : f32 to vector<4x32xf32>
    %488 = arith.addf %487, %486 : vector<4x32xf32>
    %489 = arith.divf %487, %488 : vector<4x32xf32>
    %490 = vector.extract_strided_slice %483 {offsets = [0, 32], sizes = [4, 32], strides = [1, 1]} : vector<4x128xf32> to vector<4x32xf32>
    %491 = arith.negf %490 : vector<4x32xf32>
    %492 = math.exp %491 : vector<4x32xf32>
    %cst_146 = arith.constant 1.000000e+00 : f32
    %493 = vector.broadcast %cst_146 : f32 to vector<4x32xf32>
    %494 = arith.addf %493, %492 : vector<4x32xf32>
    %495 = arith.divf %493, %494 : vector<4x32xf32>
    %496 = vector.extract_strided_slice %483 {offsets = [0, 64], sizes = [4, 32], strides = [1, 1]} : vector<4x128xf32> to vector<4x32xf32>
    %497 = math.tanh %496 : vector<4x32xf32>
    %498 = vector.extract_strided_slice %483 {offsets = [0, 96], sizes = [4, 32], strides = [1, 1]} : vector<4x128xf32> to vector<4x32xf32>
    %499 = arith.negf %498 : vector<4x32xf32>
    %500 = math.exp %499 : vector<4x32xf32>
    %cst_147 = arith.constant 1.000000e+00 : f32
    %501 = vector.broadcast %cst_147 : f32 to vector<4x32xf32>
    %502 = arith.addf %501, %500 : vector<4x32xf32>
    %503 = arith.divf %501, %502 : vector<4x32xf32>
    %504 = arith.mulf %495, %429 : vector<4x32xf32>
    %505 = arith.mulf %489, %497 : vector<4x32xf32>
    %506 = arith.addf %504, %505 : vector<4x32xf32>
    %507 = math.tanh %506 : vector<4x32xf32>
    %508 = arith.mulf %503, %507 : vector<4x32xf32>
    %509 = tpu.concatenate %508, %459 in 1 : vector<4x32xf32>, vector<4x32xf32> -> vector<4x64xf32>
    %cst_148 = arith.constant dense<0.000000e+00> : vector<4x128xf32>
    %510 = tpu.matmul %509, %4, %cst_148 {dimension_numbers = #tpu.dot_dimension_numbers<[1], [0], [0], [1], [0, 0, 1, 1], [], []>} : vector<4x64xf32>, vector<64x128xf32>, vector<4x128xf32> -> vector<4x128xf32>
    %511 = arith.addf %510, %7 : vector<4x128xf32>
    %512 = vector.extract_strided_slice %511 {offsets = [0, 0], sizes = [4, 32], strides = [1, 1]} : vector<4x128xf32> to vector<4x32xf32>
    %513 = arith.negf %512 : vector<4x32xf32>
    %514 = math.exp %513 : vector<4x32xf32>
    %cst_149 = arith.constant 1.000000e+00 : f32
    %515 = vector.broadcast %cst_149 : f32 to vector<4x32xf32>
    %516 = arith.addf %515, %514 : vector<4x32xf32>
    %517 = arith.divf %515, %516 : vector<4x32xf32>
    %518 = vector.extract_strided_slice %511 {offsets = [0, 32], sizes = [4, 32], strides = [1, 1]} : vector<4x128xf32> to vector<4x32xf32>
    %519 = arith.negf %518 : vector<4x32xf32>
    %520 = math.exp %519 : vector<4x32xf32>
    %cst_150 = arith.constant 1.000000e+00 : f32
    %521 = vector.broadcast %cst_150 : f32 to vector<4x32xf32>
    %522 = arith.addf %521, %520 : vector<4x32xf32>
    %523 = arith.divf %521, %522 : vector<4x32xf32>
    %524 = vector.extract_strided_slice %511 {offsets = [0, 64], sizes = [4, 32], strides = [1, 1]} : vector<4x128xf32> to vector<4x32xf32>
    %525 = math.tanh %524 : vector<4x32xf32>
    %526 = vector.extract_strided_slice %511 {offsets = [0, 96], sizes = [4, 32], strides = [1, 1]} : vector<4x128xf32> to vector<4x32xf32>
    %527 = arith.negf %526 : vector<4x32xf32>
    %528 = math.exp %527 : vector<4x32xf32>
    %cst_151 = arith.constant 1.000000e+00 : f32
    %529 = vector.broadcast %cst_151 : f32 to vector<4x32xf32>
    %530 = arith.addf %529, %528 : vector<4x32xf32>
    %531 = arith.divf %529, %530 : vector<4x32xf32>
    %532 = arith.mulf %523, %457 : vector<4x32xf32>
    %533 = arith.mulf %517, %525 : vector<4x32xf32>
    %534 = arith.addf %532, %533 : vector<4x32xf32>
    %535 = math.tanh %534 : vector<4x32xf32>
    %536 = arith.mulf %531, %535 : vector<4x32xf32>
    %cst_152 = arith.constant 0.000000e+00 : f32
    %537 = vector.broadcast %cst_152 : f32 to vector<4x32xf32>
    %538 = arith.maximumf %536, %537 : vector<4x32xf32>
    %cst_153 = arith.constant dense<0.000000e+00> : vector<4x2xf32>
    %539 = tpu.matmul %538, %8, %cst_153 {dimension_numbers = #tpu.dot_dimension_numbers<[1], [0], [0], [1], [0, 0, 1, 1], [], []>} : vector<4x32xf32>, vector<32x2xf32>, vector<4x2xf32> -> vector<4x2xf32>
    %540 = arith.addf %539, %11 : vector<4x2xf32>
    %541 = vector.extract_strided_slice %540 {offsets = [0, 0], sizes = [4, 1], strides = [1, 1]} : vector<4x2xf32> to vector<4x1xf32>
    %542 = vector.extract_strided_slice %540 {offsets = [0, 1], sizes = [4, 1], strides = [1, 1]} : vector<4x2xf32> to vector<4x1xf32>
    %cst_154 = arith.constant 0.000000e+00 : f32
    %543 = vector.broadcast %cst_154 : f32 to vector<4x1xf32>
    %544 = arith.maximumf %542, %543 : vector<4x1xf32>
    %545 = math.absf %542 : vector<4x1xf32>
    %cst_155 = arith.constant 0.000000e+00 : f32
    %546 = vector.broadcast %cst_155 : f32 to vector<4x1xf32>
    %547 = arith.subf %546, %545 : vector<4x1xf32>
    %548 = math.exp %547 : vector<4x1xf32>
    %549 = math.log1p %548 : vector<4x1xf32>
    %550 = arith.addf %544, %549 : vector<4x1xf32>
    %cst_156 = arith.constant 9.99999997E-7 : f32
    %551 = vector.broadcast %cst_156 : f32 to vector<4x1xf32>
    %552 = arith.addf %550, %551 : vector<4x1xf32>
    %c0_157 = arith.constant 0 : index
    %c6_158 = arith.constant 6 : index
    %553 = vector.load %arg9[%c0_157, %c6_158] : memref<4x12xf32, #tpu.memory_space<vmem>>, vector<4x1xf32>
    tpu.vector_store %arg9[%c0_157, %c6_158], %541 {strides = array<i32>} : memref<4x12xf32, #tpu.memory_space<vmem>>, vector<4x1xf32>,
    %c0_159 = arith.constant 0 : index
    %c6_160 = arith.constant 6 : index
    %554 = vector.load %arg10[%c0_159, %c6_160] : memref<4x12xf32, #tpu.memory_space<vmem>>, vector<4x1xf32>
    tpu.vector_store %arg10[%c0_159, %c6_160], %552 {strides = array<i32>} : memref<4x12xf32, #tpu.memory_space<vmem>>, vector<4x1xf32>,
    %c0_161 = arith.constant 0 : index
    %c6_162 = arith.constant 6 : index
    %555 = vector.load %arg1[%c0_161, %c6_162] : memref<4x8xf32, #tpu.memory_space<vmem>>, vector<4x1xf32>
    %c7 = arith.constant 7 : index
    %c0_163 = arith.constant 0 : index
    %c0_164 = arith.constant 0 : index
    %556 = vector.load %arg0[%c7, %c0_163, %c0_164] : memref<12x4x4xf32, #tpu.memory_space<vmem>>, vector<1x4x4xf32>
    %557 = vector.shape_cast %556 : vector<1x4x4xf32> to vector<4x4xf32>
    %558 = tpu.concatenate %557, %555, %508 in 1 : vector<4x4xf32>, vector<4x1xf32>, vector<4x32xf32> -> vector<4x37xf32>
    %cst_165 = arith.constant dense<0.000000e+00> : vector<4x128xf32>
    %559 = tpu.matmul %558, %0, %cst_165 {dimension_numbers = #tpu.dot_dimension_numbers<[1], [0], [0], [1], [0, 0, 1, 1], [], []>} : vector<4x37xf32>, vector<37x128xf32>, vector<4x128xf32> -> vector<4x128xf32>
    %560 = arith.addf %559, %3 : vector<4x128xf32>
    %561 = vector.extract_strided_slice %560 {offsets = [0, 0], sizes = [4, 32], strides = [1, 1]} : vector<4x128xf32> to vector<4x32xf32>
    %562 = arith.negf %561 : vector<4x32xf32>
    %563 = math.exp %562 : vector<4x32xf32>
    %cst_166 = arith.constant 1.000000e+00 : f32
    %564 = vector.broadcast %cst_166 : f32 to vector<4x32xf32>
    %565 = arith.addf %564, %563 : vector<4x32xf32>
    %566 = arith.divf %564, %565 : vector<4x32xf32>
    %567 = vector.extract_strided_slice %560 {offsets = [0, 32], sizes = [4, 32], strides = [1, 1]} : vector<4x128xf32> to vector<4x32xf32>
    %568 = arith.negf %567 : vector<4x32xf32>
    %569 = math.exp %568 : vector<4x32xf32>
    %cst_167 = arith.constant 1.000000e+00 : f32
    %570 = vector.broadcast %cst_167 : f32 to vector<4x32xf32>
    %571 = arith.addf %570, %569 : vector<4x32xf32>
    %572 = arith.divf %570, %571 : vector<4x32xf32>
    %573 = vector.extract_strided_slice %560 {offsets = [0, 64], sizes = [4, 32], strides = [1, 1]} : vector<4x128xf32> to vector<4x32xf32>
    %574 = math.tanh %573 : vector<4x32xf32>
    %575 = vector.extract_strided_slice %560 {offsets = [0, 96], sizes = [4, 32], strides = [1, 1]} : vector<4x128xf32> to vector<4x32xf32>
    %576 = arith.negf %575 : vector<4x32xf32>
    %577 = math.exp %576 : vector<4x32xf32>
    %cst_168 = arith.constant 1.000000e+00 : f32
    %578 = vector.broadcast %cst_168 : f32 to vector<4x32xf32>
    %579 = arith.addf %578, %577 : vector<4x32xf32>
    %580 = arith.divf %578, %579 : vector<4x32xf32>
    %581 = arith.mulf %572, %506 : vector<4x32xf32>
    %582 = arith.mulf %566, %574 : vector<4x32xf32>
    %583 = arith.addf %581, %582 : vector<4x32xf32>
    %584 = math.tanh %583 : vector<4x32xf32>
    %585 = arith.mulf %580, %584 : vector<4x32xf32>
    %586 = tpu.concatenate %585, %536 in 1 : vector<4x32xf32>, vector<4x32xf32> -> vector<4x64xf32>
    %cst_169 = arith.constant dense<0.000000e+00> : vector<4x128xf32>
    %587 = tpu.matmul %586, %4, %cst_169 {dimension_numbers = #tpu.dot_dimension_numbers<[1], [0], [0], [1], [0, 0, 1, 1], [], []>} : vector<4x64xf32>, vector<64x128xf32>, vector<4x128xf32> -> vector<4x128xf32>
    %588 = arith.addf %587, %7 : vector<4x128xf32>
    %589 = vector.extract_strided_slice %588 {offsets = [0, 0], sizes = [4, 32], strides = [1, 1]} : vector<4x128xf32> to vector<4x32xf32>
    %590 = arith.negf %589 : vector<4x32xf32>
    %591 = math.exp %590 : vector<4x32xf32>
    %cst_170 = arith.constant 1.000000e+00 : f32
    %592 = vector.broadcast %cst_170 : f32 to vector<4x32xf32>
    %593 = arith.addf %592, %591 : vector<4x32xf32>
    %594 = arith.divf %592, %593 : vector<4x32xf32>
    %595 = vector.extract_strided_slice %588 {offsets = [0, 32], sizes = [4, 32], strides = [1, 1]} : vector<4x128xf32> to vector<4x32xf32>
    %596 = arith.negf %595 : vector<4x32xf32>
    %597 = math.exp %596 : vector<4x32xf32>
    %cst_171 = arith.constant 1.000000e+00 : f32
    %598 = vector.broadcast %cst_171 : f32 to vector<4x32xf32>
    %599 = arith.addf %598, %597 : vector<4x32xf32>
    %600 = arith.divf %598, %599 : vector<4x32xf32>
    %601 = vector.extract_strided_slice %588 {offsets = [0, 64], sizes = [4, 32], strides = [1, 1]} : vector<4x128xf32> to vector<4x32xf32>
    %602 = math.tanh %601 : vector<4x32xf32>
    %603 = vector.extract_strided_slice %588 {offsets = [0, 96], sizes = [4, 32], strides = [1, 1]} : vector<4x128xf32> to vector<4x32xf32>
    %604 = arith.negf %603 : vector<4x32xf32>
    %605 = math.exp %604 : vector<4x32xf32>
    %cst_172 = arith.constant 1.000000e+00 : f32
    %606 = vector.broadcast %cst_172 : f32 to vector<4x32xf32>
    %607 = arith.addf %606, %605 : vector<4x32xf32>
    %608 = arith.divf %606, %607 : vector<4x32xf32>
    %609 = arith.mulf %600, %534 : vector<4x32xf32>
    %610 = arith.mulf %594, %602 : vector<4x32xf32>
    %611 = arith.addf %609, %610 : vector<4x32xf32>
    %612 = math.tanh %611 : vector<4x32xf32>
    %613 = arith.mulf %608, %612 : vector<4x32xf32>
    %cst_173 = arith.constant 0.000000e+00 : f32
    %614 = vector.broadcast %cst_173 : f32 to vector<4x32xf32>
    %615 = arith.maximumf %613, %614 : vector<4x32xf32>
    %cst_174 = arith.constant dense<0.000000e+00> : vector<4x2xf32>
    %616 = tpu.matmul %615, %8, %cst_174 {dimension_numbers = #tpu.dot_dimension_numbers<[1], [0], [0], [1], [0, 0, 1, 1], [], []>} : vector<4x32xf32>, vector<32x2xf32>, vector<4x2xf32> -> vector<4x2xf32>
    %617 = arith.addf %616, %11 : vector<4x2xf32>
    %618 = vector.extract_strided_slice %617 {offsets = [0, 0], sizes = [4, 1], strides = [1, 1]} : vector<4x2xf32> to vector<4x1xf32>
    %619 = vector.extract_strided_slice %617 {offsets = [0, 1], sizes = [4, 1], strides = [1, 1]} : vector<4x2xf32> to vector<4x1xf32>
    %cst_175 = arith.constant 0.000000e+00 : f32
    %620 = vector.broadcast %cst_175 : f32 to vector<4x1xf32>
    %621 = arith.maximumf %619, %620 : vector<4x1xf32>
    %622 = math.absf %619 : vector<4x1xf32>
    %cst_176 = arith.constant 0.000000e+00 : f32
    %623 = vector.broadcast %cst_176 : f32 to vector<4x1xf32>
    %624 = arith.subf %623, %622 : vector<4x1xf32>
    %625 = math.exp %624 : vector<4x1xf32>
    %626 = math.log1p %625 : vector<4x1xf32>
    %627 = arith.addf %621, %626 : vector<4x1xf32>
    %cst_177 = arith.constant 9.99999997E-7 : f32
    %628 = vector.broadcast %cst_177 : f32 to vector<4x1xf32>
    %629 = arith.addf %627, %628 : vector<4x1xf32>
    %c0_178 = arith.constant 0 : index
    %c7_179 = arith.constant 7 : index
    %630 = vector.load %arg9[%c0_178, %c7_179] : memref<4x12xf32, #tpu.memory_space<vmem>>, vector<4x1xf32>
    tpu.vector_store %arg9[%c0_178, %c7_179], %618 {strides = array<i32>} : memref<4x12xf32, #tpu.memory_space<vmem>>, vector<4x1xf32>,
    %c0_180 = arith.constant 0 : index
    %c7_181 = arith.constant 7 : index
    %631 = vector.load %arg10[%c0_180, %c7_181] : memref<4x12xf32, #tpu.memory_space<vmem>>, vector<4x1xf32>
    tpu.vector_store %arg10[%c0_180, %c7_181], %629 {strides = array<i32>} : memref<4x12xf32, #tpu.memory_space<vmem>>, vector<4x1xf32>,
    %c0_182 = arith.constant 0 : index
    %c7_183 = arith.constant 7 : index
    %632 = vector.load %arg1[%c0_182, %c7_183] : memref<4x8xf32, #tpu.memory_space<vmem>>, vector<4x1xf32>
    %c8 = arith.constant 8 : index
    %c0_184 = arith.constant 0 : index
    %c0_185 = arith.constant 0 : index
    %633 = vector.load %arg0[%c8, %c0_184, %c0_185] : memref<12x4x4xf32, #tpu.memory_space<vmem>>, vector<1x4x4xf32>
    %634 = vector.shape_cast %633 : vector<1x4x4xf32> to vector<4x4xf32>
    %635 = tpu.concatenate %634, %632, %585 in 1 : vector<4x4xf32>, vector<4x1xf32>, vector<4x32xf32> -> vector<4x37xf32>
    %cst_186 = arith.constant dense<0.000000e+00> : vector<4x128xf32>
    %636 = tpu.matmul %635, %0, %cst_186 {dimension_numbers = #tpu.dot_dimension_numbers<[1], [0], [0], [1], [0, 0, 1, 1], [], []>} : vector<4x37xf32>, vector<37x128xf32>, vector<4x128xf32> -> vector<4x128xf32>
    %637 = arith.addf %636, %3 : vector<4x128xf32>
    %638 = vector.extract_strided_slice %637 {offsets = [0, 0], sizes = [4, 32], strides = [1, 1]} : vector<4x128xf32> to vector<4x32xf32>
    %639 = arith.negf %638 : vector<4x32xf32>
    %640 = math.exp %639 : vector<4x32xf32>
    %cst_187 = arith.constant 1.000000e+00 : f32
    %641 = vector.broadcast %cst_187 : f32 to vector<4x32xf32>
    %642 = arith.addf %641, %640 : vector<4x32xf32>
    %643 = arith.divf %641, %642 : vector<4x32xf32>
    %644 = vector.extract_strided_slice %637 {offsets = [0, 32], sizes = [4, 32], strides = [1, 1]} : vector<4x128xf32> to vector<4x32xf32>
    %645 = arith.negf %644 : vector<4x32xf32>
    %646 = math.exp %645 : vector<4x32xf32>
    %cst_188 = arith.constant 1.000000e+00 : f32
    %647 = vector.broadcast %cst_188 : f32 to vector<4x32xf32>
    %648 = arith.addf %647, %646 : vector<4x32xf32>
    %649 = arith.divf %647, %648 : vector<4x32xf32>
    %650 = vector.extract_strided_slice %637 {offsets = [0, 64], sizes = [4, 32], strides = [1, 1]} : vector<4x128xf32> to vector<4x32xf32>
    %651 = math.tanh %650 : vector<4x32xf32>
    %652 = vector.extract_strided_slice %637 {offsets = [0, 96], sizes = [4, 32], strides = [1, 1]} : vector<4x128xf32> to vector<4x32xf32>
    %653 = arith.negf %652 : vector<4x32xf32>
    %654 = math.exp %653 : vector<4x32xf32>
    %cst_189 = arith.constant 1.000000e+00 : f32
    %655 = vector.broadcast %cst_189 : f32 to vector<4x32xf32>
    %656 = arith.addf %655, %654 : vector<4x32xf32>
    %657 = arith.divf %655, %656 : vector<4x32xf32>
    %658 = arith.mulf %649, %583 : vector<4x32xf32>
    %659 = arith.mulf %643, %651 : vector<4x32xf32>
    %660 = arith.addf %658, %659 : vector<4x32xf32>
    %661 = math.tanh %660 : vector<4x32xf32>
    %662 = arith.mulf %657, %661 : vector<4x32xf32>
    %663 = tpu.concatenate %662, %613 in 1 : vector<4x32xf32>, vector<4x32xf32> -> vector<4x64xf32>
    %cst_190 = arith.constant dense<0.000000e+00> : vector<4x128xf32>
    %664 = tpu.matmul %663, %4, %cst_190 {dimension_numbers = #tpu.dot_dimension_numbers<[1], [0], [0], [1], [0, 0, 1, 1], [], []>} : vector<4x64xf32>, vector<64x128xf32>, vector<4x128xf32> -> vector<4x128xf32>
    %665 = arith.addf %664, %7 : vector<4x128xf32>
    %666 = vector.extract_strided_slice %665 {offsets = [0, 0], sizes = [4, 32], strides = [1, 1]} : vector<4x128xf32> to vector<4x32xf32>
    %667 = arith.negf %666 : vector<4x32xf32>
    %668 = math.exp %667 : vector<4x32xf32>
    %cst_191 = arith.constant 1.000000e+00 : f32
    %669 = vector.broadcast %cst_191 : f32 to vector<4x32xf32>
    %670 = arith.addf %669, %668 : vector<4x32xf32>
    %671 = arith.divf %669, %670 : vector<4x32xf32>
    %672 = vector.extract_strided_slice %665 {offsets = [0, 32], sizes = [4, 32], strides = [1, 1]} : vector<4x128xf32> to vector<4x32xf32>
    %673 = arith.negf %672 : vector<4x32xf32>
    %674 = math.exp %673 : vector<4x32xf32>
    %cst_192 = arith.constant 1.000000e+00 : f32
    %675 = vector.broadcast %cst_192 : f32 to vector<4x32xf32>
    %676 = arith.addf %675, %674 : vector<4x32xf32>
    %677 = arith.divf %675, %676 : vector<4x32xf32>
    %678 = vector.extract_strided_slice %665 {offsets = [0, 64], sizes = [4, 32], strides = [1, 1]} : vector<4x128xf32> to vector<4x32xf32>
    %679 = math.tanh %678 : vector<4x32xf32>
    %680 = vector.extract_strided_slice %665 {offsets = [0, 96], sizes = [4, 32], strides = [1, 1]} : vector<4x128xf32> to vector<4x32xf32>
    %681 = arith.negf %680 : vector<4x32xf32>
    %682 = math.exp %681 : vector<4x32xf32>
    %cst_193 = arith.constant 1.000000e+00 : f32
    %683 = vector.broadcast %cst_193 : f32 to vector<4x32xf32>
    %684 = arith.addf %683, %682 : vector<4x32xf32>
    %685 = arith.divf %683, %684 : vector<4x32xf32>
    %686 = arith.mulf %677, %611 : vector<4x32xf32>
    %687 = arith.mulf %671, %679 : vector<4x32xf32>
    %688 = arith.addf %686, %687 : vector<4x32xf32>
    %689 = math.tanh %688 : vector<4x32xf32>
    %690 = arith.mulf %685, %689 : vector<4x32xf32>
    %cst_194 = arith.constant 0.000000e+00 : f32
    %691 = vector.broadcast %cst_194 : f32 to vector<4x32xf32>
    %692 = arith.maximumf %690, %691 : vector<4x32xf32>
    %cst_195 = arith.constant dense<0.000000e+00> : vector<4x2xf32>
    %693 = tpu.matmul %692, %8, %cst_195 {dimension_numbers = #tpu.dot_dimension_numbers<[1], [0], [0], [1], [0, 0, 1, 1], [], []>} : vector<4x32xf32>, vector<32x2xf32>, vector<4x2xf32> -> vector<4x2xf32>
    %694 = arith.addf %693, %11 : vector<4x2xf32>
    %695 = vector.extract_strided_slice %694 {offsets = [0, 0], sizes = [4, 1], strides = [1, 1]} : vector<4x2xf32> to vector<4x1xf32>
    %696 = vector.extract_strided_slice %694 {offsets = [0, 1], sizes = [4, 1], strides = [1, 1]} : vector<4x2xf32> to vector<4x1xf32>
    %cst_196 = arith.constant 0.000000e+00 : f32
    %697 = vector.broadcast %cst_196 : f32 to vector<4x1xf32>
    %698 = arith.maximumf %696, %697 : vector<4x1xf32>
    %699 = math.absf %696 : vector<4x1xf32>
    %cst_197 = arith.constant 0.000000e+00 : f32
    %700 = vector.broadcast %cst_197 : f32 to vector<4x1xf32>
    %701 = arith.subf %700, %699 : vector<4x1xf32>
    %702 = math.exp %701 : vector<4x1xf32>
    %703 = math.log1p %702 : vector<4x1xf32>
    %704 = arith.addf %698, %703 : vector<4x1xf32>
    %cst_198 = arith.constant 9.99999997E-7 : f32
    %705 = vector.broadcast %cst_198 : f32 to vector<4x1xf32>
    %706 = arith.addf %704, %705 : vector<4x1xf32>
    %c0_199 = arith.constant 0 : index
    %c8_200 = arith.constant 8 : index
    %707 = vector.load %arg9[%c0_199, %c8_200] : memref<4x12xf32, #tpu.memory_space<vmem>>, vector<4x1xf32>
    tpu.vector_store %arg9[%c0_199, %c8_200], %695 {strides = array<i32>} : memref<4x12xf32, #tpu.memory_space<vmem>>, vector<4x1xf32>,
    %c0_201 = arith.constant 0 : index
    %c8_202 = arith.constant 8 : index
    %708 = vector.load %arg10[%c0_201, %c8_202] : memref<4x12xf32, #tpu.memory_space<vmem>>, vector<4x1xf32>
    tpu.vector_store %arg10[%c0_201, %c8_202], %706 {strides = array<i32>} : memref<4x12xf32, #tpu.memory_space<vmem>>, vector<4x1xf32>,
    %c0_203 = arith.constant 0 : index
    %c0_204 = arith.constant 0 : index
    %709 = vector.load %arg2[%c0_203, %c0_204] : memref<4x4xf32, #tpu.memory_space<vmem>>, vector<4x1xf32>
    %710 = arith.mulf %706, %709 : vector<4x1xf32>
    %711 = arith.addf %695, %710 : vector<4x1xf32>
    %c0_205 = arith.constant 0 : index
    %c0_206 = arith.constant 0 : index
    %712 = vector.load %arg11[%c0_205, %c0_206] : memref<4x4xf32, #tpu.memory_space<vmem>>, vector<4x1xf32>
    tpu.vector_store %arg11[%c0_205, %c0_206], %711 {strides = array<i32>} : memref<4x4xf32, #tpu.memory_space<vmem>>, vector<4x1xf32>,
    %c9 = arith.constant 9 : index
    %c0_207 = arith.constant 0 : index
    %c0_208 = arith.constant 0 : index
    %713 = vector.load %arg0[%c9, %c0_207, %c0_208] : memref<12x4x4xf32, #tpu.memory_space<vmem>>, vector<1x4x4xf32>
    %714 = vector.shape_cast %713 : vector<1x4x4xf32> to vector<4x4xf32>
    %715 = tpu.concatenate %714, %711, %662 in 1 : vector<4x4xf32>, vector<4x1xf32>, vector<4x32xf32> -> vector<4x37xf32>
    %cst_209 = arith.constant dense<0.000000e+00> : vector<4x128xf32>
    %716 = tpu.matmul %715, %0, %cst_209 {dimension_numbers = #tpu.dot_dimension_numbers<[1], [0], [0], [1], [0, 0, 1, 1], [], []>} : vector<4x37xf32>, vector<37x128xf32>, vector<4x128xf32> -> vector<4x128xf32>
    %717 = arith.addf %716, %3 : vector<4x128xf32>
    %718 = vector.extract_strided_slice %717 {offsets = [0, 0], sizes = [4, 32], strides = [1, 1]} : vector<4x128xf32> to vector<4x32xf32>
    %719 = arith.negf %718 : vector<4x32xf32>
    %720 = math.exp %719 : vector<4x32xf32>
    %cst_210 = arith.constant 1.000000e+00 : f32
    %721 = vector.broadcast %cst_210 : f32 to vector<4x32xf32>
    %722 = arith.addf %721, %720 : vector<4x32xf32>
    %723 = arith.divf %721, %722 : vector<4x32xf32>
    %724 = vector.extract_strided_slice %717 {offsets = [0, 32], sizes = [4, 32], strides = [1, 1]} : vector<4x128xf32> to vector<4x32xf32>
    %725 = arith.negf %724 : vector<4x32xf32>
    %726 = math.exp %725 : vector<4x32xf32>
    %cst_211 = arith.constant 1.000000e+00 : f32
    %727 = vector.broadcast %cst_211 : f32 to vector<4x32xf32>
    %728 = arith.addf %727, %726 : vector<4x32xf32>
    %729 = arith.divf %727, %728 : vector<4x32xf32>
    %730 = vector.extract_strided_slice %717 {offsets = [0, 64], sizes = [4, 32], strides = [1, 1]} : vector<4x128xf32> to vector<4x32xf32>
    %731 = math.tanh %730 : vector<4x32xf32>
    %732 = vector.extract_strided_slice %717 {offsets = [0, 96], sizes = [4, 32], strides = [1, 1]} : vector<4x128xf32> to vector<4x32xf32>
    %733 = arith.negf %732 : vector<4x32xf32>
    %734 = math.exp %733 : vector<4x32xf32>
    %cst_212 = arith.constant 1.000000e+00 : f32
    %735 = vector.broadcast %cst_212 : f32 to vector<4x32xf32>
    %736 = arith.addf %735, %734 : vector<4x32xf32>
    %737 = arith.divf %735, %736 : vector<4x32xf32>
    %738 = arith.mulf %729, %660 : vector<4x32xf32>
    %739 = arith.mulf %723, %731 : vector<4x32xf32>
    %740 = arith.addf %738, %739 : vector<4x32xf32>
    %741 = math.tanh %740 : vector<4x32xf32>
    %742 = arith.mulf %737, %741 : vector<4x32xf32>
    %743 = tpu.concatenate %742, %690 in 1 : vector<4x32xf32>, vector<4x32xf32> -> vector<4x64xf32>
    %cst_213 = arith.constant dense<0.000000e+00> : vector<4x128xf32>
    %744 = tpu.matmul %743, %4, %cst_213 {dimension_numbers = #tpu.dot_dimension_numbers<[1], [0], [0], [1], [0, 0, 1, 1], [], []>} : vector<4x64xf32>, vector<64x128xf32>, vector<4x128xf32> -> vector<4x128xf32>
    %745 = arith.addf %744, %7 : vector<4x128xf32>
    %746 = vector.extract_strided_slice %745 {offsets = [0, 0], sizes = [4, 32], strides = [1, 1]} : vector<4x128xf32> to vector<4x32xf32>
    %747 = arith.negf %746 : vector<4x32xf32>
    %748 = math.exp %747 : vector<4x32xf32>
    %cst_214 = arith.constant 1.000000e+00 : f32
    %749 = vector.broadcast %cst_214 : f32 to vector<4x32xf32>
    %750 = arith.addf %749, %748 : vector<4x32xf32>
    %751 = arith.divf %749, %750 : vector<4x32xf32>
    %752 = vector.extract_strided_slice %745 {offsets = [0, 32], sizes = [4, 32], strides = [1, 1]} : vector<4x128xf32> to vector<4x32xf32>
    %753 = arith.negf %752 : vector<4x32xf32>
    %754 = math.exp %753 : vector<4x32xf32>
    %cst_215 = arith.constant 1.000000e+00 : f32
    %755 = vector.broadcast %cst_215 : f32 to vector<4x32xf32>
    %756 = arith.addf %755, %754 : vector<4x32xf32>
    %757 = arith.divf %755, %756 : vector<4x32xf32>
    %758 = vector.extract_strided_slice %745 {offsets = [0, 64], sizes = [4, 32], strides = [1, 1]} : vector<4x128xf32> to vector<4x32xf32>
    %759 = math.tanh %758 : vector<4x32xf32>
    %760 = vector.extract_strided_slice %745 {offsets = [0, 96], sizes = [4, 32], strides = [1, 1]} : vector<4x128xf32> to vector<4x32xf32>
    %761 = arith.negf %760 : vector<4x32xf32>
    %762 = math.exp %761 : vector<4x32xf32>
    %cst_216 = arith.constant 1.000000e+00 : f32
    %763 = vector.broadcast %cst_216 : f32 to vector<4x32xf32>
    %764 = arith.addf %763, %762 : vector<4x32xf32>
    %765 = arith.divf %763, %764 : vector<4x32xf32>
    %766 = arith.mulf %757, %688 : vector<4x32xf32>
    %767 = arith.mulf %751, %759 : vector<4x32xf32>
    %768 = arith.addf %766, %767 : vector<4x32xf32>
    %769 = math.tanh %768 : vector<4x32xf32>
    %770 = arith.mulf %765, %769 : vector<4x32xf32>
    %cst_217 = arith.constant 0.000000e+00 : f32
    %771 = vector.broadcast %cst_217 : f32 to vector<4x32xf32>
    %772 = arith.maximumf %770, %771 : vector<4x32xf32>
    %cst_218 = arith.constant dense<0.000000e+00> : vector<4x2xf32>
    %773 = tpu.matmul %772, %8, %cst_218 {dimension_numbers = #tpu.dot_dimension_numbers<[1], [0], [0], [1], [0, 0, 1, 1], [], []>} : vector<4x32xf32>, vector<32x2xf32>, vector<4x2xf32> -> vector<4x2xf32>
    %774 = arith.addf %773, %11 : vector<4x2xf32>
    %775 = vector.extract_strided_slice %774 {offsets = [0, 0], sizes = [4, 1], strides = [1, 1]} : vector<4x2xf32> to vector<4x1xf32>
    %776 = vector.extract_strided_slice %774 {offsets = [0, 1], sizes = [4, 1], strides = [1, 1]} : vector<4x2xf32> to vector<4x1xf32>
    %cst_219 = arith.constant 0.000000e+00 : f32
    %777 = vector.broadcast %cst_219 : f32 to vector<4x1xf32>
    %778 = arith.maximumf %776, %777 : vector<4x1xf32>
    %779 = math.absf %776 : vector<4x1xf32>
    %cst_220 = arith.constant 0.000000e+00 : f32
    %780 = vector.broadcast %cst_220 : f32 to vector<4x1xf32>
    %781 = arith.subf %780, %779 : vector<4x1xf32>
    %782 = math.exp %781 : vector<4x1xf32>
    %783 = math.log1p %782 : vector<4x1xf32>
    %784 = arith.addf %778, %783 : vector<4x1xf32>
    %cst_221 = arith.constant 9.99999997E-7 : f32
    %785 = vector.broadcast %cst_221 : f32 to vector<4x1xf32>
    %786 = arith.addf %784, %785 : vector<4x1xf32>
    %c0_222 = arith.constant 0 : index
    %c9_223 = arith.constant 9 : index
    %787 = vector.load %arg9[%c0_222, %c9_223] : memref<4x12xf32, #tpu.memory_space<vmem>>, vector<4x1xf32>
    tpu.vector_store %arg9[%c0_222, %c9_223], %775 {strides = array<i32>} : memref<4x12xf32, #tpu.memory_space<vmem>>, vector<4x1xf32>,
    %c0_224 = arith.constant 0 : index
    %c9_225 = arith.constant 9 : index
    %788 = vector.load %arg10[%c0_224, %c9_225] : memref<4x12xf32, #tpu.memory_space<vmem>>, vector<4x1xf32>
    tpu.vector_store %arg10[%c0_224, %c9_225], %786 {strides = array<i32>} : memref<4x12xf32, #tpu.memory_space<vmem>>, vector<4x1xf32>,
    %c0_226 = arith.constant 0 : index
    %c1_227 = arith.constant 1 : index
    %789 = vector.load %arg2[%c0_226, %c1_227] : memref<4x4xf32, #tpu.memory_space<vmem>>, vector<4x1xf32>
    %790 = arith.mulf %786, %789 : vector<4x1xf32>
    %791 = arith.addf %775, %790 : vector<4x1xf32>
    %c0_228 = arith.constant 0 : index
    %c1_229 = arith.constant 1 : index
    %792 = vector.load %arg11[%c0_228, %c1_229] : memref<4x4xf32, #tpu.memory_space<vmem>>, vector<4x1xf32>
    tpu.vector_store %arg11[%c0_228, %c1_229], %791 {strides = array<i32>} : memref<4x4xf32, #tpu.memory_space<vmem>>, vector<4x1xf32>,
    %c10 = arith.constant 10 : index
    %c0_230 = arith.constant 0 : index
    %c0_231 = arith.constant 0 : index
    %793 = vector.load %arg0[%c10, %c0_230, %c0_231] : memref<12x4x4xf32, #tpu.memory_space<vmem>>, vector<1x4x4xf32>
    %794 = vector.shape_cast %793 : vector<1x4x4xf32> to vector<4x4xf32>
    %795 = tpu.concatenate %794, %791, %742 in 1 : vector<4x4xf32>, vector<4x1xf32>, vector<4x32xf32> -> vector<4x37xf32>
    %cst_232 = arith.constant dense<0.000000e+00> : vector<4x128xf32>
    %796 = tpu.matmul %795, %0, %cst_232 {dimension_numbers = #tpu.dot_dimension_numbers<[1], [0], [0], [1], [0, 0, 1, 1], [], []>} : vector<4x37xf32>, vector<37x128xf32>, vector<4x128xf32> -> vector<4x128xf32>
    %797 = arith.addf %796, %3 : vector<4x128xf32>
    %798 = vector.extract_strided_slice %797 {offsets = [0, 0], sizes = [4, 32], strides = [1, 1]} : vector<4x128xf32> to vector<4x32xf32>
    %799 = arith.negf %798 : vector<4x32xf32>
    %800 = math.exp %799 : vector<4x32xf32>
    %cst_233 = arith.constant 1.000000e+00 : f32
    %801 = vector.broadcast %cst_233 : f32 to vector<4x32xf32>
    %802 = arith.addf %801, %800 : vector<4x32xf32>
    %803 = arith.divf %801, %802 : vector<4x32xf32>
    %804 = vector.extract_strided_slice %797 {offsets = [0, 32], sizes = [4, 32], strides = [1, 1]} : vector<4x128xf32> to vector<4x32xf32>
    %805 = arith.negf %804 : vector<4x32xf32>
    %806 = math.exp %805 : vector<4x32xf32>
    %cst_234 = arith.constant 1.000000e+00 : f32
    %807 = vector.broadcast %cst_234 : f32 to vector<4x32xf32>
    %808 = arith.addf %807, %806 : vector<4x32xf32>
    %809 = arith.divf %807, %808 : vector<4x32xf32>
    %810 = vector.extract_strided_slice %797 {offsets = [0, 64], sizes = [4, 32], strides = [1, 1]} : vector<4x128xf32> to vector<4x32xf32>
    %811 = math.tanh %810 : vector<4x32xf32>
    %812 = vector.extract_strided_slice %797 {offsets = [0, 96], sizes = [4, 32], strides = [1, 1]} : vector<4x128xf32> to vector<4x32xf32>
    %813 = arith.negf %812 : vector<4x32xf32>
    %814 = math.exp %813 : vector<4x32xf32>
    %cst_235 = arith.constant 1.000000e+00 : f32
    %815 = vector.broadcast %cst_235 : f32 to vector<4x32xf32>
    %816 = arith.addf %815, %814 : vector<4x32xf32>
    %817 = arith.divf %815, %816 : vector<4x32xf32>
    %818 = arith.mulf %809, %740 : vector<4x32xf32>
    %819 = arith.mulf %803, %811 : vector<4x32xf32>
    %820 = arith.addf %818, %819 : vector<4x32xf32>
    %821 = math.tanh %820 : vector<4x32xf32>
    %822 = arith.mulf %817, %821 : vector<4x32xf32>
    %823 = tpu.concatenate %822, %770 in 1 : vector<4x32xf32>, vector<4x32xf32> -> vector<4x64xf32>
    %cst_236 = arith.constant dense<0.000000e+00> : vector<4x128xf32>
    %824 = tpu.matmul %823, %4, %cst_236 {dimension_numbers = #tpu.dot_dimension_numbers<[1], [0], [0], [1], [0, 0, 1, 1], [], []>} : vector<4x64xf32>, vector<64x128xf32>, vector<4x128xf32> -> vector<4x128xf32>
    %825 = arith.addf %824, %7 : vector<4x128xf32>
    %826 = vector.extract_strided_slice %825 {offsets = [0, 0], sizes = [4, 32], strides = [1, 1]} : vector<4x128xf32> to vector<4x32xf32>
    %827 = arith.negf %826 : vector<4x32xf32>
    %828 = math.exp %827 : vector<4x32xf32>
    %cst_237 = arith.constant 1.000000e+00 : f32
    %829 = vector.broadcast %cst_237 : f32 to vector<4x32xf32>
    %830 = arith.addf %829, %828 : vector<4x32xf32>
    %831 = arith.divf %829, %830 : vector<4x32xf32>
    %832 = vector.extract_strided_slice %825 {offsets = [0, 32], sizes = [4, 32], strides = [1, 1]} : vector<4x128xf32> to vector<4x32xf32>
    %833 = arith.negf %832 : vector<4x32xf32>
    %834 = math.exp %833 : vector<4x32xf32>
    %cst_238 = arith.constant 1.000000e+00 : f32
    %835 = vector.broadcast %cst_238 : f32 to vector<4x32xf32>
    %836 = arith.addf %835, %834 : vector<4x32xf32>
    %837 = arith.divf %835, %836 : vector<4x32xf32>
    %838 = vector.extract_strided_slice %825 {offsets = [0, 64], sizes = [4, 32], strides = [1, 1]} : vector<4x128xf32> to vector<4x32xf32>
    %839 = math.tanh %838 : vector<4x32xf32>
    %840 = vector.extract_strided_slice %825 {offsets = [0, 96], sizes = [4, 32], strides = [1, 1]} : vector<4x128xf32> to vector<4x32xf32>
    %841 = arith.negf %840 : vector<4x32xf32>
    %842 = math.exp %841 : vector<4x32xf32>
    %cst_239 = arith.constant 1.000000e+00 : f32
    %843 = vector.broadcast %cst_239 : f32 to vector<4x32xf32>
    %844 = arith.addf %843, %842 : vector<4x32xf32>
    %845 = arith.divf %843, %844 : vector<4x32xf32>
    %846 = arith.mulf %837, %768 : vector<4x32xf32>
    %847 = arith.mulf %831, %839 : vector<4x32xf32>
    %848 = arith.addf %846, %847 : vector<4x32xf32>
    %849 = math.tanh %848 : vector<4x32xf32>
    %850 = arith.mulf %845, %849 : vector<4x32xf32>
    %cst_240 = arith.constant 0.000000e+00 : f32
    %851 = vector.broadcast %cst_240 : f32 to vector<4x32xf32>
    %852 = arith.maximumf %850, %851 : vector<4x32xf32>
    %cst_241 = arith.constant dense<0.000000e+00> : vector<4x2xf32>
    %853 = tpu.matmul %852, %8, %cst_241 {dimension_numbers = #tpu.dot_dimension_numbers<[1], [0], [0], [1], [0, 0, 1, 1], [], []>} : vector<4x32xf32>, vector<32x2xf32>, vector<4x2xf32> -> vector<4x2xf32>
    %854 = arith.addf %853, %11 : vector<4x2xf32>
    %855 = vector.extract_strided_slice %854 {offsets = [0, 0], sizes = [4, 1], strides = [1, 1]} : vector<4x2xf32> to vector<4x1xf32>
    %856 = vector.extract_strided_slice %854 {offsets = [0, 1], sizes = [4, 1], strides = [1, 1]} : vector<4x2xf32> to vector<4x1xf32>
    %cst_242 = arith.constant 0.000000e+00 : f32
    %857 = vector.broadcast %cst_242 : f32 to vector<4x1xf32>
    %858 = arith.maximumf %856, %857 : vector<4x1xf32>
    %859 = math.absf %856 : vector<4x1xf32>
    %cst_243 = arith.constant 0.000000e+00 : f32
    %860 = vector.broadcast %cst_243 : f32 to vector<4x1xf32>
    %861 = arith.subf %860, %859 : vector<4x1xf32>
    %862 = math.exp %861 : vector<4x1xf32>
    %863 = math.log1p %862 : vector<4x1xf32>
    %864 = arith.addf %858, %863 : vector<4x1xf32>
    %cst_244 = arith.constant 9.99999997E-7 : f32
    %865 = vector.broadcast %cst_244 : f32 to vector<4x1xf32>
    %866 = arith.addf %864, %865 : vector<4x1xf32>
    %c0_245 = arith.constant 0 : index
    %c10_246 = arith.constant 10 : index
    %867 = vector.load %arg9[%c0_245, %c10_246] : memref<4x12xf32, #tpu.memory_space<vmem>>, vector<4x1xf32>
    tpu.vector_store %arg9[%c0_245, %c10_246], %855 {strides = array<i32>} : memref<4x12xf32, #tpu.memory_space<vmem>>, vector<4x1xf32>,
    %c0_247 = arith.constant 0 : index
    %c10_248 = arith.constant 10 : index
    %868 = vector.load %arg10[%c0_247, %c10_248] : memref<4x12xf32, #tpu.memory_space<vmem>>, vector<4x1xf32>
    tpu.vector_store %arg10[%c0_247, %c10_248], %866 {strides = array<i32>} : memref<4x12xf32, #tpu.memory_space<vmem>>, vector<4x1xf32>,
    %c0_249 = arith.constant 0 : index
    %c2_250 = arith.constant 2 : index
    %869 = vector.load %arg2[%c0_249, %c2_250] : memref<4x4xf32, #tpu.memory_space<vmem>>, vector<4x1xf32>
    %870 = arith.mulf %866, %869 : vector<4x1xf32>
    %871 = arith.addf %855, %870 : vector<4x1xf32>
    %c0_251 = arith.constant 0 : index
    %c2_252 = arith.constant 2 : index
    %872 = vector.load %arg11[%c0_251, %c2_252] : memref<4x4xf32, #tpu.memory_space<vmem>>, vector<4x1xf32>
    tpu.vector_store %arg11[%c0_251, %c2_252], %871 {strides = array<i32>} : memref<4x4xf32, #tpu.memory_space<vmem>>, vector<4x1xf32>,
    %c11 = arith.constant 11 : index
    %c0_253 = arith.constant 0 : index
    %c0_254 = arith.constant 0 : index
    %873 = vector.load %arg0[%c11, %c0_253, %c0_254] : memref<12x4x4xf32, #tpu.memory_space<vmem>>, vector<1x4x4xf32>
    %874 = vector.shape_cast %873 : vector<1x4x4xf32> to vector<4x4xf32>
    %875 = tpu.concatenate %874, %871, %822 in 1 : vector<4x4xf32>, vector<4x1xf32>, vector<4x32xf32> -> vector<4x37xf32>
    %cst_255 = arith.constant dense<0.000000e+00> : vector<4x128xf32>
    %876 = tpu.matmul %875, %0, %cst_255 {dimension_numbers = #tpu.dot_dimension_numbers<[1], [0], [0], [1], [0, 0, 1, 1], [], []>} : vector<4x37xf32>, vector<37x128xf32>, vector<4x128xf32> -> vector<4x128xf32>
    %877 = arith.addf %876, %3 : vector<4x128xf32>
    %878 = vector.extract_strided_slice %877 {offsets = [0, 0], sizes = [4, 32], strides = [1, 1]} : vector<4x128xf32> to vector<4x32xf32>
    %879 = arith.negf %878 : vector<4x32xf32>
    %880 = math.exp %879 : vector<4x32xf32>
    %cst_256 = arith.constant 1.000000e+00 : f32
    %881 = vector.broadcast %cst_256 : f32 to vector<4x32xf32>
    %882 = arith.addf %881, %880 : vector<4x32xf32>
    %883 = arith.divf %881, %882 : vector<4x32xf32>
    %884 = vector.extract_strided_slice %877 {offsets = [0, 32], sizes = [4, 32], strides = [1, 1]} : vector<4x128xf32> to vector<4x32xf32>
    %885 = arith.negf %884 : vector<4x32xf32>
    %886 = math.exp %885 : vector<4x32xf32>
    %cst_257 = arith.constant 1.000000e+00 : f32
    %887 = vector.broadcast %cst_257 : f32 to vector<4x32xf32>
    %888 = arith.addf %887, %886 : vector<4x32xf32>
    %889 = arith.divf %887, %888 : vector<4x32xf32>
    %890 = vector.extract_strided_slice %877 {offsets = [0, 64], sizes = [4, 32], strides = [1, 1]} : vector<4x128xf32> to vector<4x32xf32>
    %891 = math.tanh %890 : vector<4x32xf32>
    %892 = vector.extract_strided_slice %877 {offsets = [0, 96], sizes = [4, 32], strides = [1, 1]} : vector<4x128xf32> to vector<4x32xf32>
    %893 = arith.negf %892 : vector<4x32xf32>
    %894 = math.exp %893 : vector<4x32xf32>
    %cst_258 = arith.constant 1.000000e+00 : f32
    %895 = vector.broadcast %cst_258 : f32 to vector<4x32xf32>
    %896 = arith.addf %895, %894 : vector<4x32xf32>
    %897 = arith.divf %895, %896 : vector<4x32xf32>
    %898 = arith.mulf %889, %820 : vector<4x32xf32>
    %899 = arith.mulf %883, %891 : vector<4x32xf32>
    %900 = arith.addf %898, %899 : vector<4x32xf32>
    %901 = math.tanh %900 : vector<4x32xf32>
    %902 = arith.mulf %897, %901 : vector<4x32xf32>
    %903 = tpu.concatenate %902, %850 in 1 : vector<4x32xf32>, vector<4x32xf32> -> vector<4x64xf32>
    %cst_259 = arith.constant dense<0.000000e+00> : vector<4x128xf32>
    %904 = tpu.matmul %903, %4, %cst_259 {dimension_numbers = #tpu.dot_dimension_numbers<[1], [0], [0], [1], [0, 0, 1, 1], [], []>} : vector<4x64xf32>, vector<64x128xf32>, vector<4x128xf32> -> vector<4x128xf32>
    %905 = arith.addf %904, %7 : vector<4x128xf32>
    %906 = vector.extract_strided_slice %905 {offsets = [0, 0], sizes = [4, 32], strides = [1, 1]} : vector<4x128xf32> to vector<4x32xf32>
    %907 = arith.negf %906 : vector<4x32xf32>
    %908 = math.exp %907 : vector<4x32xf32>
    %cst_260 = arith.constant 1.000000e+00 : f32
    %909 = vector.broadcast %cst_260 : f32 to vector<4x32xf32>
    %910 = arith.addf %909, %908 : vector<4x32xf32>
    %911 = arith.divf %909, %910 : vector<4x32xf32>
    %912 = vector.extract_strided_slice %905 {offsets = [0, 32], sizes = [4, 32], strides = [1, 1]} : vector<4x128xf32> to vector<4x32xf32>
    %913 = arith.negf %912 : vector<4x32xf32>
    %914 = math.exp %913 : vector<4x32xf32>
    %cst_261 = arith.constant 1.000000e+00 : f32
    %915 = vector.broadcast %cst_261 : f32 to vector<4x32xf32>
    %916 = arith.addf %915, %914 : vector<4x32xf32>
    %917 = arith.divf %915, %916 : vector<4x32xf32>
    %918 = vector.extract_strided_slice %905 {offsets = [0, 64], sizes = [4, 32], strides = [1, 1]} : vector<4x128xf32> to vector<4x32xf32>
    %919 = math.tanh %918 : vector<4x32xf32>
    %920 = vector.extract_strided_slice %905 {offsets = [0, 96], sizes = [4, 32], strides = [1, 1]} : vector<4x128xf32> to vector<4x32xf32>
    %921 = arith.negf %920 : vector<4x32xf32>
    %922 = math.exp %921 : vector<4x32xf32>
    %cst_262 = arith.constant 1.000000e+00 : f32
    %923 = vector.broadcast %cst_262 : f32 to vector<4x32xf32>
    %924 = arith.addf %923, %922 : vector<4x32xf32>
    %925 = arith.divf %923, %924 : vector<4x32xf32>
    %926 = arith.mulf %917, %848 : vector<4x32xf32>
    %927 = arith.mulf %911, %919 : vector<4x32xf32>
    %928 = arith.addf %926, %927 : vector<4x32xf32>
    %929 = math.tanh %928 : vector<4x32xf32>
    %930 = arith.mulf %925, %929 : vector<4x32xf32>
    %cst_263 = arith.constant 0.000000e+00 : f32
    %931 = vector.broadcast %cst_263 : f32 to vector<4x32xf32>
    %932 = arith.maximumf %930, %931 : vector<4x32xf32>
    %cst_264 = arith.constant dense<0.000000e+00> : vector<4x2xf32>
    %933 = tpu.matmul %932, %8, %cst_264 {dimension_numbers = #tpu.dot_dimension_numbers<[1], [0], [0], [1], [0, 0, 1, 1], [], []>} : vector<4x32xf32>, vector<32x2xf32>, vector<4x2xf32> -> vector<4x2xf32>
    %934 = arith.addf %933, %11 : vector<4x2xf32>
    %935 = vector.extract_strided_slice %934 {offsets = [0, 0], sizes = [4, 1], strides = [1, 1]} : vector<4x2xf32> to vector<4x1xf32>
    %936 = vector.extract_strided_slice %934 {offsets = [0, 1], sizes = [4, 1], strides = [1, 1]} : vector<4x2xf32> to vector<4x1xf32>
    %cst_265 = arith.constant 0.000000e+00 : f32
    %937 = vector.broadcast %cst_265 : f32 to vector<4x1xf32>
    %938 = arith.maximumf %936, %937 : vector<4x1xf32>
    %939 = math.absf %936 : vector<4x1xf32>
    %cst_266 = arith.constant 0.000000e+00 : f32
    %940 = vector.broadcast %cst_266 : f32 to vector<4x1xf32>
    %941 = arith.subf %940, %939 : vector<4x1xf32>
    %942 = math.exp %941 : vector<4x1xf32>
    %943 = math.log1p %942 : vector<4x1xf32>
    %944 = arith.addf %938, %943 : vector<4x1xf32>
    %cst_267 = arith.constant 9.99999997E-7 : f32
    %945 = vector.broadcast %cst_267 : f32 to vector<4x1xf32>
    %946 = arith.addf %944, %945 : vector<4x1xf32>
    %c0_268 = arith.constant 0 : index
    %c11_269 = arith.constant 11 : index
    %947 = vector.load %arg9[%c0_268, %c11_269] : memref<4x12xf32, #tpu.memory_space<vmem>>, vector<4x1xf32>
    tpu.vector_store %arg9[%c0_268, %c11_269], %935 {strides = array<i32>} : memref<4x12xf32, #tpu.memory_space<vmem>>, vector<4x1xf32>,
    %c0_270 = arith.constant 0 : index
    %c11_271 = arith.constant 11 : index
    %948 = vector.load %arg10[%c0_270, %c11_271] : memref<4x12xf32, #tpu.memory_space<vmem>>, vector<4x1xf32>
    tpu.vector_store %arg10[%c0_270, %c11_271], %946 {strides = array<i32>} : memref<4x12xf32, #tpu.memory_space<vmem>>, vector<4x1xf32>,
    %c0_272 = arith.constant 0 : index
    %c3_273 = arith.constant 3 : index
    %949 = vector.load %arg2[%c0_272, %c3_273] : memref<4x4xf32, #tpu.memory_space<vmem>>, vector<4x1xf32>
    %950 = arith.mulf %946, %949 : vector<4x1xf32>
    %951 = arith.addf %935, %950 : vector<4x1xf32>
    %c0_274 = arith.constant 0 : index
    %c3_275 = arith.constant 3 : index
    %952 = vector.load %arg11[%c0_274, %c3_275] : memref<4x4xf32, #tpu.memory_space<vmem>>, vector<4x1xf32>
    tpu.vector_store %arg11[%c0_274, %c3_275], %951 {strides = array<i32>} : memref<4x4xf32, #tpu.memory_space<vmem>>, vector<4x1xf32>,
    return
  }
}

</mosaic_0001>

<llo_original>
// kernel: tpu_custom_call.1
$region0: #{tpu_custom_call.1}
  #allocation0 [shape = 'u32[]', space=smem, size = 0x4, offset = 0x4, fixed_abs, tag = 'smem constant byte address 0x4 - core index']
  #allocation1 [shape = 'u32[144,128]{1,0:T(1,128)}', space=vmem, size = 0x12000, scoped, tag = 'internal scratch']
  %s0 = inlined_call_operand.vmem [shape: f32[12,4,4], index: 0, kind: input, shape index: {}]
  %s1 = inlined_call_operand.vmem [shape: f32[4,8], index: 1, kind: input, shape index: {}]
  %s2 = inlined_call_operand.vmem [shape: f32[4,4], index: 2, kind: input, shape index: {}]
  %s3 = inlined_call_operand.vmem [shape: f32[37,128], index: 3, kind: input, shape index: {}]
  %s4 = inlined_call_operand.vmem [shape: f32[1,128], index: 4, kind: input, shape index: {}]
  %s5 = inlined_call_operand.vmem [shape: f32[64,128], index: 5, kind: input, shape index: {}]
  %s6 = inlined_call_operand.vmem [shape: f32[1,128], index: 6, kind: input, shape index: {}]
  %s7 = inlined_call_operand.vmem [shape: f32[32,2], index: 7, kind: input, shape index: {}]
  %s8 = inlined_call_operand.vmem [shape: f32[1,2], index: 8, kind: input, shape index: {}]
  %s9 = inlined_call_operand.hbm [shape: f32[4,12], index: 9, kind: output, shape index: {0}]
  %s10 = inlined_call_operand.hbm [shape: f32[4,12], index: 10, kind: output, shape index: {1}]
  %s11 = inlined_call_operand.hbm [shape: f32[4,4], index: 11, kind: output, shape index: {2}]
  %12 = xla_tuple %s9, %s10, %s11
  %s13 = sld [smem:[#allocation0]]
  $region62: #{tpu_custom_call.1} parent=0
    _
  %s15 = ssub.s32 1, %s13
  %s16 = scalar_select 0, %s15, %s13
  $region1: #{tpu_custom_call.1} parent=0
    #allocation2 [shape = 'u8[2048]{0}', space=vmem, size = 0x800, scoped, tag = 'output window, operand 0, single buffered']
    #allocation3 [shape = 's32[1]{0}', space=sflag, size = 0x4, scoped, tag = 'scoped memory for tpu_custom_call.1']
    #allocation4 [shape = 'u8[2048]{0}', space=vmem, size = 0x800, scoped, tag = 'output window, operand 1, single buffered']
    #allocation5 [shape = 's32[1]{0}', space=sflag, size = 0x4, scoped, tag = 'scoped memory for tpu_custom_call.1']
    #allocation6 [shape = 'u8[2048]{0}', space=vmem, size = 0x800, scoped, tag = 'output window, operand 2, single buffered']
    %17 = vsyncpa [#allocation3], 0
    %18 = vsyncpa [#allocation5], 0
    // Predicated region
    $region2: #{tpu_custom_call.1} parent=1 // pred_check
      _
    $region3: #{tpu_custom_call.1} parent=1 // pred_check_branch
      %20 = sbr.rel (0) target = $region5
    $region4: #{tpu_custom_call.1} parent=1 // pred_region
      _
    $region5: #{tpu_custom_call.1} parent=1 // pred_fallthru
      _
    // Predicated region
    $region6: #{tpu_custom_call.1} parent=1 // pred_check
      _
    $region7: #{tpu_custom_call.1} parent=1 // pred_check_branch
      %22 = sbr.rel (0) target = $region9
    $region8: #{tpu_custom_call.1} parent=1 // pred_region
      _
    $region9: #{tpu_custom_call.1} parent=1 // pred_fallthru
      _
    // Predicated region
    $region10: #{tpu_custom_call.1} parent=1 // pred_check
      _
    $region11: #{tpu_custom_call.1} parent=1 // pred_check_branch
      %24 = sbr.rel (0) target = $region13
    $region12: #{tpu_custom_call.1} parent=1 // pred_region
      _
    $region13: #{tpu_custom_call.1} parent=1 // pred_fallthru
      _
    // Predicated region
    $region14: #{tpu_custom_call.1} parent=1 // pred_check
      _
    $region15: #{tpu_custom_call.1} parent=1 // pred_check_branch
      %26 = sbr.rel (0) target = $region17
    $region16: #{tpu_custom_call.1} parent=1 // pred_region
      _
    $region17: #{tpu_custom_call.1} parent=1 // pred_fallthru
      _
    // Predicated region
    $region18: #{tpu_custom_call.1} parent=1 // pred_check
      _
    $region19: #{tpu_custom_call.1} parent=1 // pred_check_branch
      %28 = sbr.rel (0) target = $region21
    $region20: #{tpu_custom_call.1} parent=1 // pred_region
      _
    $region21: #{tpu_custom_call.1} parent=1 // pred_fallthru
      _
    // Predicated region
    $region22: #{tpu_custom_call.1} parent=1 // pred_check
      _
    $region23: #{tpu_custom_call.1} parent=1 // pred_check_branch
      %30 = sbr.rel (0) target = $region25
    $region24: #{tpu_custom_call.1} parent=1 // pred_region
      _
    $region25: #{tpu_custom_call.1} parent=1 // pred_fallthru
      _
    // Predicated region
    $region26: #{tpu_custom_call.1} parent=1 // pred_check
      _
    $region27: #{tpu_custom_call.1} parent=1 // pred_check_branch
      %32 = sbr.rel (0) target = $region29
    $region28: #{tpu_custom_call.1} parent=1 // pred_region
      _
    $region29: #{tpu_custom_call.1} parent=1 // pred_fallthru
      _
    // Predicated region
    $region30: #{tpu_custom_call.1} parent=1 // pred_check
      _
    $region31: #{tpu_custom_call.1} parent=1 // pred_check_branch
      %34 = sbr.rel (0) target = $region33
    $region32: #{tpu_custom_call.1} parent=1 // pred_region
      _
    $region33: #{tpu_custom_call.1} parent=1 // pred_fallthru
      _
    // Predicated region
    $region34: #{tpu_custom_call.1} parent=1 // pred_check
      _
    $region35: #{tpu_custom_call.1} parent=1 // pred_check_branch
      %36 = sbr.rel (0) target = $region37
    $region36: #{tpu_custom_call.1} parent=1 // pred_region
      _
    $region37: #{tpu_custom_call.1} parent=1 // pred_fallthru
      _
    %v37 = vld [vmem:[%s3] sm:$0xff]
    %v38 = vld [vmem:[%s3 + $0x8] sm:$0xff]
    %v39 = vld [vmem:[%s3 + $0x10] sm:$0xff]
    %v40 = vld [vmem:[%s3 + $0x18] sm:$0xff]
    %v41 = vld [vmem:[%s3 + $0x20] sm:$0x1f]
    %v42 = vld [vmem:[%s4] sm:$0x1]
    %v44 = vlaneseq
    %v45 = vshrl.u32 %v44, 7
    %v46 = vsub.s32 0, %v45
    %v47 = vrot.slane %v42, %v46
    %v49 = vld [vmem:[%s5] sm:$0xff]
    %v50 = vld [vmem:[%s5 + $0x8] sm:$0xff]
    %v51 = vld [vmem:[%s5 + $0x10] sm:$0xff]
    %v52 = vld [vmem:[%s5 + $0x18] sm:$0xff]
    %v53 = vld [vmem:[%s5 + $0x20] sm:$0xff]
    %v54 = vld [vmem:[%s5 + $0x28] sm:$0xff]
    %v55 = vld [vmem:[%s5 + $0x30] sm:$0xff]
    %v56 = vld [vmem:[%s5 + $0x38] sm:$0xff]
    %v57 = vld [vmem:[%s6] sm:$0x1]
    %v59 = vlaneseq
    %v60 = vshrl.u32 %v59, 7
    %v61 = vsub.s32 0, %v60
    %v62 = vrot.slane %v57, %v61
    %v64 = vld [vmem:[%s7] sm:$0xff]
    %v65 = vld [vmem:[%s7 + $0x8] sm:$0xff]
    %v66 = vld [vmem:[%s7 + $0x10] sm:$0xff]
    %v67 = vld [vmem:[%s7 + $0x18] sm:$0xff]
    %v68 = vld [vmem:[%s8] sm:$0x1]
    %v70 = vlaneseq
    %v71 = vshrl.u32 %v70, 7
    %v72 = vsub.s32 0, %v71
    %v73 = vrot.slane %v68, %v72
    %v75 = vld [vmem:[%s0] sm:$0xf]
    %vm76 = vcmask 31744
    %v77 = vsel %vm76, %v75, 0.0
    %vm78 = vcmask 39936
    %v79 = vsel %vm78, %v77, 0.0
    %vm80 = vcmask 302080
    %v82 = vsel %vm80, %v79, 0
    %vm84 = vcmask 1044480
    %v86 = vsel %vm84, %v41, 0
    %88 = vmatprep.subr.mxu0 0.0
    %89 = vmatpush1.msra.mxu0 %v37
    %90 = vmatprep.subr.mxu0 0.0
    %91 = vmatpush1.msra.mxu0 %v38
    %92 = vmatprep.subr.mxu0 0.0
    %93 = vmatpush1.msra.mxu0 %v39
    %94 = vmatprep.subr.mxu0 0.0
    %95 = vmatpush1.msra.mxu0 %v40
    %96 = vmatprep.subr.mxu0 0.0
    %97 = vmatpush1.msra.mxu0 %v86
    %98 = vmatprep.subr.mxu0 0.0
    %99 = vmatpush1.msra.mxu0 0.0
    %100 = vmatprep.subr.mxu0 0.0
    %101 = vmatpush1.msra.mxu0 0.0
    %102 = vmatprep.subr.mxu0 0.0
    %103 = vmatpush1.msra.mxu0 0.0
    %104 = vmatprep.subr.mxu0 0.0
    %105 = vmatpush1.msra.mxu0 0.0
    %106 = vmatprep.subr.mxu0 0.0
    %107 = vmatpush1.msra.mxu0 0.0
    %108 = vmatprep.subr.mxu0 0.0
    %109 = vmatpush1.msra.mxu0 0.0
    %110 = vmatprep.subr.mxu0 0.0
    %111 = vmatpush1.msra.mxu0 0.0
    %112 = vmatprep.subr.mxu0 0.0
    %113 = vmatpush1.msra.mxu0 0.0
    %114 = vmatprep.subr.mxu0 0.0
    %115 = vmatpush1.msra.mxu0 0.0
    %116 = vmatprep.subr.mxu0 0.0
    %117 = vmatpush1.msra.mxu0 0.0
    %118 = vmatprep.subr.mxu0 0.0
    %119 = vmatpush1.msra.mxu0 0.0
    %120 = vmatprep.subr.mxu0 0.0
    %121 = vmatpush1.msra.mxu0 0.0
    %122 = vmatprep.subr.mxu0 0.0
    %123 = vmatpush1.msra.mxu0 0.0
    %124 = vmatprep.subr.mxu0 0.0
    %125 = vmatpush1.msra.mxu0 0.0
    %126 = vmatprep.subr.mxu0 0.0
    %127 = vmatpush1.msra.mxu0 0.0
    %128 = vmatprep.subr.mxu0 0.0
    %129 = vmatpush1.msra.mxu0 0.0
    %130 = vmatprep.subr.mxu0 0.0
    %131 = vmatpush1.msra.mxu0 0.0
    %132 = vmatprep.subr.mxu0 0.0
    %133 = vmatpush1.msra.mxu0 0.0
    %134 = vmatprep.subr.mxu0 0.0
    %135 = vmatpush1.msra.mxu0 0.0
    %136 = vmatprep.subr.mxu0 0.0
    %137 = vmatpush1.msra.mxu0 0.0
    %138 = vmatprep.subr.mxu0 0.0
    %139 = vmatpush1.msra.mxu0 0.0
    %140 = vmatprep.subr.mxu0 0.0
    %141 = vmatpush1.msra.mxu0 0.0
    %142 = vmatprep.subr.mxu0 0.0
    %143 = vmatpush1.msra.mxu0 0.0
    %144 = vmatprep.subr.mxu0 0.0
    %145 = vmatpush1.msra.mxu0 0.0
    %146 = vmatprep.subr.mxu0 0.0
    %147 = vmatpush1.msra.mxu0 0.0
    %148 = vmatprep.subr.mxu0 0.0
    %149 = vmatpush1.msra.mxu0 0.0
    %150 = vmatprep.subr.mxu0 0.0
    %151 = vmatpush1.msra.mxu0 0.0
    %152 = vmatprep.mubr.f32.mxu0 0.0
    %153 = vmatmul.mubr.f32.gmra.mrb[0].mxu0 %v82
    %v154 = vpop.f32.mrb[0].mxu0
    %v155 = vadd.f32 %v47, %v154
    %v156 = vpop.f32.mrb[0].mxu0
    %157 = vdwg.mxu0
    %v158 = vxor.u32 %v155, 2147483648
    %v159 = vmul.f32 %v158, 1.442695
    %v160 = vpow.pop %v159
    %v161 = vadd.f32 %v160, 1.0
    %v162 = vrcp.pop %v161
    %v163 = vmul.f32 1.0, %v162
    %v164 = vtanh.pop %v155
    %v165 = vmul.f32 %v163, 0.0
    %167 = vrot.lane.b32.xlu0 %v164, 64
    %v168 = vpop.permute.xlu0 %167
    %v170 = vmul.f32 %v163, %v168
    %172 = vrot.lane.b32.xlu0 %v170, 32
    %v173 = vpop.permute.xlu0 %172
    %v175 = vadd.f32 %v165, %v173
    %v176 = vtanh.pop %v175
    %178 = vrot.lane.b32.xlu0 %v176, 64
    %v179 = vpop.permute.xlu0 %178
    %v181 = vmul.f32 %v163, %v179
    %183 = vrot.lane.b32.xlu0 %v181, 32
    %v184 = vpop.permute.xlu0 %183
    %vm186 = vcmask 261120
    %v187 = vsel %vm186, %v184, 0.0
    %vm188 = vcmask 523264
    %v190 = vsel %vm188, %v187, 0
    %192 = vmatprep.subr.mxu0 0.0
    %193 = vmatpush1.msra.mxu0 %v49
    %194 = vmatprep.subr.mxu0 0.0
    %195 = vmatpush1.msra.mxu0 %v50
    %196 = vmatprep.subr.mxu0 0.0
    %197 = vmatpush1.msra.mxu0 %v51
    %198 = vmatprep.subr.mxu0 0.0
    %199 = vmatpush1.msra.mxu0 %v52
    %200 = vmatprep.subr.mxu0 0.0
    %201 = vmatpush1.msra.mxu0 %v53
    %202 = vmatprep.subr.mxu0 0.0
    %203 = vmatpush1.msra.mxu0 %v54
    %204 = vmatprep.subr.mxu0 0.0
    %205 = vmatpush1.msra.mxu0 %v55
    %206 = vmatprep.subr.mxu0 0.0
    %207 = vmatpush1.msra.mxu0 %v56
    %208 = vmatprep.subr.mxu0 0.0
    %209 = vmatpush1.msra.mxu0 0.0
    %210 = vmatprep.subr.mxu0 0.0
    %211 = vmatpush1.msra.mxu0 0.0
    %212 = vmatprep.subr.mxu0 0.0
    %213 = vmatpush1.msra.mxu0 0.0
    %214 = vmatprep.subr.mxu0 0.0
    %215 = vmatpush1.msra.mxu0 0.0
    %216 = vmatprep.subr.mxu0 0.0
    %217 = vmatpush1.msra.mxu0 0.0
    %218 = vmatprep.subr.mxu0 0.0
    %219 = vmatpush1.msra.mxu0 0.0
    %220 = vmatprep.subr.mxu0 0.0
    %221 = vmatpush1.msra.mxu0 0.0
    %222 = vmatprep.subr.mxu0 0.0
    %223 = vmatpush1.msra.mxu0 0.0
    %224 = vmatprep.subr.mxu0 0.0
    %225 = vmatpush1.msra.mxu0 0.0
    %226 = vmatprep.subr.mxu0 0.0
    %227 = vmatpush1.msra.mxu0 0.0
    %228 = vmatprep.subr.mxu0 0.0
    %229 = vmatpush1.msra.mxu0 0.0
    %230 = vmatprep.subr.mxu0 0.0
    %231 = vmatpush1.msra.mxu0 0.0
    %232 = vmatprep.subr.mxu0 0.0
    %233 = vmatpush1.msra.mxu0 0.0
    %234 = vmatprep.subr.mxu0 0.0
    %235 = vmatpush1.msra.mxu0 0.0
    %236 = vmatprep.subr.mxu0 0.0
    %237 = vmatpush1.msra.mxu0 0.0
    %238 = vmatprep.subr.mxu0 0.0
    %239 = vmatpush1.msra.mxu0 0.0
    %240 = vmatprep.subr.mxu0 0.0
    %241 = vmatpush1.msra.mxu0 0.0
    %242 = vmatprep.subr.mxu0 0.0
    %243 = vmatpush1.msra.mxu0 0.0
    %244 = vmatprep.subr.mxu0 0.0
    %245 = vmatpush1.msra.mxu0 0.0
    %246 = vmatprep.subr.mxu0 0.0
    %247 = vmatpush1.msra.mxu0 0.0
    %248 = vmatprep.subr.mxu0 0.0
    %249 = vmatpush1.msra.mxu0 0.0
    %250 = vmatprep.subr.mxu0 0.0
    %251 = vmatpush1.msra.mxu0 0.0
    %252 = vmatprep.subr.mxu0 0.0
    %253 = vmatpush1.msra.mxu0 0.0
    %254 = vmatprep.subr.mxu0 0.0
    %255 = vmatpush1.msra.mxu0 0.0
    %256 = vmatprep.mubr.f32.mxu0 0.0
    %257 = vmatmul.mubr.f32.gmra.mrb[0].mxu0 %v190
    %v258 = vpop.f32.mrb[0].mxu0
    %v259 = vadd.f32 %v62, %v258
    %v260 = vpop.f32.mrb[0].mxu0
    %261 = vdwg.mxu0
    %v262 = vxor.u32 %v259, 2147483648
    %v263 = vmul.f32 %v262, 1.442695
    %v264 = vpow.pop %v263
    %v265 = vadd.f32 %v264, 1.0
    %v266 = vrcp.pop %v265
    %v267 = vmul.f32 1.0, %v266
    %v268 = vtanh.pop %v259
    %v269 = vmul.f32 %v267, 0.0
    %271 = vrot.lane.b32.xlu0 %v268, 64
    %v272 = vpop.permute.xlu0 %271
    %v274 = vmul.f32 %v267, %v272
    %276 = vrot.lane.b32.xlu0 %v274, 32
    %v277 = vpop.permute.xlu0 %276
    %v279 = vadd.f32 %v269, %v277
    %v280 = vtanh.pop %v279
    %282 = vrot.lane.b32.xlu0 %v280, 64
    %v283 = vpop.permute.xlu0 %282
    %v285 = vmul.f32 %v267, %v283
    %v286 = vmax.f32 %v285, 0.0
    %288 = vrot.lane.b32.xlu0 %v286, 32
    %v289 = vpop.permute.xlu0 %288
    %v290 = vsel %vm186, %v289, 0
    %292 = vmatprep.subr.mxu0 0.0
    %293 = vmatpush1.msra.mxu0 %v64
    %294 = vmatprep.subr.mxu0 0.0
    %295 = vmatpush1.msra.mxu0 %v65
    %296 = vmatprep.subr.mxu0 0.0
    %297 = vmatpush1.msra.mxu0 %v66
    %298 = vmatprep.subr.mxu0 0.0
    %299 = vmatpush1.msra.mxu0 %v67
    %300 = vmatprep.subr.mxu0 0.0
    %301 = vmatpush1.msra.mxu0 0.0
    %302 = vmatprep.subr.mxu0 0.0
    %303 = vmatpush1.msra.mxu0 0.0
    %304 = vmatprep.subr.mxu0 0.0
    %305 = vmatpush1.msra.mxu0 0.0
    %306 = vmatprep.subr.mxu0 0.0
    %307 = vmatpush1.msra.mxu0 0.0
    %308 = vmatprep.subr.mxu0 0.0
    %309 = vmatpush1.msra.mxu0 0.0
    %310 = vmatprep.subr.mxu0 0.0
    %311 = vmatpush1.msra.mxu0 0.0
    %312 = vmatprep.subr.mxu0 0.0
    %313 = vmatpush1.msra.mxu0 0.0
    %314 = vmatprep.subr.mxu0 0.0
    %315 = vmatpush1.msra.mxu0 0.0
    %316 = vmatprep.subr.mxu0 0.0
    %317 = vmatpush1.msra.mxu0 0.0
    %318 = vmatprep.subr.mxu0 0.0
    %319 = vmatpush1.msra.mxu0 0.0
    %320 = vmatprep.subr.mxu0 0.0
    %321 = vmatpush1.msra.mxu0 0.0
    %322 = vmatprep.subr.mxu0 0.0
    %323 = vmatpush1.msra.mxu0 0.0
    %324 = vmatprep.subr.mxu0 0.0
    %325 = vmatpush1.msra.mxu0 0.0
    %326 = vmatprep.subr.mxu0 0.0
    %327 = vmatpush1.msra.mxu0 0.0
    %328 = vmatprep.subr.mxu0 0.0
    %329 = vmatpush1.msra.mxu0 0.0
    %330 = vmatprep.subr.mxu0 0.0
    %331 = vmatpush1.msra.mxu0 0.0
    %332 = vmatprep.subr.mxu0 0.0
    %333 = vmatpush1.msra.mxu0 0.0
    %334 = vmatprep.subr.mxu0 0.0
    %335 = vmatpush1.msra.mxu0 0.0
    %336 = vmatprep.subr.mxu0 0.0
    %337 = vmatpush1.msra.mxu0 0.0
    %338 = vmatprep.subr.mxu0 0.0
    %339 = vmatpush1.msra.mxu0 0.0
    %340 = vmatprep.subr.mxu0 0.0
    %341 = vmatpush1.msra.mxu0 0.0
    %342 = vmatprep.subr.mxu0 0.0
    %343 = vmatpush1.msra.mxu0 0.0
    %344 = vmatprep.subr.mxu0 0.0
    %345 = vmatpush1.msra.mxu0 0.0
    %346 = vmatprep.subr.mxu0 0.0
    %347 = vmatpush1.msra.mxu0 0.0
    %348 = vmatprep.subr.mxu0 0.0
    %349 = vmatpush1.msra.mxu0 0.0
    %350 = vmatprep.subr.mxu0 0.0
    %351 = vmatpush1.msra.mxu0 0.0
    %352 = vmatprep.subr.mxu0 0.0
    %353 = vmatpush1.msra.mxu0 0.0
    %354 = vmatprep.subr.mxu0 0.0
    %355 = vmatpush1.msra.mxu0 0.0
    %356 = vmatprep.mubr.f32.mxu0 0.0
    %357 = vmatmul.mubr.f32.gmra.mrb[0].mxu0 %v290
    %v358 = vpop.f32.mrb[0].mxu0
    %v359 = vadd.f32 %v73, %v358
    %v360 = vpop.f32.mrb[0].mxu0
    %361 = vdwg.mxu0
    %v362 = vmax.f32 %v359, 0.0
    %v363 = vand.u32 2147483647, %v359
    %v364 = vsub.f32 0.0, %v363
    %v365 = vmul.f32 %v364, 1.442695
    %v366 = vpow.pop %v365
    %v367 = vadd.f32 %v366, 1.0
    %v368 = vlog2.pop %v367
    %v369 = vmul.f32 %v368, 0.6931472
    %v370 = vmul.f32 -0.5, %v366
    %v371 = vadd.f32 %v370, 1.0
    %v372 = vmul.f32 %v371, %v366
    %v373 = vand.u32 2147483647, %v366
    %vm374 = vcmp.lt.f32.partialorder %v373, 0.0004427343
    %v375 = vsel %vm374, %v372, %v369
    %v376 = vadd.f32 %v362, %v375
    %v377 = vadd.f32 %v376, 1e-06
    %vm378 = vcmask 3072
    %379 = vst.msk [vmem:[#allocation2] sm:$0xf] %vm378, %v359
    %381 = vrot.lane.b32.xlu0 %v377, 127
    %v382 = vpop.permute.xlu0 %381
    %384 = vst.msk [vmem:[#allocation4] sm:$0xf] %vm378, %v382
    %v385 = vld [vmem:[%s1] sm:$0xf]
    %s386 = scalar_lea.vmem %s0, 4
    %v387 = vld [vmem:[%s386] sm:$0xf]
    %389 = vrot.lane.b32.xlu0 %v385, 4
    %v390 = vpop.permute.xlu0 %389
    %392 = vrot.lane.b32.xlu0 %v181, 37
    %v393 = vpop.permute.xlu0 %392
    %v395 = vsel %vm76, %v387, %v390
    %v396 = vsel %vm78, %v395, %v393
    %v398 = vsel %vm80, %v396, 0
    %400 = vmatprep.subr.mxu0 0.0
    %401 = vmatpush1.msra.mxu0 %v37
    %402 = vmatprep.subr.mxu0 0.0
    %403 = vmatpush1.msra.mxu0 %v38
    %404 = vmatprep.subr.mxu0 0.0
    %405 = vmatpush1.msra.mxu0 %v39
    %406 = vmatprep.subr.mxu0 0.0
    %407 = vmatpush1.msra.mxu0 %v40
    %408 = vmatprep.subr.mxu0 0.0
    %409 = vmatpush1.msra.mxu0 %v86
    %410 = vmatprep.subr.mxu0 0.0
    %411 = vmatpush1.msra.mxu0 0.0
    %412 = vmatprep.subr.mxu0 0.0
    %413 = vmatpush1.msra.mxu0 0.0
    %414 = vmatprep.subr.mxu0 0.0
    %415 = vmatpush1.msra.mxu0 0.0
    %416 = vmatprep.subr.mxu0 0.0
    %417 = vmatpush1.msra.mxu0 0.0
    %418 = vmatprep.subr.mxu0 0.0
    %419 = vmatpush1.msra.mxu0 0.0
    %420 = vmatprep.subr.mxu0 0.0
    %421 = vmatpush1.msra.mxu0 0.0
    %422 = vmatprep.subr.mxu0 0.0
    %423 = vmatpush1.msra.mxu0 0.0
    %424 = vmatprep.subr.mxu0 0.0
    %425 = vmatpush1.msra.mxu0 0.0
    %426 = vmatprep.subr.mxu0 0.0
    %427 = vmatpush1.msra.mxu0 0.0
    %428 = vmatprep.subr.mxu0 0.0
    %429 = vmatpush1.msra.mxu0 0.0
    %430 = vmatprep.subr.mxu0 0.0
    %431 = vmatpush1.msra.mxu0 0.0
    %432 = vmatprep.subr.mxu0 0.0
    %433 = vmatpush1.msra.mxu0 0.0
    %434 = vmatprep.subr.mxu0 0.0
    %435 = vmatpush1.msra.mxu0 0.0
    %436 = vmatprep.subr.mxu0 0.0
    %437 = vmatpush1.msra.mxu0 0.0
    %438 = vmatprep.subr.mxu0 0.0
    %439 = vmatpush1.msra.mxu0 0.0
    %440 = vmatprep.subr.mxu0 0.0
    %441 = vmatpush1.msra.mxu0 0.0
    %442 = vmatprep.subr.mxu0 0.0
    %443 = vmatpush1.msra.mxu0 0.0
    %444 = vmatprep.subr.mxu0 0.0
    %445 = vmatpush1.msra.mxu0 0.0
    %446 = vmatprep.subr.mxu0 0.0
    %447 = vmatpush1.msra.mxu0 0.0
    %448 = vmatprep.subr.mxu0 0.0
    %449 = vmatpush1.msra.mxu0 0.0
    %450 = vmatprep.subr.mxu0 0.0
    %451 = vmatpush1.msra.mxu0 0.0
    %452 = vmatprep.subr.mxu0 0.0
    %453 = vmatpush1.msra.mxu0 0.0
    %454 = vmatprep.subr.mxu0 0.0
    %455 = vmatpush1.msra.mxu0 0.0
    %456 = vmatprep.subr.mxu0 0.0
    %457 = vmatpush1.msra.mxu0 0.0
    %458 = vmatprep.subr.mxu0 0.0
    %459 = vmatpush1.msra.mxu0 0.0
    %460 = vmatprep.subr.mxu0 0.0
    %461 = vmatpush1.msra.mxu0 0.0
    %462 = vmatprep.subr.mxu0 0.0
    %463 = vmatpush1.msra.mxu0 0.0
    %464 = vmatprep.mubr.f32.mxu0 0.0
    %465 = vmatmul.mubr.f32.gmra.mrb[0].mxu0 %v398
    %v466 = vpop.f32.mrb[0].mxu0
    %v467 = vadd.f32 %v47, %v466
    %v468 = vpop.f32.mrb[0].mxu0
    %469 = vdwg.mxu0
    %v470 = vxor.u32 %v467, 2147483648
    %v471 = vmul.f32 %v470, 1.442695
    %v472 = vpow.pop %v471
    %v473 = vadd.f32 %v472, 1.0
    %v474 = vrcp.pop %v473
    %v475 = vmul.f32 1.0, %v474
    %v476 = vtanh.pop %v467
    %v477 = vmul.f32 %v475, %v175
    %479 = vrot.lane.b32.xlu0 %v476, 64
    %v480 = vpop.permute.xlu0 %479
    %v482 = vmul.f32 %v475, %v480
    %484 = vrot.lane.b32.xlu0 %v482, 32
    %v485 = vpop.permute.xlu0 %484
    %v487 = vadd.f32 %v477, %v485
    %v488 = vtanh.pop %v487
    %490 = vrot.lane.b32.xlu0 %v488, 64
    %v491 = vpop.permute.xlu0 %490
    %v493 = vmul.f32 %v475, %v491
    %495 = vrot.lane.b32.xlu0 %v493, 32
    %v496 = vpop.permute.xlu0 %495
    %499 = vrot.lane.b32.xlu0 %v285, 64
    %v500 = vpop.permute.xlu0 %499
    %v502 = vsel %vm186, %v496, %v500
    %v504 = vsel %vm188, %v502, 0
    %506 = vmatprep.subr.mxu0 0.0
    %507 = vmatpush1.msra.mxu0 %v49
    %508 = vmatprep.subr.mxu0 0.0
    %509 = vmatpush1.msra.mxu0 %v50
    %510 = vmatprep.subr.mxu0 0.0
    %511 = vmatpush1.msra.mxu0 %v51
    %512 = vmatprep.subr.mxu0 0.0
    %513 = vmatpush1.msra.mxu0 %v52
    %514 = vmatprep.subr.mxu0 0.0
    %515 = vmatpush1.msra.mxu0 %v53
    %516 = vmatprep.subr.mxu0 0.0
    %517 = vmatpush1.msra.mxu0 %v54
    %518 = vmatprep.subr.mxu0 0.0
    %519 = vmatpush1.msra.mxu0 %v55
    %520 = vmatprep.subr.mxu0 0.0
    %521 = vmatpush1.msra.mxu0 %v56
    %522 = vmatprep.subr.mxu0 0.0
    %523 = vmatpush1.msra.mxu0 0.0
    %524 = vmatprep.subr.mxu0 0.0
    %525 = vmatpush1.msra.mxu0 0.0
    %526 = vmatprep.subr.mxu0 0.0
    %527 = vmatpush1.msra.mxu0 0.0
    %528 = vmatprep.subr.mxu0 0.0
    %529 = vmatpush1.msra.mxu0 0.0
    %530 = vmatprep.subr.mxu0 0.0
    %531 = vmatpush1.msra.mxu0 0.0
    %532 = vmatprep.subr.mxu0 0.0
    %533 = vmatpush1.msra.mxu0 0.0
    %534 = vmatprep.subr.mxu0 0.0
    %535 = vmatpush1.msra.mxu0 0.0
    %536 = vmatprep.subr.mxu0 0.0
    %537 = vmatpush1.msra.mxu0 0.0
    %538 = vmatprep.subr.mxu0 0.0
    %539 = vmatpush1.msra.mxu0 0.0
    %540 = vmatprep.subr.mxu0 0.0
    %541 = vmatpush1.msra.mxu0 0.0
    %542 = vmatprep.subr.mxu0 0.0
    %543 = vmatpush1.msra.mxu0 0.0
    %544 = vmatprep.subr.mxu0 0.0
    %545 = vmatpush1.msra.mxu0 0.0
    %546 = vmatprep.subr.mxu0 0.0
    %547 = vmatpush1.msra.mxu0 0.0
    %548 = vmatprep.subr.mxu0 0.0
    %549 = vmatpush1.msra.mxu0 0.0
    %550 = vmatprep.subr.mxu0 0.0
    %551 = vmatpush1.msra.mxu0 0.0
    %552 = vmatprep.subr.mxu0 0.0
    %553 = vmatpush1.msra.mxu0 0.0
    %554 = vmatprep.subr.mxu0 0.0
    %555 = vmatpush1.msra.mxu0 0.0
    %556 = vmatprep.subr.mxu0 0.0
    %557 = vmatpush1.msra.mxu0 0.0
    %558 = vmatprep.subr.mxu0 0.0
    %559 = vmatpush1.msra.mxu0 0.0
    %560 = vmatprep.subr.mxu0 0.0
    %561 = vmatpush1.msra.mxu0 0.0
    %562 = vmatprep.subr.mxu0 0.0
    %563 = vmatpush1.msra.mxu0 0.0
    %564 = vmatprep.subr.mxu0 0.0
    %565 = vmatpush1.msra.mxu0 0.0
    %566 = vmatprep.subr.mxu0 0.0
    %567 = vmatpush1.msra.mxu0 0.0
    %568 = vmatprep.subr.mxu0 0.0
    %569 = vmatpush1.msra.mxu0 0.0
    %570 = vmatprep.mubr.f32.mxu0 0.0
    %571 = vmatmul.mubr.f32.gmra.mrb[0].mxu0 %v504
    %v572 = vpop.f32.mrb[0].mxu0
    %v573 = vadd.f32 %v62, %v572
    %v574 = vpop.f32.mrb[0].mxu0
    %575 = vdwg.mxu0
    %v576 = vxor.u32 %v573, 2147483648
    %v577 = vmul.f32 %v576, 1.442695
    %v578 = vpow.pop %v577
    %v579 = vadd.f32 %v578, 1.0
    %v580 = vrcp.pop %v579
    %v581 = vmul.f32 1.0, %v580
    %v582 = vtanh.pop %v573
    %v583 = vmul.f32 %v581, %v279
    %585 = vrot.lane.b32.xlu0 %v582, 64
    %v586 = vpop.permute.xlu0 %585
    %v588 = vmul.f32 %v581, %v586
    %590 = vrot.lane.b32.xlu0 %v588, 32
    %v591 = vpop.permute.xlu0 %590
    %v593 = vadd.f32 %v583, %v591
    %v594 = vtanh.pop %v593
    %596 = vrot.lane.b32.xlu0 %v594, 64
    %v597 = vpop.permute.xlu0 %596
    %v599 = vmul.f32 %v581, %v597
    %v600 = vmax.f32 %v599, 0.0
    %602 = vrot.lane.b32.xlu0 %v600, 32
    %v603 = vpop.permute.xlu0 %602
    %v604 = vsel %vm186, %v603, 0
    %606 = vmatprep.subr.mxu0 0.0
    %607 = vmatpush1.msra.mxu0 %v64
    %608 = vmatprep.subr.mxu0 0.0
    %609 = vmatpush1.msra.mxu0 %v65
    %610 = vmatprep.subr.mxu0 0.0
    %611 = vmatpush1.msra.mxu0 %v66
    %612 = vmatprep.subr.mxu0 0.0
    %613 = vmatpush1.msra.mxu0 %v67
    %614 = vmatprep.subr.mxu0 0.0
    %615 = vmatpush1.msra.mxu0 0.0
    %616 = vmatprep.subr.mxu0 0.0
    %617 = vmatpush1.msra.mxu0 0.0
    %618 = vmatprep.subr.mxu0 0.0
    %619 = vmatpush1.msra.mxu0 0.0
    %620 = vmatprep.subr.mxu0 0.0
    %621 = vmatpush1.msra.mxu0 0.0
    %622 = vmatprep.subr.mxu0 0.0
    %623 = vmatpush1.msra.mxu0 0.0
    %624 = vmatprep.subr.mxu0 0.0
    %625 = vmatpush1.msra.mxu0 0.0
    %626 = vmatprep.subr.mxu0 0.0
    %627 = vmatpush1.msra.mxu0 0.0
    %628 = vmatprep.subr.mxu0 0.0
    %629 = vmatpush1.msra.mxu0 0.0
    %630 = vmatprep.subr.mxu0 0.0
    %631 = vmatpush1.msra.mxu0 0.0
    %632 = vmatprep.subr.mxu0 0.0
    %633 = vmatpush1.msra.mxu0 0.0
    %634 = vmatprep.subr.mxu0 0.0
    %635 = vmatpush1.msra.mxu0 0.0
    %636 = vmatprep.subr.mxu0 0.0
    %637 = vmatpush1.msra.mxu0 0.0
    %638 = vmatprep.subr.mxu0 0.0
    %639 = vmatpush1.msra.mxu0 0.0
    %640 = vmatprep.subr.mxu0 0.0
    %641 = vmatpush1.msra.mxu0 0.0
    %642 = vmatprep.subr.mxu0 0.0
    %643 = vmatpush1.msra.mxu0 0.0
    %644 = vmatprep.subr.mxu0 0.0
    %645 = vmatpush1.msra.mxu0 0.0
    %646 = vmatprep.subr.mxu0 0.0
    %647 = vmatpush1.msra.mxu0 0.0
    %648 = vmatprep.subr.mxu0 0.0
    %649 = vmatpush1.msra.mxu0 0.0
    %650 = vmatprep.subr.mxu0 0.0
    %651 = vmatpush1.msra.mxu0 0.0
    %652 = vmatprep.subr.mxu0 0.0
    %653 = vmatpush1.msra.mxu0 0.0
    %654 = vmatprep.subr.mxu0 0.0
    %655 = vmatpush1.msra.mxu0 0.0
    %656 = vmatprep.subr.mxu0 0.0
    %657 = vmatpush1.msra.mxu0 0.0
    %658 = vmatprep.subr.mxu0 0.0
    %659 = vmatpush1.msra.mxu0 0.0
    %660 = vmatprep.subr.mxu0 0.0
    %661 = vmatpush1.msra.mxu0 0.0
    %662 = vmatprep.subr.mxu0 0.0
    %663 = vmatpush1.msra.mxu0 0.0
    %664 = vmatprep.subr.mxu0 0.0
    %665 = vmatpush1.msra.mxu0 0.0
    %666 = vmatprep.subr.mxu0 0.0
    %667 = vmatpush1.msra.mxu0 0.0
    %668 = vmatprep.subr.mxu0 0.0
    %669 = vmatpush1.msra.mxu0 0.0
    %670 = vmatprep.mubr.f32.mxu0 0.0
    %671 = vmatmul.mubr.f32.gmra.mrb[0].mxu0 %v604
    %v672 = vpop.f32.mrb[0].mxu0
    %v673 = vadd.f32 %v73, %v672
    %v674 = vpop.f32.mrb[0].mxu0
    %675 = vdwg.mxu0
    %v676 = vmax.f32 %v673, 0.0
    %v677 = vand.u32 2147483647, %v673
    %v678 = vsub.f32 0.0, %v677
    %v679 = vmul.f32 %v678, 1.442695
    %v680 = vpow.pop %v679
    %v681 = vadd.f32 %v680, 1.0
    %v682 = vlog2.pop %v681
    %v683 = vmul.f32 %v682, 0.6931472
    %v684 = vmul.f32 -0.5, %v680
    %v685 = vadd.f32 %v684, 1.0
    %v686 = vmul.f32 %v685, %v680
    %v687 = vand.u32 2147483647, %v680
    %vm688 = vcmp.lt.f32.partialorder %v687, 0.0004427343
    %v689 = vsel %vm688, %v686, %v683
    %v690 = vadd.f32 %v676, %v689
    %v691 = vadd.f32 %v690, 1e-06
    %693 = vrot.lane.b32.xlu0 %v673, 1
    %v694 = vpop.permute.xlu0 %693
    %vm696 = vcmask 11272
    %697 = vst.msk [vmem:[#allocation2] sm:$0xf] %vm696, %v694
    %698 = vst.msk [vmem:[#allocation4] sm:$0xf] %vm696, %v691
    %v699 = vld [vmem:[%s1] sm:$0xf]
    %s700 = scalar_lea.vmem %s0, 8
    %v701 = vld [vmem:[%s700] sm:$0xf]
    %703 = vrot.lane.b32.xlu0 %v699, 3
    %v704 = vpop.permute.xlu0 %703
    %706 = vrot.lane.b32.xlu0 %v493, 37
    %v707 = vpop.permute.xlu0 %706
    %v709 = vsel %vm76, %v701, %v704
    %v710 = vsel %vm78, %v709, %v707
    %v712 = vsel %vm80, %v710, 0
    %714 = vmatprep.subr.mxu0 0.0
    %715 = vmatpush1.msra.mxu0 %v37
    %716 = vmatprep.subr.mxu0 0.0
    %717 = vmatpush1.msra.mxu0 %v38
    %718 = vmatprep.subr.mxu0 0.0
    %719 = vmatpush1.msra.mxu0 %v39
    %720 = vmatprep.subr.mxu0 0.0
    %721 = vmatpush1.msra.mxu0 %v40
    %722 = vmatprep.subr.mxu0 0.0
    %723 = vmatpush1.msra.mxu0 %v86
    %724 = vmatprep.subr.mxu0 0.0
    %725 = vmatpush1.msra.mxu0 0.0
    %726 = vmatprep.subr.mxu0 0.0
    %727 = vmatpush1.msra.mxu0 0.0
    %728 = vmatprep.subr.mxu0 0.0
    %729 = vmatpush1.msra.mxu0 0.0
    %730 = vmatprep.subr.mxu0 0.0
    %731 = vmatpush1.msra.mxu0 0.0
    %732 = vmatprep.subr.mxu0 0.0
    %733 = vmatpush1.msra.mxu0 0.0
    %734 = vmatprep.subr.mxu0 0.0
    %735 = vmatpush1.msra.mxu0 0.0
    %736 = vmatprep.subr.mxu0 0.0
    %737 = vmatpush1.msra.mxu0 0.0
    %738 = vmatprep.subr.mxu0 0.0
    %739 = vmatpush1.msra.mxu0 0.0
    %740 = vmatprep.subr.mxu0 0.0
    %741 = vmatpush1.msra.mxu0 0.0
    %742 = vmatprep.subr.mxu0 0.0
    %743 = vmatpush1.msra.mxu0 0.0
    %744 = vmatprep.subr.mxu0 0.0
    %745 = vmatpush1.msra.mxu0 0.0
    %746 = vmatprep.subr.mxu0 0.0
    %747 = vmatpush1.msra.mxu0 0.0
    %748 = vmatprep.subr.mxu0 0.0
    %749 = vmatpush1.msra.mxu0 0.0
    %750 = vmatprep.subr.mxu0 0.0
    %751 = vmatpush1.msra.mxu0 0.0
    %752 = vmatprep.subr.mxu0 0.0
    %753 = vmatpush1.msra.mxu0 0.0
    %754 = vmatprep.subr.mxu0 0.0
    %755 = vmatpush1.msra.mxu0 0.0
    %756 = vmatprep.subr.mxu0 0.0
    %757 = vmatpush1.msra.mxu0 0.0
    %758 = vmatprep.subr.mxu0 0.0
    %759 = vmatpush1.msra.mxu0 0.0
    %760 = vmatprep.subr.mxu0 0.0
    %761 = vmatpush1.msra.mxu0 0.0
    %762 = vmatprep.subr.mxu0 0.0
    %763 = vmatpush1.msra.mxu0 0.0
    %764 = vmatprep.subr.mxu0 0.0
    %765 = vmatpush1.msra.mxu0 0.0
    %766 = vmatprep.subr.mxu0 0.0
    %767 = vmatpush1.msra.mxu0 0.0
    %768 = vmatprep.subr.mxu0 0.0
    %769 = vmatpush1.msra.mxu0 0.0
    %770 = vmatprep.subr.mxu0 0.0
    %771 = vmatpush1.msra.mxu0 0.0
    %772 = vmatprep.subr.mxu0 0.0
    %773 = vmatpush1.msra.mxu0 0.0
    %774 = vmatprep.subr.mxu0 0.0
    %775 = vmatpush1.msra.mxu0 0.0
    %776 = vmatprep.subr.mxu0 0.0
    %777 = vmatpush1.msra.mxu0 0.0
    %778 = vmatprep.mubr.f32.mxu0 0.0
    %779 = vmatmul.mubr.f32.gmra.mrb[0].mxu0 %v712
    %v780 = vpop.f32.mrb[0].mxu0
    %v781 = vadd.f32 %v47, %v780
    %v782 = vpop.f32.mrb[0].mxu0
    %783 = vdwg.mxu0
    %v784 = vxor.u32 %v781, 2147483648
    %v785 = vmul.f32 %v784, 1.442695
    %v786 = vpow.pop %v785
    %v787 = vadd.f32 %v786, 1.0
    %v788 = vrcp.pop %v787
    %v789 = vmul.f32 1.0, %v788
    %v790 = vtanh.pop %v781
    %v791 = vmul.f32 %v789, %v487
    %793 = vrot.lane.b32.xlu0 %v790, 64
    %v794 = vpop.permute.xlu0 %793
    %v796 = vmul.f32 %v789, %v794
    %798 = vrot.lane.b32.xlu0 %v796, 32
    %v799 = vpop.permute.xlu0 %798
    %v801 = vadd.f32 %v791, %v799
    %v802 = vtanh.pop %v801
    %804 = vrot.lane.b32.xlu0 %v802, 64
    %v805 = vpop.permute.xlu0 %804
    %v807 = vmul.f32 %v789, %v805
    %809 = vrot.lane.b32.xlu0 %v807, 32
    %v810 = vpop.permute.xlu0 %809
    %813 = vrot.lane.b32.xlu0 %v599, 64
    %v814 = vpop.permute.xlu0 %813
    %v816 = vsel %vm186, %v810, %v814
    %v818 = vsel %vm188, %v816, 0
    %820 = vmatprep.subr.mxu0 0.0
    %821 = vmatpush1.msra.mxu0 %v49
    %822 = vmatprep.subr.mxu0 0.0
    %823 = vmatpush1.msra.mxu0 %v50
    %824 = vmatprep.subr.mxu0 0.0
    %825 = vmatpush1.msra.mxu0 %v51
    %826 = vmatprep.subr.mxu0 0.0
    %827 = vmatpush1.msra.mxu0 %v52
    %828 = vmatprep.subr.mxu0 0.0
    %829 = vmatpush1.msra.mxu0 %v53
    %830 = vmatprep.subr.mxu0 0.0
    %831 = vmatpush1.msra.mxu0 %v54
    %832 = vmatprep.subr.mxu0 0.0
    %833 = vmatpush1.msra.mxu0 %v55
    %834 = vmatprep.subr.mxu0 0.0
    %835 = vmatpush1.msra.mxu0 %v56
    %836 = vmatprep.subr.mxu0 0.0
    %837 = vmatpush1.msra.mxu0 0.0
    %838 = vmatprep.subr.mxu0 0.0
    %839 = vmatpush1.msra.mxu0 0.0
    %840 = vmatprep.subr.mxu0 0.0
    %841 = vmatpush1.msra.mxu0 0.0
    %842 = vmatprep.subr.mxu0 0.0
    %843 = vmatpush1.msra.mxu0 0.0
    %844 = vmatprep.subr.mxu0 0.0
    %845 = vmatpush1.msra.mxu0 0.0
    %846 = vmatprep.subr.mxu0 0.0
    %847 = vmatpush1.msra.mxu0 0.0
    %848 = vmatprep.subr.mxu0 0.0
    %849 = vmatpush1.msra.mxu0 0.0
    %850 = vmatprep.subr.mxu0 0.0
    %851 = vmatpush1.msra.mxu0 0.0
    %852 = vmatprep.subr.mxu0 0.0
    %853 = vmatpush1.msra.mxu0 0.0
    %854 = vmatprep.subr.mxu0 0.0
    %855 = vmatpush1.msra.mxu0 0.0
    %856 = vmatprep.subr.mxu0 0.0
    %857 = vmatpush1.msra.mxu0 0.0
    %858 = vmatprep.subr.mxu0 0.0
    %859 = vmatpush1.msra.mxu0 0.0
    %860 = vmatprep.subr.mxu0 0.0
    %861 = vmatpush1.msra.mxu0 0.0
    %862 = vmatprep.subr.mxu0 0.0
    %863 = vmatpush1.msra.mxu0 0.0
    %864 = vmatprep.subr.mxu0 0.0
    %865 = vmatpush1.msra.mxu0 0.0
    %866 = vmatprep.subr.mxu0 0.0
    %867 = vmatpush1.msra.mxu0 0.0
    %868 = vmatprep.subr.mxu0 0.0
    %869 = vmatpush1.msra.mxu0 0.0
    %870 = vmatprep.subr.mxu0 0.0
    %871 = vmatpush1.msra.mxu0 0.0
    %872 = vmatprep.subr.mxu0 0.0
    %873 = vmatpush1.msra.mxu0 0.0
    %874 = vmatprep.subr.mxu0 0.0
    %875 = vmatpush1.msra.mxu0 0.0
    %876 = vmatprep.subr.mxu0 0.0
    %877 = vmatpush1.msra.mxu0 0.0
    %878 = vmatprep.subr.mxu0 0.0
    %879 = vmatpush1.msra.mxu0 0.0
    %880 = vmatprep.subr.mxu0 0.0
    %881 = vmatpush1.msra.mxu0 0.0
    %882 = vmatprep.subr.mxu0 0.0
    %883 = vmatpush1.msra.mxu0 0.0
    %884 = vmatprep.mubr.f32.mxu0 0.0
    %885 = vmatmul.mubr.f32.gmra.mrb[0].mxu0 %v818
    %v886 = vpop.f32.mrb[0].mxu0
    %v887 = vadd.f32 %v62, %v886
    %v888 = vpop.f32.mrb[0].mxu0
    %889 = vdwg.mxu0
    %v890 = vxor.u32 %v887, 2147483648
    %v891 = vmul.f32 %v890, 1.442695
    %v892 = vpow.pop %v891
    %v893 = vadd.f32 %v892, 1.0
    %v894 = vrcp.pop %v893
    %v895 = vmul.f32 1.0, %v894
    %v896 = vtanh.pop %v887
    %v897 = vmul.f32 %v895, %v593
    %899 = vrot.lane.b32.xlu0 %v896, 64
    %v900 = vpop.permute.xlu0 %899
    %v902 = vmul.f32 %v895, %v900
    %904 = vrot.lane.b32.xlu0 %v902, 32
    %v905 = vpop.permute.xlu0 %904
    %v907 = vadd.f32 %v897, %v905
    %v908 = vtanh.pop %v907
    %910 = vrot.lane.b32.xlu0 %v908, 64
    %v911 = vpop.permute.xlu0 %910
    %v913 = vmul.f32 %v895, %v911
    %v914 = vmax.f32 %v913, 0.0
    %916 = vrot.lane.b32.xlu0 %v914, 32
    %v917 = vpop.permute.xlu0 %916
    %v918 = vsel %vm186, %v917, 0
    %920 = vmatprep.subr.mxu0 0.0
    %921 = vmatpush1.msra.mxu0 %v64
    %922 = vmatprep.subr.mxu0 0.0
    %923 = vmatpush1.msra.mxu0 %v65
    %924 = vmatprep.subr.mxu0 0.0
    %925 = vmatpush1.msra.mxu0 %v66
    %926 = vmatprep.subr.mxu0 0.0
    %927 = vmatpush1.msra.mxu0 %v67
    %928 = vmatprep.subr.mxu0 0.0
    %929 = vmatpush1.msra.mxu0 0.0
    %930 = vmatprep.subr.mxu0 0.0
    %931 = vmatpush1.msra.mxu0 0.0
    %932 = vmatprep.subr.mxu0 0.0
    %933 = vmatpush1.msra.mxu0 0.0
    %934 = vmatprep.subr.mxu0 0.0
    %935 = vmatpush1.msra.mxu0 0.0
    %936 = vmatprep.subr.mxu0 0.0
    %937 = vmatpush1.msra.mxu0 0.0
    %938 = vmatprep.subr.mxu0 0.0
    %939 = vmatpush1.msra.mxu0 0.0
    %940 = vmatprep.subr.mxu0 0.0
    %941 = vmatpush1.msra.mxu0 0.0
    %942 = vmatprep.subr.mxu0 0.0
    %943 = vmatpush1.msra.mxu0 0.0
    %944 = vmatprep.subr.mxu0 0.0
    %945 = vmatpush1.msra.mxu0 0.0
    %946 = vmatprep.subr.mxu0 0.0
    %947 = vmatpush1.msra.mxu0 0.0
    %948 = vmatprep.subr.mxu0 0.0
    %949 = vmatpush1.msra.mxu0 0.0
    %950 = vmatprep.subr.mxu0 0.0
    %951 = vmatpush1.msra.mxu0 0.0
    %952 = vmatprep.subr.mxu0 0.0
    %953 = vmatpush1.msra.mxu0 0.0
    %954 = vmatprep.subr.mxu0 0.0
    %955 = vmatpush1.msra.mxu0 0.0
    %956 = vmatprep.subr.mxu0 0.0
    %957 = vmatpush1.msra.mxu0 0.0
    %958 = vmatprep.subr.mxu0 0.0
    %959 = vmatpush1.msra.mxu0 0.0
    %960 = vmatprep.subr.mxu0 0.0
    %961 = vmatpush1.msra.mxu0 0.0
    %962 = vmatprep.subr.mxu0 0.0
    %963 = vmatpush1.msra.mxu0 0.0
    %964 = vmatprep.subr.mxu0 0.0
    %965 = vmatpush1.msra.mxu0 0.0
    %966 = vmatprep.subr.mxu0 0.0
    %967 = vmatpush1.msra.mxu0 0.0
    %968 = vmatprep.subr.mxu0 0.0
    %969 = vmatpush1.msra.mxu0 0.0
    %970 = vmatprep.subr.mxu0 0.0
    %971 = vmatpush1.msra.mxu0 0.0
    %972 = vmatprep.subr.mxu0 0.0
    %973 = vmatpush1.msra.mxu0 0.0
    %974 = vmatprep.subr.mxu0 0.0
    %975 = vmatpush1.msra.mxu0 0.0
    %976 = vmatprep.subr.mxu0 0.0
    %977 = vmatpush1.msra.mxu0 0.0
    %978 = vmatprep.subr.mxu0 0.0
    %979 = vmatpush1.msra.mxu0 0.0
    %980 = vmatprep.subr.mxu0 0.0
    %981 = vmatpush1.msra.mxu0 0.0
    %982 = vmatprep.subr.mxu0 0.0
    %983 = vmatpush1.msra.mxu0 0.0
    %984 = vmatprep.mubr.f32.mxu0 0.0
    %985 = vmatmul.mubr.f32.gmra.mrb[0].mxu0 %v918
    %v986 = vpop.f32.mrb[0].mxu0
    %v987 = vadd.f32 %v73, %v986
    %v988 = vpop.f32.mrb[0].mxu0
    %989 = vdwg.mxu0
    %v990 = vmax.f32 %v987, 0.0
    %v991 = vand.u32 2147483647, %v987
    %v992 = vsub.f32 0.0, %v991
    %v993 = vmul.f32 %v992, 1.442695
    %v994 = vpow.pop %v993
    %v995 = vadd.f32 %v994, 1.0
    %v996 = vlog2.pop %v995
    %v997 = vmul.f32 %v996, 0.6931472
    %v998 = vmul.f32 -0.5, %v994
    %v999 = vadd.f32 %v998, 1.0
    %v1000 = vmul.f32 %v999, %v994
    %v1001 = vand.u32 2147483647, %v994
    %vm1002 = vcmp.lt.f32.partialorder %v1001, 0.0004427343
    %v1003 = vsel %vm1002, %v1000, %v997
    %v1004 = vadd.f32 %v990, %v1003
    %v1005 = vadd.f32 %v1004, 1e-06
    %1007 = vrot.lane.b32.xlu0 %v987, 2
    %v1008 = vpop.permute.xlu0 %1007
    %vm1010 = vcmask 19472
    %1011 = vst.msk [vmem:[#allocation2] sm:$0xf] %vm1010, %v1008
    %1013 = vrot.lane.b32.xlu0 %v1005, 1
    %v1014 = vpop.permute.xlu0 %1013
    %1016 = vst.msk [vmem:[#allocation4] sm:$0xf] %vm1010, %v1014
    %v1017 = vld [vmem:[%s1] sm:$0xf]
    %s1018 = scalar_lea.vmem %s0, 12
    %v1019 = vld [vmem:[%s1018] sm:$0xf]
    %1021 = vrot.lane.b32.xlu0 %v1017, 2
    %v1022 = vpop.permute.xlu0 %1021
    %1024 = vrot.lane.b32.xlu0 %v807, 37
    %v1025 = vpop.permute.xlu0 %1024
    %v1027 = vsel %vm76, %v1019, %v1022
    %v1028 = vsel %vm78, %v1027, %v1025
    %v1030 = vsel %vm80, %v1028, 0
    %1032 = vmatprep.subr.mxu0 0.0
    %1033 = vmatpush1.msra.mxu0 %v37
    %1034 = vmatprep.subr.mxu0 0.0
    %1035 = vmatpush1.msra.mxu0 %v38
    %1036 = vmatprep.subr.mxu0 0.0
    %1037 = vmatpush1.msra.mxu0 %v39
    %1038 = vmatprep.subr.mxu0 0.0
    %1039 = vmatpush1.msra.mxu0 %v40
    %1040 = vmatprep.subr.mxu0 0.0
    %1041 = vmatpush1.msra.mxu0 %v86
    %1042 = vmatprep.subr.mxu0 0.0
    %1043 = vmatpush1.msra.mxu0 0.0
    %1044 = vmatprep.subr.mxu0 0.0
    %1045 = vmatpush1.msra.mxu0 0.0
    %1046 = vmatprep.subr.mxu0 0.0
    %1047 = vmatpush1.msra.mxu0 0.0
    %1048 = vmatprep.subr.mxu0 0.0
    %1049 = vmatpush1.msra.mxu0 0.0
    %1050 = vmatprep.subr.mxu0 0.0
    %1051 = vmatpush1.msra.mxu0 0.0
    %1052 = vmatprep.subr.mxu0 0.0
    %1053 = vmatpush1.msra.mxu0 0.0
    %1054 = vmatprep.subr.mxu0 0.0
    %1055 = vmatpush1.msra.mxu0 0.0
    %1056 = vmatprep.subr.mxu0 0.0
    %1057 = vmatpush1.msra.mxu0 0.0
    %1058 = vmatprep.subr.mxu0 0.0
    %1059 = vmatpush1.msra.mxu0 0.0
    %1060 = vmatprep.subr.mxu0 0.0
    %1061 = vmatpush1.msra.mxu0 0.0
    %1062 = vmatprep.subr.mxu0 0.0
    %1063 = vmatpush1.msra.mxu0 0.0
    %1064 = vmatprep.subr.mxu0 0.0
    %1065 = vmatpush1.msra.mxu0 0.0
    %1066 = vmatprep.subr.mxu0 0.0
    %1067 = vmatpush1.msra.mxu0 0.0
    %1068 = vmatprep.subr.mxu0 0.0
    %1069 = vmatpush1.msra.mxu0 0.0
    %1070 = vmatprep.subr.mxu0 0.0
    %1071 = vmatpush1.msra.mxu0 0.0
    %1072 = vmatprep.subr.mxu0 0.0
    %1073 = vmatpush1.msra.mxu0 0.0
    %1074 = vmatprep.subr.mxu0 0.0
    %1075 = vmatpush1.msra.mxu0 0.0
    %1076 = vmatprep.subr.mxu0 0.0
    %1077 = vmatpush1.msra.mxu0 0.0
    %1078 = vmatprep.subr.mxu0 0.0
    %1079 = vmatpush1.msra.mxu0 0.0
    %1080 = vmatprep.subr.mxu0 0.0
    %1081 = vmatpush1.msra.mxu0 0.0
    %1082 = vmatprep.subr.mxu0 0.0
    %1083 = vmatpush1.msra.mxu0 0.0
    %1084 = vmatprep.subr.mxu0 0.0
    %1085 = vmatpush1.msra.mxu0 0.0
    %1086 = vmatprep.subr.mxu0 0.0
    %1087 = vmatpush1.msra.mxu0 0.0
    %1088 = vmatprep.subr.mxu0 0.0
    %1089 = vmatpush1.msra.mxu0 0.0
    %1090 = vmatprep.subr.mxu0 0.0
    %1091 = vmatpush1.msra.mxu0 0.0
    %1092 = vmatprep.subr.mxu0 0.0
    %1093 = vmatpush1.msra.mxu0 0.0
    %1094 = vmatprep.subr.mxu0 0.0
    %1095 = vmatpush1.msra.mxu0 0.0
    %1096 = vmatprep.mubr.f32.mxu0 0.0
    %1097 = vmatmul.mubr.f32.gmra.mrb[0].mxu0 %v1030
    %v1098 = vpop.f32.mrb[0].mxu0
    %v1099 = vadd.f32 %v47, %v1098
    %v1100 = vpop.f32.mrb[0].mxu0
    %1101 = vdwg.mxu0
    %v1102 = vxor.u32 %v1099, 2147483648
    %v1103 = vmul.f32 %v1102, 1.442695
    %v1104 = vpow.pop %v1103
    %v1105 = vadd.f32 %v1104, 1.0
    %v1106 = vrcp.pop %v1105
    %v1107 = vmul.f32 1.0, %v1106
    %v1108 = vtanh.pop %v1099
    %v1109 = vmul.f32 %v1107, %v801
    %1111 = vrot.lane.b32.xlu0 %v1108, 64
    %v1112 = vpop.permute.xlu0 %1111
    %v1114 = vmul.f32 %v1107, %v1112
    %1116 = vrot.lane.b32.xlu0 %v1114, 32
    %v1117 = vpop.permute.xlu0 %1116
    %v1119 = vadd.f32 %v1109, %v1117
    %v1120 = vtanh.pop %v1119
    %1122 = vrot.lane.b32.xlu0 %v1120, 64
    %v1123 = vpop.permute.xlu0 %1122
    %v1125 = vmul.f32 %v1107, %v1123
    %1127 = vrot.lane.b32.xlu0 %v1125, 32
    %v1128 = vpop.permute.xlu0 %1127
    %1131 = vrot.lane.b32.xlu0 %v913, 64
    %v1132 = vpop.permute.xlu0 %1131
    %v1134 = vsel %vm186, %v1128, %v1132
    %v1136 = vsel %vm188, %v1134, 0
    %1138 = vmatprep.subr.mxu0 0.0
    %1139 = vmatpush1.msra.mxu0 %v49
    %1140 = vmatprep.subr.mxu0 0.0
    %1141 = vmatpush1.msra.mxu0 %v50
    %1142 = vmatprep.subr.mxu0 0.0
    %1143 = vmatpush1.msra.mxu0 %v51
    %1144 = vmatprep.subr.mxu0 0.0
    %1145 = vmatpush1.msra.mxu0 %v52
    %1146 = vmatprep.subr.mxu0 0.0
    %1147 = vmatpush1.msra.mxu0 %v53
    %1148 = vmatprep.subr.mxu0 0.0
    %1149 = vmatpush1.msra.mxu0 %v54
    %1150 = vmatprep.subr.mxu0 0.0
    %1151 = vmatpush1.msra.mxu0 %v55
    %1152 = vmatprep.subr.mxu0 0.0
    %1153 = vmatpush1.msra.mxu0 %v56
    %1154 = vmatprep.subr.mxu0 0.0
    %1155 = vmatpush1.msra.mxu0 0.0
    %1156 = vmatprep.subr.mxu0 0.0
    %1157 = vmatpush1.msra.mxu0 0.0
    %1158 = vmatprep.subr.mxu0 0.0
    %1159 = vmatpush1.msra.mxu0 0.0
    %1160 = vmatprep.subr.mxu0 0.0
    %1161 = vmatpush1.msra.mxu0 0.0
    %1162 = vmatprep.subr.mxu0 0.0
    %1163 = vmatpush1.msra.mxu0 0.0
    %1164 = vmatprep.subr.mxu0 0.0
    %1165 = vmatpush1.msra.mxu0 0.0
    %1166 = vmatprep.subr.mxu0 0.0
    %1167 = vmatpush1.msra.mxu0 0.0
    %1168 = vmatprep.subr.mxu0 0.0
    %1169 = vmatpush1.msra.mxu0 0.0
    %1170 = vmatprep.subr.mxu0 0.0
    %1171 = vmatpush1.msra.mxu0 0.0
    %1172 = vmatprep.subr.mxu0 0.0
    %1173 = vmatpush1.msra.mxu0 0.0
    %1174 = vmatprep.subr.mxu0 0.0
    %1175 = vmatpush1.msra.mxu0 0.0
    %1176 = vmatprep.subr.mxu0 0.0
    %1177 = vmatpush1.msra.mxu0 0.0
    %1178 = vmatprep.subr.mxu0 0.0
    %1179 = vmatpush1.msra.mxu0 0.0
    %1180 = vmatprep.subr.mxu0 0.0
    %1181 = vmatpush1.msra.mxu0 0.0
    %1182 = vmatprep.subr.mxu0 0.0
    %1183 = vmatpush1.msra.mxu0 0.0
    %1184 = vmatprep.subr.mxu0 0.0
    %1185 = vmatpush1.msra.mxu0 0.0
    %1186 = vmatprep.subr.mxu0 0.0
    %1187 = vmatpush1.msra.mxu0 0.0
    %1188 = vmatprep.subr.mxu0 0.0
    %1189 = vmatpush1.msra.mxu0 0.0
    %1190 = vmatprep.subr.mxu0 0.0
    %1191 = vmatpush1.msra.mxu0 0.0
    %1192 = vmatprep.subr.mxu0 0.0
    %1193 = vmatpush1.msra.mxu0 0.0
    %1194 = vmatprep.subr.mxu0 0.0
    %1195 = vmatpush1.msra.mxu0 0.0
    %1196 = vmatprep.subr.mxu0 0.0
    %1197 = vmatpush1.msra.mxu0 0.0
    %1198 = vmatprep.subr.mxu0 0.0
    %1199 = vmatpush1.msra.mxu0 0.0
    %1200 = vmatprep.subr.mxu0 0.0
    %1201 = vmatpush1.msra.mxu0 0.0
    %1202 = vmatprep.mubr.f32.mxu0 0.0
    %1203 = vmatmul.mubr.f32.gmra.mrb[0].mxu0 %v1136
    %v1204 = vpop.f32.mrb[0].mxu0
    %v1205 = vadd.f32 %v62, %v1204
    %v1206 = vpop.f32.mrb[0].mxu0
    %1207 = vdwg.mxu0
    %v1208 = vxor.u32 %v1205, 2147483648
    %v1209 = vmul.f32 %v1208, 1.442695
    %v1210 = vpow.pop %v1209
    %v1211 = vadd.f32 %v1210, 1.0
    %v1212 = vrcp.pop %v1211
    %v1213 = vmul.f32 1.0, %v1212
    %v1214 = vtanh.pop %v1205
    %v1215 = vmul.f32 %v1213, %v907
    %1217 = vrot.lane.b32.xlu0 %v1214, 64
    %v1218 = vpop.permute.xlu0 %1217
    %v1220 = vmul.f32 %v1213, %v1218
    %1222 = vrot.lane.b32.xlu0 %v1220, 32
    %v1223 = vpop.permute.xlu0 %1222
    %v1225 = vadd.f32 %v1215, %v1223
    %v1226 = vtanh.pop %v1225
    %1228 = vrot.lane.b32.xlu0 %v1226, 64
    %v1229 = vpop.permute.xlu0 %1228
    %v1231 = vmul.f32 %v1213, %v1229
    %v1232 = vmax.f32 %v1231, 0.0
    %1234 = vrot.lane.b32.xlu0 %v1232, 32
    %v1235 = vpop.permute.xlu0 %1234
    %v1236 = vsel %vm186, %v1235, 0
    %1238 = vmatprep.subr.mxu0 0.0
    %1239 = vmatpush1.msra.mxu0 %v64
    %1240 = vmatprep.subr.mxu0 0.0
    %1241 = vmatpush1.msra.mxu0 %v65
    %1242 = vmatprep.subr.mxu0 0.0
    %1243 = vmatpush1.msra.mxu0 %v66
    %1244 = vmatprep.subr.mxu0 0.0
    %1245 = vmatpush1.msra.mxu0 %v67
    %1246 = vmatprep.subr.mxu0 0.0
    %1247 = vmatpush1.msra.mxu0 0.0
    %1248 = vmatprep.subr.mxu0 0.0
    %1249 = vmatpush1.msra.mxu0 0.0
    %1250 = vmatprep.subr.mxu0 0.0
    %1251 = vmatpush1.msra.mxu0 0.0
    %1252 = vmatprep.subr.mxu0 0.0
    %1253 = vmatpush1.msra.mxu0 0.0
    %1254 = vmatprep.subr.mxu0 0.0
    %1255 = vmatpush1.msra.mxu0 0.0
    %1256 = vmatprep.subr.mxu0 0.0
    %1257 = vmatpush1.msra.mxu0 0.0
    %1258 = vmatprep.subr.mxu0 0.0
    %1259 = vmatpush1.msra.mxu0 0.0
    %1260 = vmatprep.subr.mxu0 0.0
    %1261 = vmatpush1.msra.mxu0 0.0
    %1262 = vmatprep.subr.mxu0 0.0
    %1263 = vmatpush1.msra.mxu0 0.0
    %1264 = vmatprep.subr.mxu0 0.0
    %1265 = vmatpush1.msra.mxu0 0.0
    %1266 = vmatprep.subr.mxu0 0.0
    %1267 = vmatpush1.msra.mxu0 0.0
    %1268 = vmatprep.subr.mxu0 0.0
    %1269 = vmatpush1.msra.mxu0 0.0
    %1270 = vmatprep.subr.mxu0 0.0
    %1271 = vmatpush1.msra.mxu0 0.0
    %1272 = vmatprep.subr.mxu0 0.0
    %1273 = vmatpush1.msra.mxu0 0.0
    %1274 = vmatprep.subr.mxu0 0.0
    %1275 = vmatpush1.msra.mxu0 0.0
    %1276 = vmatprep.subr.mxu0 0.0
    %1277 = vmatpush1.msra.mxu0 0.0
    %1278 = vmatprep.subr.mxu0 0.0
    %1279 = vmatpush1.msra.mxu0 0.0
    %1280 = vmatprep.subr.mxu0 0.0
    %1281 = vmatpush1.msra.mxu0 0.0
    %1282 = vmatprep.subr.mxu0 0.0
    %1283 = vmatpush1.msra.mxu0 0.0
    %1284 = vmatprep.subr.mxu0 0.0
    %1285 = vmatpush1.msra.mxu0 0.0
    %1286 = vmatprep.subr.mxu0 0.0
    %1287 = vmatpush1.msra.mxu0 0.0
    %1288 = vmatprep.subr.mxu0 0.0
    %1289 = vmatpush1.msra.mxu0 0.0
    %1290 = vmatprep.subr.mxu0 0.0
    %1291 = vmatpush1.msra.mxu0 0.0
    %1292 = vmatprep.subr.mxu0 0.0
    %1293 = vmatpush1.msra.mxu0 0.0
    %1294 = vmatprep.subr.mxu0 0.0
    %1295 = vmatpush1.msra.mxu0 0.0
    %1296 = vmatprep.subr.mxu0 0.0
    %1297 = vmatpush1.msra.mxu0 0.0
    %1298 = vmatprep.subr.mxu0 0.0
    %1299 = vmatpush1.msra.mxu0 0.0
    %1300 = vmatprep.subr.mxu0 0.0
    %1301 = vmatpush1.msra.mxu0 0.0
    %1302 = vmatprep.mubr.f32.mxu0 0.0
    %1303 = vmatmul.mubr.f32.gmra.mrb[0].mxu0 %v1236
    %v1304 = vpop.f32.mrb[0].mxu0
    %v1305 = vadd.f32 %v73, %v1304
    %v1306 = vpop.f32.mrb[0].mxu0
    %1307 = vdwg.mxu0
    %v1308 = vmax.f32 %v1305, 0.0
    %v1309 = vand.u32 2147483647, %v1305
    %v1310 = vsub.f32 0.0, %v1309
    %v1311 = vmul.f32 %v1310, 1.442695
    %v1312 = vpow.pop %v1311
    %v1313 = vadd.f32 %v1312, 1.0
    %v1314 = vlog2.pop %v1313
    %v1315 = vmul.f32 %v1314, 0.6931472
    %v1316 = vmul.f32 -0.5, %v1312
    %v1317 = vadd.f32 %v1316, 1.0
    %v1318 = vmul.f32 %v1317, %v1312
    %v1319 = vand.u32 2147483647, %v1312
    %vm1320 = vcmp.lt.f32.partialorder %v1319, 0.0004427343
    %v1321 = vsel %vm1320, %v1318, %v1315
    %v1322 = vadd.f32 %v1308, %v1321
    %v1323 = vadd.f32 %v1322, 1e-06
    %1325 = vrot.lane.b32.xlu0 %v1305, 3
    %v1326 = vpop.permute.xlu0 %1325
    %vm1328 = vcmask 27672
    %1329 = vst.msk [vmem:[#allocation2] sm:$0xf] %vm1328, %v1326
    %1331 = vrot.lane.b32.xlu0 %v1323, 2
    %v1332 = vpop.permute.xlu0 %1331
    %1334 = vst.msk [vmem:[#allocation4] sm:$0xf] %vm1328, %v1332
    %v1335 = vld [vmem:[%s1] sm:$0xf]
    %s1336 = scalar_lea.vmem %s0, 16
    %v1337 = vld [vmem:[%s1336] sm:$0xf]
    %1339 = vrot.lane.b32.xlu0 %v1335, 1
    %v1340 = vpop.permute.xlu0 %1339
    %1342 = vrot.lane.b32.xlu0 %v1125, 37
    %v1343 = vpop.permute.xlu0 %1342
    %v1345 = vsel %vm76, %v1337, %v1340
    %v1346 = vsel %vm78, %v1345, %v1343
    %v1348 = vsel %vm80, %v1346, 0
    %1350 = vmatprep.subr.mxu0 0.0
    %1351 = vmatpush1.msra.mxu0 %v37
    %1352 = vmatprep.subr.mxu0 0.0
    %1353 = vmatpush1.msra.mxu0 %v38
    %1354 = vmatprep.subr.mxu0 0.0
    %1355 = vmatpush1.msra.mxu0 %v39
    %1356 = vmatprep.subr.mxu0 0.0
    %1357 = vmatpush1.msra.mxu0 %v40
    %1358 = vmatprep.subr.mxu0 0.0
    %1359 = vmatpush1.msra.mxu0 %v86
    %1360 = vmatprep.subr.mxu0 0.0
    %1361 = vmatpush1.msra.mxu0 0.0
    %1362 = vmatprep.subr.mxu0 0.0
    %1363 = vmatpush1.msra.mxu0 0.0
    %1364 = vmatprep.subr.mxu0 0.0
    %1365 = vmatpush1.msra.mxu0 0.0
    %1366 = vmatprep.subr.mxu0 0.0
    %1367 = vmatpush1.msra.mxu0 0.0
    %1368 = vmatprep.subr.mxu0 0.0
    %1369 = vmatpush1.msra.mxu0 0.0
    %1370 = vmatprep.subr.mxu0 0.0
    %1371 = vmatpush1.msra.mxu0 0.0
    %1372 = vmatprep.subr.mxu0 0.0
    %1373 = vmatpush1.msra.mxu0 0.0
    %1374 = vmatprep.subr.mxu0 0.0
    %1375 = vmatpush1.msra.mxu0 0.0
    %1376 = vmatprep.subr.mxu0 0.0
    %1377 = vmatpush1.msra.mxu0 0.0
    %1378 = vmatprep.subr.mxu0 0.0
    %1379 = vmatpush1.msra.mxu0 0.0
    %1380 = vmatprep.subr.mxu0 0.0
    %1381 = vmatpush1.msra.mxu0 0.0
    %1382 = vmatprep.subr.mxu0 0.0
    %1383 = vmatpush1.msra.mxu0 0.0
    %1384 = vmatprep.subr.mxu0 0.0
    %1385 = vmatpush1.msra.mxu0 0.0
    %1386 = vmatprep.subr.mxu0 0.0
    %1387 = vmatpush1.msra.mxu0 0.0
    %1388 = vmatprep.subr.mxu0 0.0
    %1389 = vmatpush1.msra.mxu0 0.0
    %1390 = vmatprep.subr.mxu0 0.0
    %1391 = vmatpush1.msra.mxu0 0.0
    %1392 = vmatprep.subr.mxu0 0.0
    %1393 = vmatpush1.msra.mxu0 0.0
    %1394 = vmatprep.subr.mxu0 0.0
    %1395 = vmatpush1.msra.mxu0 0.0
    %1396 = vmatprep.subr.mxu0 0.0
    %1397 = vmatpush1.msra.mxu0 0.0
    %1398 = vmatprep.subr.mxu0 0.0
    %1399 = vmatpush1.msra.mxu0 0.0
    %1400 = vmatprep.subr.mxu0 0.0
    %1401 = vmatpush1.msra.mxu0 0.0
    %1402 = vmatprep.subr.mxu0 0.0
    %1403 = vmatpush1.msra.mxu0 0.0
    %1404 = vmatprep.subr.mxu0 0.0
    %1405 = vmatpush1.msra.mxu0 0.0
    %1406 = vmatprep.subr.mxu0 0.0
    %1407 = vmatpush1.msra.mxu0 0.0
    %1408 = vmatprep.subr.mxu0 0.0
    %1409 = vmatpush1.msra.mxu0 0.0
    %1410 = vmatprep.subr.mxu0 0.0
    %1411 = vmatpush1.msra.mxu0 0.0
    %1412 = vmatprep.subr.mxu0 0.0
    %1413 = vmatpush1.msra.mxu0 0.0
    %1414 = vmatprep.mubr.f32.mxu0 0.0
    %1415 = vmatmul.mubr.f32.gmra.mrb[0].mxu0 %v1348
    %v1416 = vpop.f32.mrb[0].mxu0
    %v1417 = vadd.f32 %v47, %v1416
    %v1418 = vpop.f32.mrb[0].mxu0
    %1419 = vdwg.mxu0
    %v1420 = vxor.u32 %v1417, 2147483648
    %v1421 = vmul.f32 %v1420, 1.442695
    %v1422 = vpow.pop %v1421
    %v1423 = vadd.f32 %v1422, 1.0
    %v1424 = vrcp.pop %v1423
    %v1425 = vmul.f32 1.0, %v1424
    %v1426 = vtanh.pop %v1417
    %v1427 = vmul.f32 %v1425, %v1119
    %1429 = vrot.lane.b32.xlu0 %v1426, 64
    %v1430 = vpop.permute.xlu0 %1429
    %v1432 = vmul.f32 %v1425, %v1430
    %1434 = vrot.lane.b32.xlu0 %v1432, 32
    %v1435 = vpop.permute.xlu0 %1434
    %v1437 = vadd.f32 %v1427, %v1435
    %v1438 = vtanh.pop %v1437
    %1440 = vrot.lane.b32.xlu0 %v1438, 64
    %v1441 = vpop.permute.xlu0 %1440
    %v1443 = vmul.f32 %v1425, %v1441
    %1445 = vrot.lane.b32.xlu0 %v1443, 32
    %v1446 = vpop.permute.xlu0 %1445
    %1449 = vrot.lane.b32.xlu0 %v1231, 64
    %v1450 = vpop.permute.xlu0 %1449
    %v1452 = vsel %vm186, %v1446, %v1450
    %v1454 = vsel %vm188, %v1452, 0
    %1456 = vmatprep.subr.mxu0 0.0
    %1457 = vmatpush1.msra.mxu0 %v49
    %1458 = vmatprep.subr.mxu0 0.0
    %1459 = vmatpush1.msra.mxu0 %v50
    %1460 = vmatprep.subr.mxu0 0.0
    %1461 = vmatpush1.msra.mxu0 %v51
    %1462 = vmatprep.subr.mxu0 0.0
    %1463 = vmatpush1.msra.mxu0 %v52
    %1464 = vmatprep.subr.mxu0 0.0
    %1465 = vmatpush1.msra.mxu0 %v53
    %1466 = vmatprep.subr.mxu0 0.0
    %1467 = vmatpush1.msra.mxu0 %v54
    %1468 = vmatprep.subr.mxu0 0.0
    %1469 = vmatpush1.msra.mxu0 %v55
    %1470 = vmatprep.subr.mxu0 0.0
    %1471 = vmatpush1.msra.mxu0 %v56
    %1472 = vmatprep.subr.mxu0 0.0
    %1473 = vmatpush1.msra.mxu0 0.0
    %1474 = vmatprep.subr.mxu0 0.0
    %1475 = vmatpush1.msra.mxu0 0.0
    %1476 = vmatprep.subr.mxu0 0.0
    %1477 = vmatpush1.msra.mxu0 0.0
    %1478 = vmatprep.subr.mxu0 0.0
    %1479 = vmatpush1.msra.mxu0 0.0
    %1480 = vmatprep.subr.mxu0 0.0
    %1481 = vmatpush1.msra.mxu0 0.0
    %1482 = vmatprep.subr.mxu0 0.0
    %1483 = vmatpush1.msra.mxu0 0.0
    %1484 = vmatprep.subr.mxu0 0.0
    %1485 = vmatpush1.msra.mxu0 0.0
    %1486 = vmatprep.subr.mxu0 0.0
    %1487 = vmatpush1.msra.mxu0 0.0
    %1488 = vmatprep.subr.mxu0 0.0
    %1489 = vmatpush1.msra.mxu0 0.0
    %1490 = vmatprep.subr.mxu0 0.0
    %1491 = vmatpush1.msra.mxu0 0.0
    %1492 = vmatprep.subr.mxu0 0.0
    %1493 = vmatpush1.msra.mxu0 0.0
    %1494 = vmatprep.subr.mxu0 0.0
    %1495 = vmatpush1.msra.mxu0 0.0
    %1496 = vmatprep.subr.mxu0 0.0
    %1497 = vmatpush1.msra.mxu0 0.0
    %1498 = vmatprep.subr.mxu0 0.0
    %1499 = vmatpush1.msra.mxu0 0.0
    %1500 = vmatprep.subr.mxu0 0.0
    %1501 = vmatpush1.msra.mxu0 0.0
    %1502 = vmatprep.subr.mxu0 0.0
    %1503 = vmatpush1.msra.mxu0 0.0
    %1504 = vmatprep.subr.mxu0 0.0
    %1505 = vmatpush1.msra.mxu0 0.0
    %1506 = vmatprep.subr.mxu0 0.0
    %1507 = vmatpush1.msra.mxu0 0.0
    %1508 = vmatprep.subr.mxu0 0.0
    %1509 = vmatpush1.msra.mxu0 0.0
    %1510 = vmatprep.subr.mxu0 0.0
    %1511 = vmatpush1.msra.mxu0 0.0
    %1512 = vmatprep.subr.mxu0 0.0
    %1513 = vmatpush1.msra.mxu0 0.0
    %1514 = vmatprep.subr.mxu0 0.0
    %1515 = vmatpush1.msra.mxu0 0.0
    %1516 = vmatprep.subr.mxu0 0.0
    %1517 = vmatpush1.msra.mxu0 0.0
    %1518 = vmatprep.subr.mxu0 0.0
    %1519 = vmatpush1.msra.mxu0 0.0
    %1520 = vmatprep.mubr.f32.mxu0 0.0
    %1521 = vmatmul.mubr.f32.gmra.mrb[0].mxu0 %v1454
    %v1522 = vpop.f32.mrb[0].mxu0
    %v1523 = vadd.f32 %v62, %v1522
    %v1524 = vpop.f32.mrb[0].mxu0
    %1525 = vdwg.mxu0
    %v1526 = vxor.u32 %v1523, 2147483648
    %v1527 = vmul.f32 %v1526, 1.442695
    %v1528 = vpow.pop %v1527
    %v1529 = vadd.f32 %v1528, 1.0
    %v1530 = vrcp.pop %v1529
    %v1531 = vmul.f32 1.0, %v1530
    %v1532 = vtanh.pop %v1523
    %v1533 = vmul.f32 %v1531, %v1225
    %1535 = vrot.lane.b32.xlu0 %v1532, 64
    %v1536 = vpop.permute.xlu0 %1535
    %v1538 = vmul.f32 %v1531, %v1536
    %1540 = vrot.lane.b32.xlu0 %v1538, 32
    %v1541 = vpop.permute.xlu0 %1540
    %v1543 = vadd.f32 %v1533, %v1541
    %v1544 = vtanh.pop %v1543
    %1546 = vrot.lane.b32.xlu0 %v1544, 64
    %v1547 = vpop.permute.xlu0 %1546
    %v1549 = vmul.f32 %v1531, %v1547
    %v1550 = vmax.f32 %v1549, 0.0
    %1552 = vrot.lane.b32.xlu0 %v1550, 32
    %v1553 = vpop.permute.xlu0 %1552
    %v1554 = vsel %vm186, %v1553, 0
    %1556 = vmatprep.subr.mxu0 0.0
    %1557 = vmatpush1.msra.mxu0 %v64
    %1558 = vmatprep.subr.mxu0 0.0
    %1559 = vmatpush1.msra.mxu0 %v65
    %1560 = vmatprep.subr.mxu0 0.0
    %1561 = vmatpush1.msra.mxu0 %v66
    %1562 = vmatprep.subr.mxu0 0.0
    %1563 = vmatpush1.msra.mxu0 %v67
    %1564 = vmatprep.subr.mxu0 0.0
    %1565 = vmatpush1.msra.mxu0 0.0
    %1566 = vmatprep.subr.mxu0 0.0
    %1567 = vmatpush1.msra.mxu0 0.0
    %1568 = vmatprep.subr.mxu0 0.0
    %1569 = vmatpush1.msra.mxu0 0.0
    %1570 = vmatprep.subr.mxu0 0.0
    %1571 = vmatpush1.msra.mxu0 0.0
    %1572 = vmatprep.subr.mxu0 0.0
    %1573 = vmatpush1.msra.mxu0 0.0
    %1574 = vmatprep.subr.mxu0 0.0
    %1575 = vmatpush1.msra.mxu0 0.0
    %1576 = vmatprep.subr.mxu0 0.0
    %1577 = vmatpush1.msra.mxu0 0.0
    %1578 = vmatprep.subr.mxu0 0.0
    %1579 = vmatpush1.msra.mxu0 0.0
    %1580 = vmatprep.subr.mxu0 0.0
    %1581 = vmatpush1.msra.mxu0 0.0
    %1582 = vmatprep.subr.mxu0 0.0
    %1583 = vmatpush1.msra.mxu0 0.0
    %1584 = vmatprep.subr.mxu0 0.0
    %1585 = vmatpush1.msra.mxu0 0.0
    %1586 = vmatprep.subr.mxu0 0.0
    %1587 = vmatpush1.msra.mxu0 0.0
    %1588 = vmatprep.subr.mxu0 0.0
    %1589 = vmatpush1.msra.mxu0 0.0
    %1590 = vmatprep.subr.mxu0 0.0
    %1591 = vmatpush1.msra.mxu0 0.0
    %1592 = vmatprep.subr.mxu0 0.0
    %1593 = vmatpush1.msra.mxu0 0.0
    %1594 = vmatprep.subr.mxu0 0.0
    %1595 = vmatpush1.msra.mxu0 0.0
    %1596 = vmatprep.subr.mxu0 0.0
    %1597 = vmatpush1.msra.mxu0 0.0
    %1598 = vmatprep.subr.mxu0 0.0
    %1599 = vmatpush1.msra.mxu0 0.0
    %1600 = vmatprep.subr.mxu0 0.0
    %1601 = vmatpush1.msra.mxu0 0.0
    %1602 = vmatprep.subr.mxu0 0.0
    %1603 = vmatpush1.msra.mxu0 0.0
    %1604 = vmatprep.subr.mxu0 0.0
    %1605 = vmatpush1.msra.mxu0 0.0
    %1606 = vmatprep.subr.mxu0 0.0
    %1607 = vmatpush1.msra.mxu0 0.0
    %1608 = vmatprep.subr.mxu0 0.0
    %1609 = vmatpush1.msra.mxu0 0.0
    %1610 = vmatprep.subr.mxu0 0.0
    %1611 = vmatpush1.msra.mxu0 0.0
    %1612 = vmatprep.subr.mxu0 0.0
    %1613 = vmatpush1.msra.mxu0 0.0
    %1614 = vmatprep.subr.mxu0 0.0
    %1615 = vmatpush1.msra.mxu0 0.0
    %1616 = vmatprep.subr.mxu0 0.0
    %1617 = vmatpush1.msra.mxu0 0.0
    %1618 = vmatprep.subr.mxu0 0.0
    %1619 = vmatpush1.msra.mxu0 0.0
    %1620 = vmatprep.mubr.f32.mxu0 0.0
    %1621 = vmatmul.mubr.f32.gmra.mrb[0].mxu0 %v1554
    %v1622 = vpop.f32.mrb[0].mxu0
    %v1623 = vadd.f32 %v73, %v1622
    %v1624 = vpop.f32.mrb[0].mxu0
    %1625 = vdwg.mxu0
    %v1626 = vmax.f32 %v1623, 0.0
    %v1627 = vand.u32 2147483647, %v1623
    %v1628 = vsub.f32 0.0, %v1627
    %v1629 = vmul.f32 %v1628, 1.442695
    %v1630 = vpow.pop %v1629
    %v1631 = vadd.f32 %v1630, 1.0
    %v1632 = vlog2.pop %v1631
    %v1633 = vmul.f32 %v1632, 0.6931472
    %v1634 = vmul.f32 -0.5, %v1630
    %v1635 = vadd.f32 %v1634, 1.0
    %v1636 = vmul.f32 %v1635, %v1630
    %v1637 = vand.u32 2147483647, %v1630
    %vm1638 = vcmp.lt.f32.partialorder %v1637, 0.0004427343
    %v1639 = vsel %vm1638, %v1636, %v1633
    %v1640 = vadd.f32 %v1626, %v1639
    %v1641 = vadd.f32 %v1640, 1e-06
    %1643 = vrot.lane.b32.xlu0 %v1623, 4
    %v1644 = vpop.permute.xlu0 %1643
    %vm1646 = vcmask 35872
    %1647 = vst.msk [vmem:[#allocation2] sm:$0xf] %vm1646, %v1644
    %1649 = vrot.lane.b32.xlu0 %v1641, 3
    %v1650 = vpop.permute.xlu0 %1649
    %1652 = vst.msk [vmem:[#allocation4] sm:$0xf] %vm1646, %v1650
    %v1653 = vld [vmem:[%s1] sm:$0xf]
    %s1654 = scalar_lea.vmem %s0, 20
    %v1655 = vld [vmem:[%s1654] sm:$0xf]
    %1656 = vrot.lane.b32.xlu0 %v1443, 37
    %v1657 = vpop.permute.xlu0 %1656
    %v1659 = vsel %vm76, %v1655, %v1653
    %v1660 = vsel %vm78, %v1659, %v1657
    %v1662 = vsel %vm80, %v1660, 0
    %1664 = vmatprep.subr.mxu0 0.0
    %1665 = vmatpush1.msra.mxu0 %v37
    %1666 = vmatprep.subr.mxu0 0.0
    %1667 = vmatpush1.msra.mxu0 %v38
    %1668 = vmatprep.subr.mxu0 0.0
    %1669 = vmatpush1.msra.mxu0 %v39
    %1670 = vmatprep.subr.mxu0 0.0
    %1671 = vmatpush1.msra.mxu0 %v40
    %1672 = vmatprep.subr.mxu0 0.0
    %1673 = vmatpush1.msra.mxu0 %v86
    %1674 = vmatprep.subr.mxu0 0.0
    %1675 = vmatpush1.msra.mxu0 0.0
    %1676 = vmatprep.subr.mxu0 0.0
    %1677 = vmatpush1.msra.mxu0 0.0
    %1678 = vmatprep.subr.mxu0 0.0
    %1679 = vmatpush1.msra.mxu0 0.0
    %1680 = vmatprep.subr.mxu0 0.0
    %1681 = vmatpush1.msra.mxu0 0.0
    %1682 = vmatprep.subr.mxu0 0.0
    %1683 = vmatpush1.msra.mxu0 0.0
    %1684 = vmatprep.subr.mxu0 0.0
    %1685 = vmatpush1.msra.mxu0 0.0
    %1686 = vmatprep.subr.mxu0 0.0
    %1687 = vmatpush1.msra.mxu0 0.0
    %1688 = vmatprep.subr.mxu0 0.0
    %1689 = vmatpush1.msra.mxu0 0.0
    %1690 = vmatprep.subr.mxu0 0.0
    %1691 = vmatpush1.msra.mxu0 0.0
    %1692 = vmatprep.subr.mxu0 0.0
    %1693 = vmatpush1.msra.mxu0 0.0
    %1694 = vmatprep.subr.mxu0 0.0
    %1695 = vmatpush1.msra.mxu0 0.0
    %1696 = vmatprep.subr.mxu0 0.0
    %1697 = vmatpush1.msra.mxu0 0.0
    %1698 = vmatprep.subr.mxu0 0.0
    %1699 = vmatpush1.msra.mxu0 0.0
    %1700 = vmatprep.subr.mxu0 0.0
    %1701 = vmatpush1.msra.mxu0 0.0
    %1702 = vmatprep.subr.mxu0 0.0
    %1703 = vmatpush1.msra.mxu0 0.0
    %1704 = vmatprep.subr.mxu0 0.0
    %1705 = vmatpush1.msra.mxu0 0.0
    %1706 = vmatprep.subr.mxu0 0.0
    %1707 = vmatpush1.msra.mxu0 0.0
    %1708 = vmatprep.subr.mxu0 0.0
    %1709 = vmatpush1.msra.mxu0 0.0
    %1710 = vmatprep.subr.mxu0 0.0
    %1711 = vmatpush1.msra.mxu0 0.0
    %1712 = vmatprep.subr.mxu0 0.0
    %1713 = vmatpush1.msra.mxu0 0.0
    %1714 = vmatprep.subr.mxu0 0.0
    %1715 = vmatpush1.msra.mxu0 0.0
    %1716 = vmatprep.subr.mxu0 0.0
    %1717 = vmatpush1.msra.mxu0 0.0
    %1718 = vmatprep.subr.mxu0 0.0
    %1719 = vmatpush1.msra.mxu0 0.0
    %1720 = vmatprep.subr.mxu0 0.0
    %1721 = vmatpush1.msra.mxu0 0.0
    %1722 = vmatprep.subr.mxu0 0.0
    %1723 = vmatpush1.msra.mxu0 0.0
    %1724 = vmatprep.subr.mxu0 0.0
    %1725 = vmatpush1.msra.mxu0 0.0
    %1726 = vmatprep.subr.mxu0 0.0
    %1727 = vmatpush1.msra.mxu0 0.0
    %1728 = vmatprep.mubr.f32.mxu0 0.0
    %1729 = vmatmul.mubr.f32.gmra.mrb[0].mxu0 %v1662
    %v1730 = vpop.f32.mrb[0].mxu0
    %v1731 = vadd.f32 %v47, %v1730
    %v1732 = vpop.f32.mrb[0].mxu0
    %1733 = vdwg.mxu0
    %v1734 = vxor.u32 %v1731, 2147483648
    %v1735 = vmul.f32 %v1734, 1.442695
    %v1736 = vpow.pop %v1735
    %v1737 = vadd.f32 %v1736, 1.0
    %v1738 = vrcp.pop %v1737
    %v1739 = vmul.f32 1.0, %v1738
    %v1740 = vtanh.pop %v1731
    %v1741 = vmul.f32 %v1739, %v1437
    %1743 = vrot.lane.b32.xlu0 %v1740, 64
    %v1744 = vpop.permute.xlu0 %1743
    %v1746 = vmul.f32 %v1739, %v1744
    %1748 = vrot.lane.b32.xlu0 %v1746, 32
    %v1749 = vpop.permute.xlu0 %1748
    %v1751 = vadd.f32 %v1741, %v1749
    %v1752 = vtanh.pop %v1751
    %1754 = vrot.lane.b32.xlu0 %v1752, 64
    %v1755 = vpop.permute.xlu0 %1754
    %v1757 = vmul.f32 %v1739, %v1755
    %1759 = vrot.lane.b32.xlu0 %v1757, 32
    %v1760 = vpop.permute.xlu0 %1759
    %1763 = vrot.lane.b32.xlu0 %v1549, 64
    %v1764 = vpop.permute.xlu0 %1763
    %v1766 = vsel %vm186, %v1760, %v1764
    %v1768 = vsel %vm188, %v1766, 0
    %1770 = vmatprep.subr.mxu0 0.0
    %1771 = vmatpush1.msra.mxu0 %v49
    %1772 = vmatprep.subr.mxu0 0.0
    %1773 = vmatpush1.msra.mxu0 %v50
    %1774 = vmatprep.subr.mxu0 0.0
    %1775 = vmatpush1.msra.mxu0 %v51
    %1776 = vmatprep.subr.mxu0 0.0
    %1777 = vmatpush1.msra.mxu0 %v52
    %1778 = vmatprep.subr.mxu0 0.0
    %1779 = vmatpush1.msra.mxu0 %v53
    %1780 = vmatprep.subr.mxu0 0.0
    %1781 = vmatpush1.msra.mxu0 %v54
    %1782 = vmatprep.subr.mxu0 0.0
    %1783 = vmatpush1.msra.mxu0 %v55
    %1784 = vmatprep.subr.mxu0 0.0
    %1785 = vmatpush1.msra.mxu0 %v56
    %1786 = vmatprep.subr.mxu0 0.0
    %1787 = vmatpush1.msra.mxu0 0.0
    %1788 = vmatprep.subr.mxu0 0.0
    %1789 = vmatpush1.msra.mxu0 0.0
    %1790 = vmatprep.subr.mxu0 0.0
    %1791 = vmatpush1.msra.mxu0 0.0
    %1792 = vmatprep.subr.mxu0 0.0
    %1793 = vmatpush1.msra.mxu0 0.0
    %1794 = vmatprep.subr.mxu0 0.0
    %1795 = vmatpush1.msra.mxu0 0.0
    %1796 = vmatprep.subr.mxu0 0.0
    %1797 = vmatpush1.msra.mxu0 0.0
    %1798 = vmatprep.subr.mxu0 0.0
    %1799 = vmatpush1.msra.mxu0 0.0
    %1800 = vmatprep.subr.mxu0 0.0
    %1801 = vmatpush1.msra.mxu0 0.0
    %1802 = vmatprep.subr.mxu0 0.0
    %1803 = vmatpush1.msra.mxu0 0.0
    %1804 = vmatprep.subr.mxu0 0.0
    %1805 = vmatpush1.msra.mxu0 0.0
    %1806 = vmatprep.subr.mxu0 0.0
    %1807 = vmatpush1.msra.mxu0 0.0
    %1808 = vmatprep.subr.mxu0 0.0
    %1809 = vmatpush1.msra.mxu0 0.0
    %1810 = vmatprep.subr.mxu0 0.0
    %1811 = vmatpush1.msra.mxu0 0.0
    %1812 = vmatprep.subr.mxu0 0.0
    %1813 = vmatpush1.msra.mxu0 0.0
    %1814 = vmatprep.subr.mxu0 0.0
    %1815 = vmatpush1.msra.mxu0 0.0
    %1816 = vmatprep.subr.mxu0 0.0
    %1817 = vmatpush1.msra.mxu0 0.0
    %1818 = vmatprep.subr.mxu0 0.0
    %1819 = vmatpush1.msra.mxu0 0.0
    %1820 = vmatprep.subr.mxu0 0.0
    %1821 = vmatpush1.msra.mxu0 0.0
    %1822 = vmatprep.subr.mxu0 0.0
    %1823 = vmatpush1.msra.mxu0 0.0
    %1824 = vmatprep.subr.mxu0 0.0
    %1825 = vmatpush1.msra.mxu0 0.0
    %1826 = vmatprep.subr.mxu0 0.0
    %1827 = vmatpush1.msra.mxu0 0.0
    %1828 = vmatprep.subr.mxu0 0.0
    %1829 = vmatpush1.msra.mxu0 0.0
    %1830 = vmatprep.subr.mxu0 0.0
    %1831 = vmatpush1.msra.mxu0 0.0
    %1832 = vmatprep.subr.mxu0 0.0
    %1833 = vmatpush1.msra.mxu0 0.0
    %1834 = vmatprep.mubr.f32.mxu0 0.0
    %1835 = vmatmul.mubr.f32.gmra.mrb[0].mxu0 %v1768
    %v1836 = vpop.f32.mrb[0].mxu0
    %v1837 = vadd.f32 %v62, %v1836
    %v1838 = vpop.f32.mrb[0].mxu0
    %1839 = vdwg.mxu0
    %v1840 = vxor.u32 %v1837, 2147483648
    %v1841 = vmul.f32 %v1840, 1.442695
    %v1842 = vpow.pop %v1841
    %v1843 = vadd.f32 %v1842, 1.0
    %v1844 = vrcp.pop %v1843
    %v1845 = vmul.f32 1.0, %v1844
    %v1846 = vtanh.pop %v1837
    %v1847 = vmul.f32 %v1845, %v1543
    %1849 = vrot.lane.b32.xlu0 %v1846, 64
    %v1850 = vpop.permute.xlu0 %1849
    %v1852 = vmul.f32 %v1845, %v1850
    %1854 = vrot.lane.b32.xlu0 %v1852, 32
    %v1855 = vpop.permute.xlu0 %1854
    %v1857 = vadd.f32 %v1847, %v1855
    %v1858 = vtanh.pop %v1857
    %1860 = vrot.lane.b32.xlu0 %v1858, 64
    %v1861 = vpop.permute.xlu0 %1860
    %v1863 = vmul.f32 %v1845, %v1861
    %v1864 = vmax.f32 %v1863, 0.0
    %1866 = vrot.lane.b32.xlu0 %v1864, 32
    %v1867 = vpop.permute.xlu0 %1866
    %v1868 = vsel %vm186, %v1867, 0
    %1870 = vmatprep.subr.mxu0 0.0
    %1871 = vmatpush1.msra.mxu0 %v64
    %1872 = vmatprep.subr.mxu0 0.0
    %1873 = vmatpush1.msra.mxu0 %v65
    %1874 = vmatprep.subr.mxu0 0.0
    %1875 = vmatpush1.msra.mxu0 %v66
    %1876 = vmatprep.subr.mxu0 0.0
    %1877 = vmatpush1.msra.mxu0 %v67
    %1878 = vmatprep.subr.mxu0 0.0
    %1879 = vmatpush1.msra.mxu0 0.0
    %1880 = vmatprep.subr.mxu0 0.0
    %1881 = vmatpush1.msra.mxu0 0.0
    %1882 = vmatprep.subr.mxu0 0.0
    %1883 = vmatpush1.msra.mxu0 0.0
    %1884 = vmatprep.subr.mxu0 0.0
    %1885 = vmatpush1.msra.mxu0 0.0
    %1886 = vmatprep.subr.mxu0 0.0
    %1887 = vmatpush1.msra.mxu0 0.0
    %1888 = vmatprep.subr.mxu0 0.0
    %1889 = vmatpush1.msra.mxu0 0.0
    %1890 = vmatprep.subr.mxu0 0.0
    %1891 = vmatpush1.msra.mxu0 0.0
    %1892 = vmatprep.subr.mxu0 0.0
    %1893 = vmatpush1.msra.mxu0 0.0
    %1894 = vmatprep.subr.mxu0 0.0
    %1895 = vmatpush1.msra.mxu0 0.0
    %1896 = vmatprep.subr.mxu0 0.0
    %1897 = vmatpush1.msra.mxu0 0.0
    %1898 = vmatprep.subr.mxu0 0.0
    %1899 = vmatpush1.msra.mxu0 0.0
    %1900 = vmatprep.subr.mxu0 0.0
    %1901 = vmatpush1.msra.mxu0 0.0
    %1902 = vmatprep.subr.mxu0 0.0
    %1903 = vmatpush1.msra.mxu0 0.0
    %1904 = vmatprep.subr.mxu0 0.0
    %1905 = vmatpush1.msra.mxu0 0.0
    %1906 = vmatprep.subr.mxu0 0.0
    %1907 = vmatpush1.msra.mxu0 0.0
    %1908 = vmatprep.subr.mxu0 0.0
    %1909 = vmatpush1.msra.mxu0 0.0
    %1910 = vmatprep.subr.mxu0 0.0
    %1911 = vmatpush1.msra.mxu0 0.0
    %1912 = vmatprep.subr.mxu0 0.0
    %1913 = vmatpush1.msra.mxu0 0.0
    %1914 = vmatprep.subr.mxu0 0.0
    %1915 = vmatpush1.msra.mxu0 0.0
    %1916 = vmatprep.subr.mxu0 0.0
    %1917 = vmatpush1.msra.mxu0 0.0
    %1918 = vmatprep.subr.mxu0 0.0
    %1919 = vmatpush1.msra.mxu0 0.0
    %1920 = vmatprep.subr.mxu0 0.0
    %1921 = vmatpush1.msra.mxu0 0.0
    %1922 = vmatprep.subr.mxu0 0.0
    %1923 = vmatpush1.msra.mxu0 0.0
    %1924 = vmatprep.subr.mxu0 0.0
    %1925 = vmatpush1.msra.mxu0 0.0
    %1926 = vmatprep.subr.mxu0 0.0
    %1927 = vmatpush1.msra.mxu0 0.0
    %1928 = vmatprep.subr.mxu0 0.0
    %1929 = vmatpush1.msra.mxu0 0.0
    %1930 = vmatprep.subr.mxu0 0.0
    %1931 = vmatpush1.msra.mxu0 0.0
    %1932 = vmatprep.subr.mxu0 0.0
    %1933 = vmatpush1.msra.mxu0 0.0
    %1934 = vmatprep.mubr.f32.mxu0 0.0
    %1935 = vmatmul.mubr.f32.gmra.mrb[0].mxu0 %v1868
    %v1936 = vpop.f32.mrb[0].mxu0
    %v1937 = vadd.f32 %v73, %v1936
    %v1938 = vpop.f32.mrb[0].mxu0
    %1939 = vdwg.mxu0
    %v1940 = vmax.f32 %v1937, 0.0
    %v1941 = vand.u32 2147483647, %v1937
    %v1942 = vsub.f32 0.0, %v1941
    %v1943 = vmul.f32 %v1942, 1.442695
    %v1944 = vpow.pop %v1943
    %v1945 = vadd.f32 %v1944, 1.0
    %v1946 = vlog2.pop %v1945
    %v1947 = vmul.f32 %v1946, 0.6931472
    %v1948 = vmul.f32 -0.5, %v1944
    %v1949 = vadd.f32 %v1948, 1.0
    %v1950 = vmul.f32 %v1949, %v1944
    %v1951 = vand.u32 2147483647, %v1944
    %vm1952 = vcmp.lt.f32.partialorder %v1951, 0.0004427343
    %v1953 = vsel %vm1952, %v1950, %v1947
    %v1954 = vadd.f32 %v1940, %v1953
    %v1955 = vadd.f32 %v1954, 1e-06
    %1957 = vrot.lane.b32.xlu0 %v1937, 5
    %v1958 = vpop.permute.xlu0 %1957
    %vm1960 = vcmask 44072
    %1961 = vst.msk [vmem:[#allocation2] sm:$0xf] %vm1960, %v1958
    %1963 = vrot.lane.b32.xlu0 %v1955, 4
    %v1964 = vpop.permute.xlu0 %1963
    %1966 = vst.msk [vmem:[#allocation4] sm:$0xf] %vm1960, %v1964
    %v1967 = vld [vmem:[%s1] sm:$0xf]
    %s1968 = scalar_lea.vmem %s0, 24
    %v1969 = vld [vmem:[%s1968] sm:$0xf]
    %1971 = vrot.lane.b32.xlu0 %v1967, 127
    %v1972 = vpop.permute.xlu0 %1971
    %1974 = vrot.lane.b32.xlu0 %v1757, 37
    %v1975 = vpop.permute.xlu0 %1974
    %v1977 = vsel %vm76, %v1969, %v1972
    %v1978 = vsel %vm78, %v1977, %v1975
    %v1980 = vsel %vm80, %v1978, 0
    %1982 = vmatprep.subr.mxu0 0.0
    %1983 = vmatpush1.msra.mxu0 %v37
    %1984 = vmatprep.subr.mxu0 0.0
    %1985 = vmatpush1.msra.mxu0 %v38
    %1986 = vmatprep.subr.mxu0 0.0
    %1987 = vmatpush1.msra.mxu0 %v39
    %1988 = vmatprep.subr.mxu0 0.0
    %1989 = vmatpush1.msra.mxu0 %v40
    %1990 = vmatprep.subr.mxu0 0.0
    %1991 = vmatpush1.msra.mxu0 %v86
    %1992 = vmatprep.subr.mxu0 0.0
    %1993 = vmatpush1.msra.mxu0 0.0
    %1994 = vmatprep.subr.mxu0 0.0
    %1995 = vmatpush1.msra.mxu0 0.0
    %1996 = vmatprep.subr.mxu0 0.0
    %1997 = vmatpush1.msra.mxu0 0.0
    %1998 = vmatprep.subr.mxu0 0.0
    %1999 = vmatpush1.msra.mxu0 0.0
    %2000 = vmatprep.subr.mxu0 0.0
    %2001 = vmatpush1.msra.mxu0 0.0
    %2002 = vmatprep.subr.mxu0 0.0
    %2003 = vmatpush1.msra.mxu0 0.0
    %2004 = vmatprep.subr.mxu0 0.0
    %2005 = vmatpush1.msra.mxu0 0.0
    %2006 = vmatprep.subr.mxu0 0.0
    %2007 = vmatpush1.msra.mxu0 0.0
    %2008 = vmatprep.subr.mxu0 0.0
    %2009 = vmatpush1.msra.mxu0 0.0
    %2010 = vmatprep.subr.mxu0 0.0
    %2011 = vmatpush1.msra.mxu0 0.0
    %2012 = vmatprep.subr.mxu0 0.0
    %2013 = vmatpush1.msra.mxu0 0.0
    %2014 = vmatprep.subr.mxu0 0.0
    %2015 = vmatpush1.msra.mxu0 0.0
    %2016 = vmatprep.subr.mxu0 0.0
    %2017 = vmatpush1.msra.mxu0 0.0
    %2018 = vmatprep.subr.mxu0 0.0
    %2019 = vmatpush1.msra.mxu0 0.0
    %2020 = vmatprep.subr.mxu0 0.0
    %2021 = vmatpush1.msra.mxu0 0.0
    %2022 = vmatprep.subr.mxu0 0.0
    %2023 = vmatpush1.msra.mxu0 0.0
    %2024 = vmatprep.subr.mxu0 0.0
    %2025 = vmatpush1.msra.mxu0 0.0
    %2026 = vmatprep.subr.mxu0 0.0
    %2027 = vmatpush1.msra.mxu0 0.0
    %2028 = vmatprep.subr.mxu0 0.0
    %2029 = vmatpush1.msra.mxu0 0.0
    %2030 = vmatprep.subr.mxu0 0.0
    %2031 = vmatpush1.msra.mxu0 0.0
    %2032 = vmatprep.subr.mxu0 0.0
    %2033 = vmatpush1.msra.mxu0 0.0
    %2034 = vmatprep.subr.mxu0 0.0
    %2035 = vmatpush1.msra.mxu0 0.0
    %2036 = vmatprep.subr.mxu0 0.0
    %2037 = vmatpush1.msra.mxu0 0.0
    %2038 = vmatprep.subr.mxu0 0.0
    %2039 = vmatpush1.msra.mxu0 0.0
    %2040 = vmatprep.subr.mxu0 0.0
    %2041 = vmatpush1.msra.mxu0 0.0
    %2042 = vmatprep.subr.mxu0 0.0
    %2043 = vmatpush1.msra.mxu0 0.0
    %2044 = vmatprep.subr.mxu0 0.0
    %2045 = vmatpush1.msra.mxu0 0.0
    %2046 = vmatprep.mubr.f32.mxu0 0.0
    %2047 = vmatmul.mubr.f32.gmra.mrb[0].mxu0 %v1980
    %v2048 = vpop.f32.mrb[0].mxu0
    %v2049 = vadd.f32 %v47, %v2048
    %v2050 = vpop.f32.mrb[0].mxu0
    %2051 = vdwg.mxu0
    %v2052 = vxor.u32 %v2049, 2147483648
    %v2053 = vmul.f32 %v2052, 1.442695
    %v2054 = vpow.pop %v2053
    %v2055 = vadd.f32 %v2054, 1.0
    %v2056 = vrcp.pop %v2055
    %v2057 = vmul.f32 1.0, %v2056
    %v2058 = vtanh.pop %v2049
    %v2059 = vmul.f32 %v2057, %v1751
    %2061 = vrot.lane.b32.xlu0 %v2058, 64
    %v2062 = vpop.permute.xlu0 %2061
    %v2064 = vmul.f32 %v2057, %v2062
    %2066 = vrot.lane.b32.xlu0 %v2064, 32
    %v2067 = vpop.permute.xlu0 %2066
    %v2069 = vadd.f32 %v2059, %v2067
    %v2070 = vtanh.pop %v2069
    %2072 = vrot.lane.b32.xlu0 %v2070, 64
    %v2073 = vpop.permute.xlu0 %2072
    %v2075 = vmul.f32 %v2057, %v2073
    %2077 = vrot.lane.b32.xlu0 %v2075, 32
    %v2078 = vpop.permute.xlu0 %2077
    %2081 = vrot.lane.b32.xlu0 %v1863, 64
    %v2082 = vpop.permute.xlu0 %2081
    %v2084 = vsel %vm186, %v2078, %v2082
    %v2086 = vsel %vm188, %v2084, 0
    %2088 = vmatprep.subr.mxu0 0.0
    %2089 = vmatpush1.msra.mxu0 %v49
    %2090 = vmatprep.subr.mxu0 0.0
    %2091 = vmatpush1.msra.mxu0 %v50
    %2092 = vmatprep.subr.mxu0 0.0
    %2093 = vmatpush1.msra.mxu0 %v51
    %2094 = vmatprep.subr.mxu0 0.0
    %2095 = vmatpush1.msra.mxu0 %v52
    %2096 = vmatprep.subr.mxu0 0.0
    %2097 = vmatpush1.msra.mxu0 %v53
    %2098 = vmatprep.subr.mxu0 0.0
    %2099 = vmatpush1.msra.mxu0 %v54
    %2100 = vmatprep.subr.mxu0 0.0
    %2101 = vmatpush1.msra.mxu0 %v55
    %2102 = vmatprep.subr.mxu0 0.0
    %2103 = vmatpush1.msra.mxu0 %v56
    %2104 = vmatprep.subr.mxu0 0.0
    %2105 = vmatpush1.msra.mxu0 0.0
    %2106 = vmatprep.subr.mxu0 0.0
    %2107 = vmatpush1.msra.mxu0 0.0
    %2108 = vmatprep.subr.mxu0 0.0
    %2109 = vmatpush1.msra.mxu0 0.0
    %2110 = vmatprep.subr.mxu0 0.0
    %2111 = vmatpush1.msra.mxu0 0.0
    %2112 = vmatprep.subr.mxu0 0.0
    %2113 = vmatpush1.msra.mxu0 0.0
    %2114 = vmatprep.subr.mxu0 0.0
    %2115 = vmatpush1.msra.mxu0 0.0
    %2116 = vmatprep.subr.mxu0 0.0
    %2117 = vmatpush1.msra.mxu0 0.0
    %2118 = vmatprep.subr.mxu0 0.0
    %2119 = vmatpush1.msra.mxu0 0.0
    %2120 = vmatprep.subr.mxu0 0.0
    %2121 = vmatpush1.msra.mxu0 0.0
    %2122 = vmatprep.subr.mxu0 0.0
    %2123 = vmatpush1.msra.mxu0 0.0
    %2124 = vmatprep.subr.mxu0 0.0
    %2125 = vmatpush1.msra.mxu0 0.0
    %2126 = vmatprep.subr.mxu0 0.0
    %2127 = vmatpush1.msra.mxu0 0.0
    %2128 = vmatprep.subr.mxu0 0.0
    %2129 = vmatpush1.msra.mxu0 0.0
    %2130 = vmatprep.subr.mxu0 0.0
    %2131 = vmatpush1.msra.mxu0 0.0
    %2132 = vmatprep.subr.mxu0 0.0
    %2133 = vmatpush1.msra.mxu0 0.0
    %2134 = vmatprep.subr.mxu0 0.0
    %2135 = vmatpush1.msra.mxu0 0.0
    %2136 = vmatprep.subr.mxu0 0.0
    %2137 = vmatpush1.msra.mxu0 0.0
    %2138 = vmatprep.subr.mxu0 0.0
    %2139 = vmatpush1.msra.mxu0 0.0
    %2140 = vmatprep.subr.mxu0 0.0
    %2141 = vmatpush1.msra.mxu0 0.0
    %2142 = vmatprep.subr.mxu0 0.0
    %2143 = vmatpush1.msra.mxu0 0.0
    %2144 = vmatprep.subr.mxu0 0.0
    %2145 = vmatpush1.msra.mxu0 0.0
    %2146 = vmatprep.subr.mxu0 0.0
    %2147 = vmatpush1.msra.mxu0 0.0
    %2148 = vmatprep.subr.mxu0 0.0
    %2149 = vmatpush1.msra.mxu0 0.0
    %2150 = vmatprep.subr.mxu0 0.0
    %2151 = vmatpush1.msra.mxu0 0.0
    %2152 = vmatprep.mubr.f32.mxu0 0.0
    %2153 = vmatmul.mubr.f32.gmra.mrb[0].mxu0 %v2086
    %v2154 = vpop.f32.mrb[0].mxu0
    %v2155 = vadd.f32 %v62, %v2154
    %v2156 = vpop.f32.mrb[0].mxu0
    %2157 = vdwg.mxu0
    %v2158 = vxor.u32 %v2155, 2147483648
    %v2159 = vmul.f32 %v2158, 1.442695
    %v2160 = vpow.pop %v2159
    %v2161 = vadd.f32 %v2160, 1.0
    %v2162 = vrcp.pop %v2161
    %v2163 = vmul.f32 1.0, %v2162
    %v2164 = vtanh.pop %v2155
    %v2165 = vmul.f32 %v2163, %v1857
    %2167 = vrot.lane.b32.xlu0 %v2164, 64
    %v2168 = vpop.permute.xlu0 %2167
    %v2170 = vmul.f32 %v2163, %v2168
    %2172 = vrot.lane.b32.xlu0 %v2170, 32
    %v2173 = vpop.permute.xlu0 %2172
    %v2175 = vadd.f32 %v2165, %v2173
    %v2176 = vtanh.pop %v2175
    %2178 = vrot.lane.b32.xlu0 %v2176, 64
    %v2179 = vpop.permute.xlu0 %2178
    %v2181 = vmul.f32 %v2163, %v2179
    %v2182 = vmax.f32 %v2181, 0.0
    %2184 = vrot.lane.b32.xlu0 %v2182, 32
    %v2185 = vpop.permute.xlu0 %2184
    %v2186 = vsel %vm186, %v2185, 0
    %2188 = vmatprep.subr.mxu0 0.0
    %2189 = vmatpush1.msra.mxu0 %v64
    %2190 = vmatprep.subr.mxu0 0.0
    %2191 = vmatpush1.msra.mxu0 %v65
    %2192 = vmatprep.subr.mxu0 0.0
    %2193 = vmatpush1.msra.mxu0 %v66
    %2194 = vmatprep.subr.mxu0 0.0
    %2195 = vmatpush1.msra.mxu0 %v67
    %2196 = vmatprep.subr.mxu0 0.0
    %2197 = vmatpush1.msra.mxu0 0.0
    %2198 = vmatprep.subr.mxu0 0.0
    %2199 = vmatpush1.msra.mxu0 0.0
    %2200 = vmatprep.subr.mxu0 0.0
    %2201 = vmatpush1.msra.mxu0 0.0
    %2202 = vmatprep.subr.mxu0 0.0
    %2203 = vmatpush1.msra.mxu0 0.0
    %2204 = vmatprep.subr.mxu0 0.0
    %2205 = vmatpush1.msra.mxu0 0.0
    %2206 = vmatprep.subr.mxu0 0.0
    %2207 = vmatpush1.msra.mxu0 0.0
    %2208 = vmatprep.subr.mxu0 0.0
    %2209 = vmatpush1.msra.mxu0 0.0
    %2210 = vmatprep.subr.mxu0 0.0
    %2211 = vmatpush1.msra.mxu0 0.0
    %2212 = vmatprep.subr.mxu0 0.0
    %2213 = vmatpush1.msra.mxu0 0.0
    %2214 = vmatprep.subr.mxu0 0.0
    %2215 = vmatpush1.msra.mxu0 0.0
    %2216 = vmatprep.subr.mxu0 0.0
    %2217 = vmatpush1.msra.mxu0 0.0
    %2218 = vmatprep.subr.mxu0 0.0
    %2219 = vmatpush1.msra.mxu0 0.0
    %2220 = vmatprep.subr.mxu0 0.0
    %2221 = vmatpush1.msra.mxu0 0.0
    %2222 = vmatprep.subr.mxu0 0.0
    %2223 = vmatpush1.msra.mxu0 0.0
    %2224 = vmatprep.subr.mxu0 0.0
    %2225 = vmatpush1.msra.mxu0 0.0
    %2226 = vmatprep.subr.mxu0 0.0
    %2227 = vmatpush1.msra.mxu0 0.0
    %2228 = vmatprep.subr.mxu0 0.0
    %2229 = vmatpush1.msra.mxu0 0.0
    %2230 = vmatprep.subr.mxu0 0.0
    %2231 = vmatpush1.msra.mxu0 0.0
    %2232 = vmatprep.subr.mxu0 0.0
    %2233 = vmatpush1.msra.mxu0 0.0
    %2234 = vmatprep.subr.mxu0 0.0
    %2235 = vmatpush1.msra.mxu0 0.0
    %2236 = vmatprep.subr.mxu0 0.0
    %2237 = vmatpush1.msra.mxu0 0.0
    %2238 = vmatprep.subr.mxu0 0.0
    %2239 = vmatpush1.msra.mxu0 0.0
    %2240 = vmatprep.subr.mxu0 0.0
    %2241 = vmatpush1.msra.mxu0 0.0
    %2242 = vmatprep.subr.mxu0 0.0
    %2243 = vmatpush1.msra.mxu0 0.0
    %2244 = vmatprep.subr.mxu0 0.0
    %2245 = vmatpush1.msra.mxu0 0.0
    %2246 = vmatprep.subr.mxu0 0.0
    %2247 = vmatpush1.msra.mxu0 0.0
    %2248 = vmatprep.subr.mxu0 0.0
    %2249 = vmatpush1.msra.mxu0 0.0
    %2250 = vmatprep.subr.mxu0 0.0
    %2251 = vmatpush1.msra.mxu0 0.0
    %2252 = vmatprep.mubr.f32.mxu0 0.0
    %2253 = vmatmul.mubr.f32.gmra.mrb[0].mxu0 %v2186
    %v2254 = vpop.f32.mrb[0].mxu0
    %v2255 = vadd.f32 %v73, %v2254
    %v2256 = vpop.f32.mrb[0].mxu0
    %2257 = vdwg.mxu0
    %v2258 = vmax.f32 %v2255, 0.0
    %v2259 = vand.u32 2147483647, %v2255
    %v2260 = vsub.f32 0.0, %v2259
    %v2261 = vmul.f32 %v2260, 1.442695
    %v2262 = vpow.pop %v2261
    %v2263 = vadd.f32 %v2262, 1.0
    %v2264 = vlog2.pop %v2263
    %v2265 = vmul.f32 %v2264, 0.6931472
    %v2266 = vmul.f32 -0.5, %v2262
    %v2267 = vadd.f32 %v2266, 1.0
    %v2268 = vmul.f32 %v2267, %v2262
    %v2269 = vand.u32 2147483647, %v2262
    %vm2270 = vcmp.lt.f32.partialorder %v2269, 0.0004427343
    %v2271 = vsel %vm2270, %v2268, %v2265
    %v2272 = vadd.f32 %v2258, %v2271
    %v2273 = vadd.f32 %v2272, 1e-06
    %2275 = vrot.lane.b32.xlu0 %v2255, 6
    %v2276 = vpop.permute.xlu0 %2275
    %vm2278 = vcmask 52272
    %2279 = vst.msk [vmem:[#allocation2] sm:$0xf] %vm2278, %v2276
    %2281 = vrot.lane.b32.xlu0 %v2273, 5
    %v2282 = vpop.permute.xlu0 %2281
    %2284 = vst.msk [vmem:[#allocation4] sm:$0xf] %vm2278, %v2282
    %v2285 = vld [vmem:[%s1] sm:$0xf]
    %s2286 = scalar_lea.vmem %s0, 28
    %v2287 = vld [vmem:[%s2286] sm:$0xf]
    %2289 = vrot.lane.b32.xlu0 %v2285, 126
    %v2290 = vpop.permute.xlu0 %2289
    %2292 = vrot.lane.b32.xlu0 %v2075, 37
    %v2293 = vpop.permute.xlu0 %2292
    %v2295 = vsel %vm76, %v2287, %v2290
    %v2296 = vsel %vm78, %v2295, %v2293
    %v2298 = vsel %vm80, %v2296, 0
    %2300 = vmatprep.subr.mxu0 0.0
    %2301 = vmatpush1.msra.mxu0 %v37
    %2302 = vmatprep.subr.mxu0 0.0
    %2303 = vmatpush1.msra.mxu0 %v38
    %2304 = vmatprep.subr.mxu0 0.0
    %2305 = vmatpush1.msra.mxu0 %v39
    %2306 = vmatprep.subr.mxu0 0.0
    %2307 = vmatpush1.msra.mxu0 %v40
    %2308 = vmatprep.subr.mxu0 0.0
    %2309 = vmatpush1.msra.mxu0 %v86
    %2310 = vmatprep.subr.mxu0 0.0
    %2311 = vmatpush1.msra.mxu0 0.0
    %2312 = vmatprep.subr.mxu0 0.0
    %2313 = vmatpush1.msra.mxu0 0.0
    %2314 = vmatprep.subr.mxu0 0.0
    %2315 = vmatpush1.msra.mxu0 0.0
    %2316 = vmatprep.subr.mxu0 0.0
    %2317 = vmatpush1.msra.mxu0 0.0
    %2318 = vmatprep.subr.mxu0 0.0
    %2319 = vmatpush1.msra.mxu0 0.0
    %2320 = vmatprep.subr.mxu0 0.0
    %2321 = vmatpush1.msra.mxu0 0.0
    %2322 = vmatprep.subr.mxu0 0.0
    %2323 = vmatpush1.msra.mxu0 0.0
    %2324 = vmatprep.subr.mxu0 0.0
    %2325 = vmatpush1.msra.mxu0 0.0
    %2326 = vmatprep.subr.mxu0 0.0
    %2327 = vmatpush1.msra.mxu0 0.0
    %2328 = vmatprep.subr.mxu0 0.0
    %2329 = vmatpush1.msra.mxu0 0.0
    %2330 = vmatprep.subr.mxu0 0.0
    %2331 = vmatpush1.msra.mxu0 0.0
    %2332 = vmatprep.subr.mxu0 0.0
    %2333 = vmatpush1.msra.mxu0 0.0
    %2334 = vmatprep.subr.mxu0 0.0
    %2335 = vmatpush1.msra.mxu0 0.0
    %2336 = vmatprep.subr.mxu0 0.0
    %2337 = vmatpush1.msra.mxu0 0.0
    %2338 = vmatprep.subr.mxu0 0.0
    %2339 = vmatpush1.msra.mxu0 0.0
    %2340 = vmatprep.subr.mxu0 0.0
    %2341 = vmatpush1.msra.mxu0 0.0
    %2342 = vmatprep.subr.mxu0 0.0
    %2343 = vmatpush1.msra.mxu0 0.0
    %2344 = vmatprep.subr.mxu0 0.0
    %2345 = vmatpush1.msra.mxu0 0.0
    %2346 = vmatprep.subr.mxu0 0.0
    %2347 = vmatpush1.msra.mxu0 0.0
    %2348 = vmatprep.subr.mxu0 0.0
    %2349 = vmatpush1.msra.mxu0 0.0
    %2350 = vmatprep.subr.mxu0 0.0
    %2351 = vmatpush1.msra.mxu0 0.0
    %2352 = vmatprep.subr.mxu0 0.0
    %2353 = vmatpush1.msra.mxu0 0.0
    %2354 = vmatprep.subr.mxu0 0.0
    %2355 = vmatpush1.msra.mxu0 0.0
    %2356 = vmatprep.subr.mxu0 0.0
    %2357 = vmatpush1.msra.mxu0 0.0
    %2358 = vmatprep.subr.mxu0 0.0
    %2359 = vmatpush1.msra.mxu0 0.0
    %2360 = vmatprep.subr.mxu0 0.0
    %2361 = vmatpush1.msra.mxu0 0.0
    %2362 = vmatprep.subr.mxu0 0.0
    %2363 = vmatpush1.msra.mxu0 0.0
    %2364 = vmatprep.mubr.f32.mxu0 0.0
    %2365 = vmatmul.mubr.f32.gmra.mrb[0].mxu0 %v2298
    %v2366 = vpop.f32.mrb[0].mxu0
    %v2367 = vadd.f32 %v47, %v2366
    %v2368 = vpop.f32.mrb[0].mxu0
    %2369 = vdwg.mxu0
    %v2370 = vxor.u32 %v2367, 2147483648
    %v2371 = vmul.f32 %v2370, 1.442695
    %v2372 = vpow.pop %v2371
    %v2373 = vadd.f32 %v2372, 1.0
    %v2374 = vrcp.pop %v2373
    %v2375 = vmul.f32 1.0, %v2374
    %v2376 = vtanh.pop %v2367
    %v2377 = vmul.f32 %v2375, %v2069
    %2379 = vrot.lane.b32.xlu0 %v2376, 64
    %v2380 = vpop.permute.xlu0 %2379
    %v2382 = vmul.f32 %v2375, %v2380
    %2384 = vrot.lane.b32.xlu0 %v2382, 32
    %v2385 = vpop.permute.xlu0 %2384
    %v2387 = vadd.f32 %v2377, %v2385
    %v2388 = vtanh.pop %v2387
    %2390 = vrot.lane.b32.xlu0 %v2388, 64
    %v2391 = vpop.permute.xlu0 %2390
    %v2393 = vmul.f32 %v2375, %v2391
    %2395 = vrot.lane.b32.xlu0 %v2393, 32
    %v2396 = vpop.permute.xlu0 %2395
    %2399 = vrot.lane.b32.xlu0 %v2181, 64
    %v2400 = vpop.permute.xlu0 %2399
    %v2402 = vsel %vm186, %v2396, %v2400
    %v2404 = vsel %vm188, %v2402, 0
    %2406 = vmatprep.subr.mxu0 0.0
    %2407 = vmatpush1.msra.mxu0 %v49
    %2408 = vmatprep.subr.mxu0 0.0
    %2409 = vmatpush1.msra.mxu0 %v50
    %2410 = vmatprep.subr.mxu0 0.0
    %2411 = vmatpush1.msra.mxu0 %v51
    %2412 = vmatprep.subr.mxu0 0.0
    %2413 = vmatpush1.msra.mxu0 %v52
    %2414 = vmatprep.subr.mxu0 0.0
    %2415 = vmatpush1.msra.mxu0 %v53
    %2416 = vmatprep.subr.mxu0 0.0
    %2417 = vmatpush1.msra.mxu0 %v54
    %2418 = vmatprep.subr.mxu0 0.0
    %2419 = vmatpush1.msra.mxu0 %v55
    %2420 = vmatprep.subr.mxu0 0.0
    %2421 = vmatpush1.msra.mxu0 %v56
    %2422 = vmatprep.subr.mxu0 0.0
    %2423 = vmatpush1.msra.mxu0 0.0
    %2424 = vmatprep.subr.mxu0 0.0
    %2425 = vmatpush1.msra.mxu0 0.0
    %2426 = vmatprep.subr.mxu0 0.0
    %2427 = vmatpush1.msra.mxu0 0.0
    %2428 = vmatprep.subr.mxu0 0.0
    %2429 = vmatpush1.msra.mxu0 0.0
    %2430 = vmatprep.subr.mxu0 0.0
    %2431 = vmatpush1.msra.mxu0 0.0
    %2432 = vmatprep.subr.mxu0 0.0
    %2433 = vmatpush1.msra.mxu0 0.0
    %2434 = vmatprep.subr.mxu0 0.0
    %2435 = vmatpush1.msra.mxu0 0.0
    %2436 = vmatprep.subr.mxu0 0.0
    %2437 = vmatpush1.msra.mxu0 0.0
    %2438 = vmatprep.subr.mxu0 0.0
    %2439 = vmatpush1.msra.mxu0 0.0
    %2440 = vmatprep.subr.mxu0 0.0
    %2441 = vmatpush1.msra.mxu0 0.0
    %2442 = vmatprep.subr.mxu0 0.0
    %2443 = vmatpush1.msra.mxu0 0.0
    %2444 = vmatprep.subr.mxu0 0.0
    %2445 = vmatpush1.msra.mxu0 0.0
    %2446 = vmatprep.subr.mxu0 0.0
    %2447 = vmatpush1.msra.mxu0 0.0
    %2448 = vmatprep.subr.mxu0 0.0
    %2449 = vmatpush1.msra.mxu0 0.0
    %2450 = vmatprep.subr.mxu0 0.0
    %2451 = vmatpush1.msra.mxu0 0.0
    %2452 = vmatprep.subr.mxu0 0.0
    %2453 = vmatpush1.msra.mxu0 0.0
    %2454 = vmatprep.subr.mxu0 0.0
    %2455 = vmatpush1.msra.mxu0 0.0
    %2456 = vmatprep.subr.mxu0 0.0
    %2457 = vmatpush1.msra.mxu0 0.0
    %2458 = vmatprep.subr.mxu0 0.0
    %2459 = vmatpush1.msra.mxu0 0.0
    %2460 = vmatprep.subr.mxu0 0.0
    %2461 = vmatpush1.msra.mxu0 0.0
    %2462 = vmatprep.subr.mxu0 0.0
    %2463 = vmatpush1.msra.mxu0 0.0
    %2464 = vmatprep.subr.mxu0 0.0
    %2465 = vmatpush1.msra.mxu0 0.0
    %2466 = vmatprep.subr.mxu0 0.0
    %2467 = vmatpush1.msra.mxu0 0.0
    %2468 = vmatprep.subr.mxu0 0.0
    %2469 = vmatpush1.msra.mxu0 0.0
    %2470 = vmatprep.mubr.f32.mxu0 0.0
    %2471 = vmatmul.mubr.f32.gmra.mrb[0].mxu0 %v2404
    %v2472 = vpop.f32.mrb[0].mxu0
    %v2473 = vadd.f32 %v62, %v2472
    %v2474 = vpop.f32.mrb[0].mxu0
    %2475 = vdwg.mxu0
    %v2476 = vxor.u32 %v2473, 2147483648
    %v2477 = vmul.f32 %v2476, 1.442695
    %v2478 = vpow.pop %v2477
    %v2479 = vadd.f32 %v2478, 1.0
    %v2480 = vrcp.pop %v2479
    %v2481 = vmul.f32 1.0, %v2480
    %v2482 = vtanh.pop %v2473
    %v2483 = vmul.f32 %v2481, %v2175
    %2485 = vrot.lane.b32.xlu0 %v2482, 64
    %v2486 = vpop.permute.xlu0 %2485
    %v2488 = vmul.f32 %v2481, %v2486
    %2490 = vrot.lane.b32.xlu0 %v2488, 32
    %v2491 = vpop.permute.xlu0 %2490
    %v2493 = vadd.f32 %v2483, %v2491
    %v2494 = vtanh.pop %v2493
    %2496 = vrot.lane.b32.xlu0 %v2494, 64
    %v2497 = vpop.permute.xlu0 %2496
    %v2499 = vmul.f32 %v2481, %v2497
    %v2500 = vmax.f32 %v2499, 0.0
    %2502 = vrot.lane.b32.xlu0 %v2500, 32
    %v2503 = vpop.permute.xlu0 %2502
    %v2504 = vsel %vm186, %v2503, 0
    %2506 = vmatprep.subr.mxu0 0.0
    %2507 = vmatpush1.msra.mxu0 %v64
    %2508 = vmatprep.subr.mxu0 0.0
    %2509 = vmatpush1.msra.mxu0 %v65
    %2510 = vmatprep.subr.mxu0 0.0
    %2511 = vmatpush1.msra.mxu0 %v66
    %2512 = vmatprep.subr.mxu0 0.0
    %2513 = vmatpush1.msra.mxu0 %v67
    %2514 = vmatprep.subr.mxu0 0.0
    %2515 = vmatpush1.msra.mxu0 0.0
    %2516 = vmatprep.subr.mxu0 0.0
    %2517 = vmatpush1.msra.mxu0 0.0
    %2518 = vmatprep.subr.mxu0 0.0
    %2519 = vmatpush1.msra.mxu0 0.0
    %2520 = vmatprep.subr.mxu0 0.0
    %2521 = vmatpush1.msra.mxu0 0.0
    %2522 = vmatprep.subr.mxu0 0.0
    %2523 = vmatpush1.msra.mxu0 0.0
    %2524 = vmatprep.subr.mxu0 0.0
    %2525 = vmatpush1.msra.mxu0 0.0
    %2526 = vmatprep.subr.mxu0 0.0
    %2527 = vmatpush1.msra.mxu0 0.0
    %2528 = vmatprep.subr.mxu0 0.0
    %2529 = vmatpush1.msra.mxu0 0.0
    %2530 = vmatprep.subr.mxu0 0.0
    %2531 = vmatpush1.msra.mxu0 0.0
    %2532 = vmatprep.subr.mxu0 0.0
    %2533 = vmatpush1.msra.mxu0 0.0
    %2534 = vmatprep.subr.mxu0 0.0
    %2535 = vmatpush1.msra.mxu0 0.0
    %2536 = vmatprep.subr.mxu0 0.0
    %2537 = vmatpush1.msra.mxu0 0.0
    %2538 = vmatprep.subr.mxu0 0.0
    %2539 = vmatpush1.msra.mxu0 0.0
    %2540 = vmatprep.subr.mxu0 0.0
    %2541 = vmatpush1.msra.mxu0 0.0
    %2542 = vmatprep.subr.mxu0 0.0
    %2543 = vmatpush1.msra.mxu0 0.0
    %2544 = vmatprep.subr.mxu0 0.0
    %2545 = vmatpush1.msra.mxu0 0.0
    %2546 = vmatprep.subr.mxu0 0.0
    %2547 = vmatpush1.msra.mxu0 0.0
    %2548 = vmatprep.subr.mxu0 0.0
    %2549 = vmatpush1.msra.mxu0 0.0
    %2550 = vmatprep.subr.mxu0 0.0
    %2551 = vmatpush1.msra.mxu0 0.0
    %2552 = vmatprep.subr.mxu0 0.0
    %2553 = vmatpush1.msra.mxu0 0.0
    %2554 = vmatprep.subr.mxu0 0.0
    %2555 = vmatpush1.msra.mxu0 0.0
    %2556 = vmatprep.subr.mxu0 0.0
    %2557 = vmatpush1.msra.mxu0 0.0
    %2558 = vmatprep.subr.mxu0 0.0
    %2559 = vmatpush1.msra.mxu0 0.0
    %2560 = vmatprep.subr.mxu0 0.0
    %2561 = vmatpush1.msra.mxu0 0.0
    %2562 = vmatprep.subr.mxu0 0.0
    %2563 = vmatpush1.msra.mxu0 0.0
    %2564 = vmatprep.subr.mxu0 0.0
    %2565 = vmatpush1.msra.mxu0 0.0
    %2566 = vmatprep.subr.mxu0 0.0
    %2567 = vmatpush1.msra.mxu0 0.0
    %2568 = vmatprep.subr.mxu0 0.0
    %2569 = vmatpush1.msra.mxu0 0.0
    %2570 = vmatprep.mubr.f32.mxu0 0.0
    %2571 = vmatmul.mubr.f32.gmra.mrb[0].mxu0 %v2504
    %v2572 = vpop.f32.mrb[0].mxu0
    %v2573 = vadd.f32 %v73, %v2572
    %v2574 = vpop.f32.mrb[0].mxu0
    %2575 = vdwg.mxu0
    %v2576 = vmax.f32 %v2573, 0.0
    %v2577 = vand.u32 2147483647, %v2573
    %v2578 = vsub.f32 0.0, %v2577
    %v2579 = vmul.f32 %v2578, 1.442695
    %v2580 = vpow.pop %v2579
    %v2581 = vadd.f32 %v2580, 1.0
    %v2582 = vlog2.pop %v2581
    %v2583 = vmul.f32 %v2582, 0.6931472
    %v2584 = vmul.f32 -0.5, %v2580
    %v2585 = vadd.f32 %v2584, 1.0
    %v2586 = vmul.f32 %v2585, %v2580
    %v2587 = vand.u32 2147483647, %v2580
    %vm2588 = vcmp.lt.f32.partialorder %v2587, 0.0004427343
    %v2589 = vsel %vm2588, %v2586, %v2583
    %v2590 = vadd.f32 %v2576, %v2589
    %v2591 = vadd.f32 %v2590, 1e-06
    %2593 = vrot.lane.b32.xlu0 %v2573, 7
    %v2594 = vpop.permute.xlu0 %2593
    %vm2596 = vcmask 60472
    %2597 = vst.msk [vmem:[#allocation2] sm:$0xf] %vm2596, %v2594
    %2599 = vrot.lane.b32.xlu0 %v2591, 6
    %v2600 = vpop.permute.xlu0 %2599
    %2602 = vst.msk [vmem:[#allocation4] sm:$0xf] %vm2596, %v2600
    %v2603 = vld [vmem:[%s1] sm:$0xf]
    %s2604 = scalar_lea.vmem %s0, 32
    %v2605 = vld [vmem:[%s2604] sm:$0xf]
    %2607 = vrot.lane.b32.xlu0 %v2603, 125
    %v2608 = vpop.permute.xlu0 %2607
    %2610 = vrot.lane.b32.xlu0 %v2393, 37
    %v2611 = vpop.permute.xlu0 %2610
    %v2613 = vsel %vm76, %v2605, %v2608
    %v2614 = vsel %vm78, %v2613, %v2611
    %v2616 = vsel %vm80, %v2614, 0
    %2618 = vmatprep.subr.mxu0 0.0
    %2619 = vmatpush1.msra.mxu0 %v37
    %2620 = vmatprep.subr.mxu0 0.0
    %2621 = vmatpush1.msra.mxu0 %v38
    %2622 = vmatprep.subr.mxu0 0.0
    %2623 = vmatpush1.msra.mxu0 %v39
    %2624 = vmatprep.subr.mxu0 0.0
    %2625 = vmatpush1.msra.mxu0 %v40
    %2626 = vmatprep.subr.mxu0 0.0
    %2627 = vmatpush1.msra.mxu0 %v86
    %2628 = vmatprep.subr.mxu0 0.0
    %2629 = vmatpush1.msra.mxu0 0.0
    %2630 = vmatprep.subr.mxu0 0.0
    %2631 = vmatpush1.msra.mxu0 0.0
    %2632 = vmatprep.subr.mxu0 0.0
    %2633 = vmatpush1.msra.mxu0 0.0
    %2634 = vmatprep.subr.mxu0 0.0
    %2635 = vmatpush1.msra.mxu0 0.0
    %2636 = vmatprep.subr.mxu0 0.0
    %2637 = vmatpush1.msra.mxu0 0.0
    %2638 = vmatprep.subr.mxu0 0.0
    %2639 = vmatpush1.msra.mxu0 0.0
    %2640 = vmatprep.subr.mxu0 0.0
    %2641 = vmatpush1.msra.mxu0 0.0
    %2642 = vmatprep.subr.mxu0 0.0
    %2643 = vmatpush1.msra.mxu0 0.0
    %2644 = vmatprep.subr.mxu0 0.0
    %2645 = vmatpush1.msra.mxu0 0.0
    %2646 = vmatprep.subr.mxu0 0.0
    %2647 = vmatpush1.msra.mxu0 0.0
    %2648 = vmatprep.subr.mxu0 0.0
    %2649 = vmatpush1.msra.mxu0 0.0
    %2650 = vmatprep.subr.mxu0 0.0
    %2651 = vmatpush1.msra.mxu0 0.0
    %2652 = vmatprep.subr.mxu0 0.0
    %2653 = vmatpush1.msra.mxu0 0.0
    %2654 = vmatprep.subr.mxu0 0.0
    %2655 = vmatpush1.msra.mxu0 0.0
    %2656 = vmatprep.subr.mxu0 0.0
    %2657 = vmatpush1.msra.mxu0 0.0
    %2658 = vmatprep.subr.mxu0 0.0
    %2659 = vmatpush1.msra.mxu0 0.0
    %2660 = vmatprep.subr.mxu0 0.0
    %2661 = vmatpush1.msra.mxu0 0.0
    %2662 = vmatprep.subr.mxu0 0.0
    %2663 = vmatpush1.msra.mxu0 0.0
    %2664 = vmatprep.subr.mxu0 0.0
    %2665 = vmatpush1.msra.mxu0 0.0
    %2666 = vmatprep.subr.mxu0 0.0
    %2667 = vmatpush1.msra.mxu0 0.0
    %2668 = vmatprep.subr.mxu0 0.0
    %2669 = vmatpush1.msra.mxu0 0.0
    %2670 = vmatprep.subr.mxu0 0.0
    %2671 = vmatpush1.msra.mxu0 0.0
    %2672 = vmatprep.subr.mxu0 0.0
    %2673 = vmatpush1.msra.mxu0 0.0
    %2674 = vmatprep.subr.mxu0 0.0
    %2675 = vmatpush1.msra.mxu0 0.0
    %2676 = vmatprep.subr.mxu0 0.0
    %2677 = vmatpush1.msra.mxu0 0.0
    %2678 = vmatprep.subr.mxu0 0.0
    %2679 = vmatpush1.msra.mxu0 0.0
    %2680 = vmatprep.subr.mxu0 0.0
    %2681 = vmatpush1.msra.mxu0 0.0
    %2682 = vmatprep.mubr.f32.mxu0 0.0
    %2683 = vmatmul.mubr.f32.gmra.mrb[0].mxu0 %v2616
    %v2684 = vpop.f32.mrb[0].mxu0
    %v2685 = vadd.f32 %v47, %v2684
    %v2686 = vpop.f32.mrb[0].mxu0
    %2687 = vdwg.mxu0
    %v2688 = vxor.u32 %v2685, 2147483648
    %v2689 = vmul.f32 %v2688, 1.442695
    %v2690 = vpow.pop %v2689
    %v2691 = vadd.f32 %v2690, 1.0
    %v2692 = vrcp.pop %v2691
    %v2693 = vmul.f32 1.0, %v2692
    %v2694 = vtanh.pop %v2685
    %v2695 = vmul.f32 %v2693, %v2387
    %2697 = vrot.lane.b32.xlu0 %v2694, 64
    %v2698 = vpop.permute.xlu0 %2697
    %v2700 = vmul.f32 %v2693, %v2698
    %2702 = vrot.lane.b32.xlu0 %v2700, 32
    %v2703 = vpop.permute.xlu0 %2702
    %v2705 = vadd.f32 %v2695, %v2703
    %v2706 = vtanh.pop %v2705
    %2708 = vrot.lane.b32.xlu0 %v2706, 64
    %v2709 = vpop.permute.xlu0 %2708
    %v2711 = vmul.f32 %v2693, %v2709
    %2713 = vrot.lane.b32.xlu0 %v2711, 32
    %v2714 = vpop.permute.xlu0 %2713
    %2717 = vrot.lane.b32.xlu0 %v2499, 64
    %v2718 = vpop.permute.xlu0 %2717
    %v2720 = vsel %vm186, %v2714, %v2718
    %v2722 = vsel %vm188, %v2720, 0
    %2724 = vmatprep.subr.mxu0 0.0
    %2725 = vmatpush1.msra.mxu0 %v49
    %2726 = vmatprep.subr.mxu0 0.0
    %2727 = vmatpush1.msra.mxu0 %v50
    %2728 = vmatprep.subr.mxu0 0.0
    %2729 = vmatpush1.msra.mxu0 %v51
    %2730 = vmatprep.subr.mxu0 0.0
    %2731 = vmatpush1.msra.mxu0 %v52
    %2732 = vmatprep.subr.mxu0 0.0
    %2733 = vmatpush1.msra.mxu0 %v53
    %2734 = vmatprep.subr.mxu0 0.0
    %2735 = vmatpush1.msra.mxu0 %v54
    %2736 = vmatprep.subr.mxu0 0.0
    %2737 = vmatpush1.msra.mxu0 %v55
    %2738 = vmatprep.subr.mxu0 0.0
    %2739 = vmatpush1.msra.mxu0 %v56
    %2740 = vmatprep.subr.mxu0 0.0
    %2741 = vmatpush1.msra.mxu0 0.0
    %2742 = vmatprep.subr.mxu0 0.0
    %2743 = vmatpush1.msra.mxu0 0.0
    %2744 = vmatprep.subr.mxu0 0.0
    %2745 = vmatpush1.msra.mxu0 0.0
    %2746 = vmatprep.subr.mxu0 0.0
    %2747 = vmatpush1.msra.mxu0 0.0
    %2748 = vmatprep.subr.mxu0 0.0
    %2749 = vmatpush1.msra.mxu0 0.0
    %2750 = vmatprep.subr.mxu0 0.0
    %2751 = vmatpush1.msra.mxu0 0.0
    %2752 = vmatprep.subr.mxu0 0.0
    %2753 = vmatpush1.msra.mxu0 0.0
    %2754 = vmatprep.subr.mxu0 0.0
    %2755 = vmatpush1.msra.mxu0 0.0
    %2756 = vmatprep.subr.mxu0 0.0
    %2757 = vmatpush1.msra.mxu0 0.0
    %2758 = vmatprep.subr.mxu0 0.0
    %2759 = vmatpush1.msra.mxu0 0.0
    %2760 = vmatprep.subr.mxu0 0.0
    %2761 = vmatpush1.msra.mxu0 0.0
    %2762 = vmatprep.subr.mxu0 0.0
    %2763 = vmatpush1.msra.mxu0 0.0
    %2764 = vmatprep.subr.mxu0 0.0
    %2765 = vmatpush1.msra.mxu0 0.0
    %2766 = vmatprep.subr.mxu0 0.0
    %2767 = vmatpush1.msra.mxu0 0.0
    %2768 = vmatprep.subr.mxu0 0.0
    %2769 = vmatpush1.msra.mxu0 0.0
    %2770 = vmatprep.subr.mxu0 0.0
    %2771 = vmatpush1.msra.mxu0 0.0
    %2772 = vmatprep.subr.mxu0 0.0
    %2773 = vmatpush1.msra.mxu0 0.0
    %2774 = vmatprep.subr.mxu0 0.0
    %2775 = vmatpush1.msra.mxu0 0.0
    %2776 = vmatprep.subr.mxu0 0.0
    %2777 = vmatpush1.msra.mxu0 0.0
    %2778 = vmatprep.subr.mxu0 0.0
    %2779 = vmatpush1.msra.mxu0 0.0
    %2780 = vmatprep.subr.mxu0 0.0
    %2781 = vmatpush1.msra.mxu0 0.0
    %2782 = vmatprep.subr.mxu0 0.0
    %2783 = vmatpush1.msra.mxu0 0.0
    %2784 = vmatprep.subr.mxu0 0.0
    %2785 = vmatpush1.msra.mxu0 0.0
    %2786 = vmatprep.subr.mxu0 0.0
    %2787 = vmatpush1.msra.mxu0 0.0
    %2788 = vmatprep.mubr.f32.mxu0 0.0
    %2789 = vmatmul.mubr.f32.gmra.mrb[0].mxu0 %v2722
    %v2790 = vpop.f32.mrb[0].mxu0
    %v2791 = vadd.f32 %v62, %v2790
    %v2792 = vpop.f32.mrb[0].mxu0
    %2793 = vdwg.mxu0
    %v2794 = vxor.u32 %v2791, 2147483648
    %v2795 = vmul.f32 %v2794, 1.442695
    %v2796 = vpow.pop %v2795
    %v2797 = vadd.f32 %v2796, 1.0
    %v2798 = vrcp.pop %v2797
    %v2799 = vmul.f32 1.0, %v2798
    %v2800 = vtanh.pop %v2791
    %v2801 = vmul.f32 %v2799, %v2493
    %2803 = vrot.lane.b32.xlu0 %v2800, 64
    %v2804 = vpop.permute.xlu0 %2803
    %v2806 = vmul.f32 %v2799, %v2804
    %2808 = vrot.lane.b32.xlu0 %v2806, 32
    %v2809 = vpop.permute.xlu0 %2808
    %v2811 = vadd.f32 %v2801, %v2809
    %v2812 = vtanh.pop %v2811
    %2814 = vrot.lane.b32.xlu0 %v2812, 64
    %v2815 = vpop.permute.xlu0 %2814
    %v2817 = vmul.f32 %v2799, %v2815
    %v2818 = vmax.f32 %v2817, 0.0
    %2820 = vrot.lane.b32.xlu0 %v2818, 32
    %v2821 = vpop.permute.xlu0 %2820
    %v2822 = vsel %vm186, %v2821, 0
    %2824 = vmatprep.subr.mxu0 0.0
    %2825 = vmatpush1.msra.mxu0 %v64
    %2826 = vmatprep.subr.mxu0 0.0
    %2827 = vmatpush1.msra.mxu0 %v65
    %2828 = vmatprep.subr.mxu0 0.0
    %2829 = vmatpush1.msra.mxu0 %v66
    %2830 = vmatprep.subr.mxu0 0.0
    %2831 = vmatpush1.msra.mxu0 %v67
    %2832 = vmatprep.subr.mxu0 0.0
    %2833 = vmatpush1.msra.mxu0 0.0
    %2834 = vmatprep.subr.mxu0 0.0
    %2835 = vmatpush1.msra.mxu0 0.0
    %2836 = vmatprep.subr.mxu0 0.0
    %2837 = vmatpush1.msra.mxu0 0.0
    %2838 = vmatprep.subr.mxu0 0.0
    %2839 = vmatpush1.msra.mxu0 0.0
    %2840 = vmatprep.subr.mxu0 0.0
    %2841 = vmatpush1.msra.mxu0 0.0
    %2842 = vmatprep.subr.mxu0 0.0
    %2843 = vmatpush1.msra.mxu0 0.0
    %2844 = vmatprep.subr.mxu0 0.0
    %2845 = vmatpush1.msra.mxu0 0.0
    %2846 = vmatprep.subr.mxu0 0.0
    %2847 = vmatpush1.msra.mxu0 0.0
    %2848 = vmatprep.subr.mxu0 0.0
    %2849 = vmatpush1.msra.mxu0 0.0
    %2850 = vmatprep.subr.mxu0 0.0
    %2851 = vmatpush1.msra.mxu0 0.0
    %2852 = vmatprep.subr.mxu0 0.0
    %2853 = vmatpush1.msra.mxu0 0.0
    %2854 = vmatprep.subr.mxu0 0.0
    %2855 = vmatpush1.msra.mxu0 0.0
    %2856 = vmatprep.subr.mxu0 0.0
    %2857 = vmatpush1.msra.mxu0 0.0
    %2858 = vmatprep.subr.mxu0 0.0
    %2859 = vmatpush1.msra.mxu0 0.0
    %2860 = vmatprep.subr.mxu0 0.0
    %2861 = vmatpush1.msra.mxu0 0.0
    %2862 = vmatprep.subr.mxu0 0.0
    %2863 = vmatpush1.msra.mxu0 0.0
    %2864 = vmatprep.subr.mxu0 0.0
    %2865 = vmatpush1.msra.mxu0 0.0
    %2866 = vmatprep.subr.mxu0 0.0
    %2867 = vmatpush1.msra.mxu0 0.0
    %2868 = vmatprep.subr.mxu0 0.0
    %2869 = vmatpush1.msra.mxu0 0.0
    %2870 = vmatprep.subr.mxu0 0.0
    %2871 = vmatpush1.msra.mxu0 0.0
    %2872 = vmatprep.subr.mxu0 0.0
    %2873 = vmatpush1.msra.mxu0 0.0
    %2874 = vmatprep.subr.mxu0 0.0
    %2875 = vmatpush1.msra.mxu0 0.0
    %2876 = vmatprep.subr.mxu0 0.0
    %2877 = vmatpush1.msra.mxu0 0.0
    %2878 = vmatprep.subr.mxu0 0.0
    %2879 = vmatpush1.msra.mxu0 0.0
    %2880 = vmatprep.subr.mxu0 0.0
    %2881 = vmatpush1.msra.mxu0 0.0
    %2882 = vmatprep.subr.mxu0 0.0
    %2883 = vmatpush1.msra.mxu0 0.0
    %2884 = vmatprep.subr.mxu0 0.0
    %2885 = vmatpush1.msra.mxu0 0.0
    %2886 = vmatprep.subr.mxu0 0.0
    %2887 = vmatpush1.msra.mxu0 0.0
    %2888 = vmatprep.mubr.f32.mxu0 0.0
    %2889 = vmatmul.mubr.f32.gmra.mrb[0].mxu0 %v2822
    %v2890 = vpop.f32.mrb[0].mxu0
    %v2891 = vadd.f32 %v73, %v2890
    %v2892 = vpop.f32.mrb[0].mxu0
    %2893 = vdwg.mxu0
    %v2894 = vmax.f32 %v2891, 0.0
    %v2895 = vand.u32 2147483647, %v2891
    %v2896 = vsub.f32 0.0, %v2895
    %v2897 = vmul.f32 %v2896, 1.442695
    %v2898 = vpow.pop %v2897
    %v2899 = vadd.f32 %v2898, 1.0
    %v2900 = vlog2.pop %v2899
    %v2901 = vmul.f32 %v2900, 0.6931472
    %v2902 = vmul.f32 -0.5, %v2898
    %v2903 = vadd.f32 %v2902, 1.0
    %v2904 = vmul.f32 %v2903, %v2898
    %v2905 = vand.u32 2147483647, %v2898
    %vm2906 = vcmp.lt.f32.partialorder %v2905, 0.0004427343
    %v2907 = vsel %vm2906, %v2904, %v2901
    %v2908 = vadd.f32 %v2894, %v2907
    %v2909 = vadd.f32 %v2908, 1e-06
    %2911 = vrot.lane.b32.xlu0 %v2891, 8
    %v2912 = vpop.permute.xlu0 %2911
    %vm2914 = vcmask 68672
    %2915 = vst.msk [vmem:[#allocation2] sm:$0xf] %vm2914, %v2912
    %2917 = vrot.lane.b32.xlu0 %v2909, 7
    %v2918 = vpop.permute.xlu0 %2917
    %2920 = vst.msk [vmem:[#allocation4] sm:$0xf] %vm2914, %v2918
    %v2921 = vld [vmem:[%s2] sm:$0xf]
    %2923 = vrot.lane.b32.xlu0 %v2921, 1
    %v2924 = vpop.permute.xlu0 %2923
    %v2926 = vmul.f32 %v2909, %v2924
    %2928 = vrot.lane.b32.xlu0 %v2926, 127
    %v2929 = vpop.permute.xlu0 %2928
    %v2931 = vadd.f32 %v2891, %v2929
    %2932 = vst.msk [vmem:[#allocation6] sm:$0xf] %vm378, %v2931
    %s2933 = scalar_lea.vmem %s0, 36
    %v2934 = vld [vmem:[%s2933] sm:$0xf]
    %2936 = vrot.lane.b32.xlu0 %v2931, 4
    %v2937 = vpop.permute.xlu0 %2936
    %2939 = vrot.lane.b32.xlu0 %v2711, 37
    %v2940 = vpop.permute.xlu0 %2939
    %v2942 = vsel %vm76, %v2934, %v2937
    %v2943 = vsel %vm78, %v2942, %v2940
    %v2945 = vsel %vm80, %v2943, 0
    %2947 = vmatprep.subr.mxu0 0.0
    %2948 = vmatpush1.msra.mxu0 %v37
    %2949 = vmatprep.subr.mxu0 0.0
    %2950 = vmatpush1.msra.mxu0 %v38
    %2951 = vmatprep.subr.mxu0 0.0
    %2952 = vmatpush1.msra.mxu0 %v39
    %2953 = vmatprep.subr.mxu0 0.0
    %2954 = vmatpush1.msra.mxu0 %v40
    %2955 = vmatprep.subr.mxu0 0.0
    %2956 = vmatpush1.msra.mxu0 %v86
    %2957 = vmatprep.subr.mxu0 0.0
    %2958 = vmatpush1.msra.mxu0 0.0
    %2959 = vmatprep.subr.mxu0 0.0
    %2960 = vmatpush1.msra.mxu0 0.0
    %2961 = vmatprep.subr.mxu0 0.0
    %2962 = vmatpush1.msra.mxu0 0.0
    %2963 = vmatprep.subr.mxu0 0.0
    %2964 = vmatpush1.msra.mxu0 0.0
    %2965 = vmatprep.subr.mxu0 0.0
    %2966 = vmatpush1.msra.mxu0 0.0
    %2967 = vmatprep.subr.mxu0 0.0
    %2968 = vmatpush1.msra.mxu0 0.0
    %2969 = vmatprep.subr.mxu0 0.0
    %2970 = vmatpush1.msra.mxu0 0.0
    %2971 = vmatprep.subr.mxu0 0.0
    %2972 = vmatpush1.msra.mxu0 0.0
    %2973 = vmatprep.subr.mxu0 0.0
    %2974 = vmatpush1.msra.mxu0 0.0
    %2975 = vmatprep.subr.mxu0 0.0
    %2976 = vmatpush1.msra.mxu0 0.0
    %2977 = vmatprep.subr.mxu0 0.0
    %2978 = vmatpush1.msra.mxu0 0.0
    %2979 = vmatprep.subr.mxu0 0.0
    %2980 = vmatpush1.msra.mxu0 0.0
    %2981 = vmatprep.subr.mxu0 0.0
    %2982 = vmatpush1.msra.mxu0 0.0
    %2983 = vmatprep.subr.mxu0 0.0
    %2984 = vmatpush1.msra.mxu0 0.0
    %2985 = vmatprep.subr.mxu0 0.0
    %2986 = vmatpush1.msra.mxu0 0.0
    %2987 = vmatprep.subr.mxu0 0.0
    %2988 = vmatpush1.msra.mxu0 0.0
    %2989 = vmatprep.subr.mxu0 0.0
    %2990 = vmatpush1.msra.mxu0 0.0
    %2991 = vmatprep.subr.mxu0 0.0
    %2992 = vmatpush1.msra.mxu0 0.0
    %2993 = vmatprep.subr.mxu0 0.0
    %2994 = vmatpush1.msra.mxu0 0.0
    %2995 = vmatprep.subr.mxu0 0.0
    %2996 = vmatpush1.msra.mxu0 0.0
    %2997 = vmatprep.subr.mxu0 0.0
    %2998 = vmatpush1.msra.mxu0 0.0
    %2999 = vmatprep.subr.mxu0 0.0
    %3000 = vmatpush1.msra.mxu0 0.0
    %3001 = vmatprep.subr.mxu0 0.0
    %3002 = vmatpush1.msra.mxu0 0.0
    %3003 = vmatprep.subr.mxu0 0.0
    %3004 = vmatpush1.msra.mxu0 0.0
    %3005 = vmatprep.subr.mxu0 0.0
    %3006 = vmatpush1.msra.mxu0 0.0
    %3007 = vmatprep.subr.mxu0 0.0
    %3008 = vmatpush1.msra.mxu0 0.0
    %3009 = vmatprep.subr.mxu0 0.0
    %3010 = vmatpush1.msra.mxu0 0.0
    %3011 = vmatprep.mubr.f32.mxu0 0.0
    %3012 = vmatmul.mubr.f32.gmra.mrb[0].mxu0 %v2945
    %v3013 = vpop.f32.mrb[0].mxu0
    %v3014 = vadd.f32 %v47, %v3013
    %v3015 = vpop.f32.mrb[0].mxu0
    %3016 = vdwg.mxu0
    %v3017 = vxor.u32 %v3014, 2147483648
    %v3018 = vmul.f32 %v3017, 1.442695
    %v3019 = vpow.pop %v3018
    %v3020 = vadd.f32 %v3019, 1.0
    %v3021 = vrcp.pop %v3020
    %v3022 = vmul.f32 1.0, %v3021
    %v3023 = vtanh.pop %v3014
    %v3024 = vmul.f32 %v3022, %v2705
    %3026 = vrot.lane.b32.xlu0 %v3023, 64
    %v3027 = vpop.permute.xlu0 %3026
    %v3029 = vmul.f32 %v3022, %v3027
    %3031 = vrot.lane.b32.xlu0 %v3029, 32
    %v3032 = vpop.permute.xlu0 %3031
    %v3034 = vadd.f32 %v3024, %v3032
    %v3035 = vtanh.pop %v3034
    %3037 = vrot.lane.b32.xlu0 %v3035, 64
    %v3038 = vpop.permute.xlu0 %3037
    %v3040 = vmul.f32 %v3022, %v3038
    %3042 = vrot.lane.b32.xlu0 %v3040, 32
    %v3043 = vpop.permute.xlu0 %3042
    %3046 = vrot.lane.b32.xlu0 %v2817, 64
    %v3047 = vpop.permute.xlu0 %3046
    %v3049 = vsel %vm186, %v3043, %v3047
    %v3051 = vsel %vm188, %v3049, 0
    %3053 = vmatprep.subr.mxu0 0.0
    %3054 = vmatpush1.msra.mxu0 %v49
    %3055 = vmatprep.subr.mxu0 0.0
    %3056 = vmatpush1.msra.mxu0 %v50
    %3057 = vmatprep.subr.mxu0 0.0
    %3058 = vmatpush1.msra.mxu0 %v51
    %3059 = vmatprep.subr.mxu0 0.0
    %3060 = vmatpush1.msra.mxu0 %v52
    %3061 = vmatprep.subr.mxu0 0.0
    %3062 = vmatpush1.msra.mxu0 %v53
    %3063 = vmatprep.subr.mxu0 0.0
    %3064 = vmatpush1.msra.mxu0 %v54
    %3065 = vmatprep.subr.mxu0 0.0
    %3066 = vmatpush1.msra.mxu0 %v55
    %3067 = vmatprep.subr.mxu0 0.0
    %3068 = vmatpush1.msra.mxu0 %v56
    %3069 = vmatprep.subr.mxu0 0.0
    %3070 = vmatpush1.msra.mxu0 0.0
    %3071 = vmatprep.subr.mxu0 0.0
    %3072 = vmatpush1.msra.mxu0 0.0
    %3073 = vmatprep.subr.mxu0 0.0
    %3074 = vmatpush1.msra.mxu0 0.0
    %3075 = vmatprep.subr.mxu0 0.0
    %3076 = vmatpush1.msra.mxu0 0.0
    %3077 = vmatprep.subr.mxu0 0.0
    %3078 = vmatpush1.msra.mxu0 0.0
    %3079 = vmatprep.subr.mxu0 0.0
    %3080 = vmatpush1.msra.mxu0 0.0
    %3081 = vmatprep.subr.mxu0 0.0
    %3082 = vmatpush1.msra.mxu0 0.0
    %3083 = vmatprep.subr.mxu0 0.0
    %3084 = vmatpush1.msra.mxu0 0.0
    %3085 = vmatprep.subr.mxu0 0.0
    %3086 = vmatpush1.msra.mxu0 0.0
    %3087 = vmatprep.subr.mxu0 0.0
    %3088 = vmatpush1.msra.mxu0 0.0
    %3089 = vmatprep.subr.mxu0 0.0
    %3090 = vmatpush1.msra.mxu0 0.0
    %3091 = vmatprep.subr.mxu0 0.0
    %3092 = vmatpush1.msra.mxu0 0.0
    %3093 = vmatprep.subr.mxu0 0.0
    %3094 = vmatpush1.msra.mxu0 0.0
    %3095 = vmatprep.subr.mxu0 0.0
    %3096 = vmatpush1.msra.mxu0 0.0
    %3097 = vmatprep.subr.mxu0 0.0
    %3098 = vmatpush1.msra.mxu0 0.0
    %3099 = vmatprep.subr.mxu0 0.0
    %3100 = vmatpush1.msra.mxu0 0.0
    %3101 = vmatprep.subr.mxu0 0.0
    %3102 = vmatpush1.msra.mxu0 0.0
    %3103 = vmatprep.subr.mxu0 0.0
    %3104 = vmatpush1.msra.mxu0 0.0
    %3105 = vmatprep.subr.mxu0 0.0
    %3106 = vmatpush1.msra.mxu0 0.0
    %3107 = vmatprep.subr.mxu0 0.0
    %3108 = vmatpush1.msra.mxu0 0.0
    %3109 = vmatprep.subr.mxu0 0.0
    %3110 = vmatpush1.msra.mxu0 0.0
    %3111 = vmatprep.subr.mxu0 0.0
    %3112 = vmatpush1.msra.mxu0 0.0
    %3113 = vmatprep.subr.mxu0 0.0
    %3114 = vmatpush1.msra.mxu0 0.0
    %3115 = vmatprep.subr.mxu0 0.0
    %3116 = vmatpush1.msra.mxu0 0.0
    %3117 = vmatprep.mubr.f32.mxu0 0.0
    %3118 = vmatmul.mubr.f32.gmra.mrb[0].mxu0 %v3051
    %v3119 = vpop.f32.mrb[0].mxu0
    %v3120 = vadd.f32 %v62, %v3119
    %v3121 = vpop.f32.mrb[0].mxu0
    %3122 = vdwg.mxu0
    %v3123 = vxor.u32 %v3120, 2147483648
    %v3124 = vmul.f32 %v3123, 1.442695
    %v3125 = vpow.pop %v3124
    %v3126 = vadd.f32 %v3125, 1.0
    %v3127 = vrcp.pop %v3126
    %v3128 = vmul.f32 1.0, %v3127
    %v3129 = vtanh.pop %v3120
    %v3130 = vmul.f32 %v3128, %v2811
    %3132 = vrot.lane.b32.xlu0 %v3129, 64
    %v3133 = vpop.permute.xlu0 %3132
    %v3135 = vmul.f32 %v3128, %v3133
    %3137 = vrot.lane.b32.xlu0 %v3135, 32
    %v3138 = vpop.permute.xlu0 %3137
    %v3140 = vadd.f32 %v3130, %v3138
    %v3141 = vtanh.pop %v3140
    %3143 = vrot.lane.b32.xlu0 %v3141, 64
    %v3144 = vpop.permute.xlu0 %3143
    %v3146 = vmul.f32 %v3128, %v3144
    %v3147 = vmax.f32 %v3146, 0.0
    %3149 = vrot.lane.b32.xlu0 %v3147, 32
    %v3150 = vpop.permute.xlu0 %3149
    %v3151 = vsel %vm186, %v3150, 0
    %3153 = vmatprep.subr.mxu0 0.0
    %3154 = vmatpush1.msra.mxu0 %v64
    %3155 = vmatprep.subr.mxu0 0.0
    %3156 = vmatpush1.msra.mxu0 %v65
    %3157 = vmatprep.subr.mxu0 0.0
    %3158 = vmatpush1.msra.mxu0 %v66
    %3159 = vmatprep.subr.mxu0 0.0
    %3160 = vmatpush1.msra.mxu0 %v67
    %3161 = vmatprep.subr.mxu0 0.0
    %3162 = vmatpush1.msra.mxu0 0.0
    %3163 = vmatprep.subr.mxu0 0.0
    %3164 = vmatpush1.msra.mxu0 0.0
    %3165 = vmatprep.subr.mxu0 0.0
    %3166 = vmatpush1.msra.mxu0 0.0
    %3167 = vmatprep.subr.mxu0 0.0
    %3168 = vmatpush1.msra.mxu0 0.0
    %3169 = vmatprep.subr.mxu0 0.0
    %3170 = vmatpush1.msra.mxu0 0.0
    %3171 = vmatprep.subr.mxu0 0.0
    %3172 = vmatpush1.msra.mxu0 0.0
    %3173 = vmatprep.subr.mxu0 0.0
    %3174 = vmatpush1.msra.mxu0 0.0
    %3175 = vmatprep.subr.mxu0 0.0
    %3176 = vmatpush1.msra.mxu0 0.0
    %3177 = vmatprep.subr.mxu0 0.0
    %3178 = vmatpush1.msra.mxu0 0.0
    %3179 = vmatprep.subr.mxu0 0.0
    %3180 = vmatpush1.msra.mxu0 0.0
    %3181 = vmatprep.subr.mxu0 0.0
    %3182 = vmatpush1.msra.mxu0 0.0
    %3183 = vmatprep.subr.mxu0 0.0
    %3184 = vmatpush1.msra.mxu0 0.0
    %3185 = vmatprep.subr.mxu0 0.0
    %3186 = vmatpush1.msra.mxu0 0.0
    %3187 = vmatprep.subr.mxu0 0.0
    %3188 = vmatpush1.msra.mxu0 0.0
    %3189 = vmatprep.subr.mxu0 0.0
    %3190 = vmatpush1.msra.mxu0 0.0
    %3191 = vmatprep.subr.mxu0 0.0
    %3192 = vmatpush1.msra.mxu0 0.0
    %3193 = vmatprep.subr.mxu0 0.0
    %3194 = vmatpush1.msra.mxu0 0.0
    %3195 = vmatprep.subr.mxu0 0.0
    %3196 = vmatpush1.msra.mxu0 0.0
    %3197 = vmatprep.subr.mxu0 0.0
    %3198 = vmatpush1.msra.mxu0 0.0
    %3199 = vmatprep.subr.mxu0 0.0
    %3200 = vmatpush1.msra.mxu0 0.0
    %3201 = vmatprep.subr.mxu0 0.0
    %3202 = vmatpush1.msra.mxu0 0.0
    %3203 = vmatprep.subr.mxu0 0.0
    %3204 = vmatpush1.msra.mxu0 0.0
    %3205 = vmatprep.subr.mxu0 0.0
    %3206 = vmatpush1.msra.mxu0 0.0
    %3207 = vmatprep.subr.mxu0 0.0
    %3208 = vmatpush1.msra.mxu0 0.0
    %3209 = vmatprep.subr.mxu0 0.0
    %3210 = vmatpush1.msra.mxu0 0.0
    %3211 = vmatprep.subr.mxu0 0.0
    %3212 = vmatpush1.msra.mxu0 0.0
    %3213 = vmatprep.subr.mxu0 0.0
    %3214 = vmatpush1.msra.mxu0 0.0
    %3215 = vmatprep.subr.mxu0 0.0
    %3216 = vmatpush1.msra.mxu0 0.0
    %3217 = vmatprep.mubr.f32.mxu0 0.0
    %3218 = vmatmul.mubr.f32.gmra.mrb[0].mxu0 %v3151
    %v3219 = vpop.f32.mrb[0].mxu0
    %v3220 = vadd.f32 %v73, %v3219
    %v3221 = vpop.f32.mrb[0].mxu0
    %3222 = vdwg.mxu0
    %v3223 = vmax.f32 %v3220, 0.0
    %v3224 = vand.u32 2147483647, %v3220
    %v3225 = vsub.f32 0.0, %v3224
    %v3226 = vmul.f32 %v3225, 1.442695
    %v3227 = vpow.pop %v3226
    %v3228 = vadd.f32 %v3227, 1.0
    %v3229 = vlog2.pop %v3228
    %v3230 = vmul.f32 %v3229, 0.6931472
    %v3231 = vmul.f32 -0.5, %v3227
    %v3232 = vadd.f32 %v3231, 1.0
    %v3233 = vmul.f32 %v3232, %v3227
    %v3234 = vand.u32 2147483647, %v3227
    %vm3235 = vcmp.lt.f32.partialorder %v3234, 0.0004427343
    %v3236 = vsel %vm3235, %v3233, %v3230
    %v3237 = vadd.f32 %v3223, %v3236
    %v3238 = vadd.f32 %v3237, 1e-06
    %3240 = vrot.lane.b32.xlu0 %v3220, 9
    %v3241 = vpop.permute.xlu0 %3240
    %vm3243 = vcmask 76872
    %3244 = vst.msk [vmem:[#allocation2] sm:$0xf] %vm3243, %v3241
    %3246 = vrot.lane.b32.xlu0 %v3238, 8
    %v3247 = vpop.permute.xlu0 %3246
    %3249 = vst.msk [vmem:[#allocation4] sm:$0xf] %vm3243, %v3247
    %v3250 = vld [vmem:[%s2] sm:$0xf]
    %v3251 = vmul.f32 %v3238, %v3250
    %3253 = vrot.lane.b32.xlu0 %v3251, 127
    %v3254 = vpop.permute.xlu0 %3253
    %v3256 = vadd.f32 %v3220, %v3254
    %3258 = vrot.lane.b32.xlu0 %v3256, 1
    %v3259 = vpop.permute.xlu0 %3258
    %3261 = vst.msk [vmem:[#allocation6] sm:$0xf] %vm696, %v3259
    %s3262 = scalar_lea.vmem %s0, 40
    %v3263 = vld [vmem:[%s3262] sm:$0xf]
    %3264 = vrot.lane.b32.xlu0 %v3256, 4
    %v3265 = vpop.permute.xlu0 %3264
    %3267 = vrot.lane.b32.xlu0 %v3040, 37
    %v3268 = vpop.permute.xlu0 %3267
    %v3270 = vsel %vm76, %v3263, %v3265
    %v3271 = vsel %vm78, %v3270, %v3268
    %v3273 = vsel %vm80, %v3271, 0
    %3275 = vmatprep.subr.mxu0 0.0
    %3276 = vmatpush1.msra.mxu0 %v37
    %3277 = vmatprep.subr.mxu0 0.0
    %3278 = vmatpush1.msra.mxu0 %v38
    %3279 = vmatprep.subr.mxu0 0.0
    %3280 = vmatpush1.msra.mxu0 %v39
    %3281 = vmatprep.subr.mxu0 0.0
    %3282 = vmatpush1.msra.mxu0 %v40
    %3283 = vmatprep.subr.mxu0 0.0
    %3284 = vmatpush1.msra.mxu0 %v86
    %3285 = vmatprep.subr.mxu0 0.0
    %3286 = vmatpush1.msra.mxu0 0.0
    %3287 = vmatprep.subr.mxu0 0.0
    %3288 = vmatpush1.msra.mxu0 0.0
    %3289 = vmatprep.subr.mxu0 0.0
    %3290 = vmatpush1.msra.mxu0 0.0
    %3291 = vmatprep.subr.mxu0 0.0
    %3292 = vmatpush1.msra.mxu0 0.0
    %3293 = vmatprep.subr.mxu0 0.0
    %3294 = vmatpush1.msra.mxu0 0.0
    %3295 = vmatprep.subr.mxu0 0.0
    %3296 = vmatpush1.msra.mxu0 0.0
    %3297 = vmatprep.subr.mxu0 0.0
    %3298 = vmatpush1.msra.mxu0 0.0
    %3299 = vmatprep.subr.mxu0 0.0
    %3300 = vmatpush1.msra.mxu0 0.0
    %3301 = vmatprep.subr.mxu0 0.0
    %3302 = vmatpush1.msra.mxu0 0.0
    %3303 = vmatprep.subr.mxu0 0.0
    %3304 = vmatpush1.msra.mxu0 0.0
    %3305 = vmatprep.subr.mxu0 0.0
    %3306 = vmatpush1.msra.mxu0 0.0
    %3307 = vmatprep.subr.mxu0 0.0
    %3308 = vmatpush1.msra.mxu0 0.0
    %3309 = vmatprep.subr.mxu0 0.0
    %3310 = vmatpush1.msra.mxu0 0.0
    %3311 = vmatprep.subr.mxu0 0.0
    %3312 = vmatpush1.msra.mxu0 0.0
    %3313 = vmatprep.subr.mxu0 0.0
    %3314 = vmatpush1.msra.mxu0 0.0
    %3315 = vmatprep.subr.mxu0 0.0
    %3316 = vmatpush1.msra.mxu0 0.0
    %3317 = vmatprep.subr.mxu0 0.0
    %3318 = vmatpush1.msra.mxu0 0.0
    %3319 = vmatprep.subr.mxu0 0.0
    %3320 = vmatpush1.msra.mxu0 0.0
    %3321 = vmatprep.subr.mxu0 0.0
    %3322 = vmatpush1.msra.mxu0 0.0
    %3323 = vmatprep.subr.mxu0 0.0
    %3324 = vmatpush1.msra.mxu0 0.0
    %3325 = vmatprep.subr.mxu0 0.0
    %3326 = vmatpush1.msra.mxu0 0.0
    %3327 = vmatprep.subr.mxu0 0.0
    %3328 = vmatpush1.msra.mxu0 0.0
    %3329 = vmatprep.subr.mxu0 0.0
    %3330 = vmatpush1.msra.mxu0 0.0
    %3331 = vmatprep.subr.mxu0 0.0
    %3332 = vmatpush1.msra.mxu0 0.0
    %3333 = vmatprep.subr.mxu0 0.0
    %3334 = vmatpush1.msra.mxu0 0.0
    %3335 = vmatprep.subr.mxu0 0.0
    %3336 = vmatpush1.msra.mxu0 0.0
    %3337 = vmatprep.subr.mxu0 0.0
    %3338 = vmatpush1.msra.mxu0 0.0
    %3339 = vmatprep.mubr.f32.mxu0 0.0
    %3340 = vmatmul.mubr.f32.gmra.mrb[0].mxu0 %v3273
    %v3341 = vpop.f32.mrb[0].mxu0
    %v3342 = vadd.f32 %v47, %v3341
    %v3343 = vpop.f32.mrb[0].mxu0
    %3344 = vdwg.mxu0
    %v3345 = vxor.u32 %v3342, 2147483648
    %v3346 = vmul.f32 %v3345, 1.442695
    %v3347 = vpow.pop %v3346
    %v3348 = vadd.f32 %v3347, 1.0
    %v3349 = vrcp.pop %v3348
    %v3350 = vmul.f32 1.0, %v3349
    %v3351 = vtanh.pop %v3342
    %v3352 = vmul.f32 %v3350, %v3034
    %3354 = vrot.lane.b32.xlu0 %v3351, 64
    %v3355 = vpop.permute.xlu0 %3354
    %v3357 = vmul.f32 %v3350, %v3355
    %3359 = vrot.lane.b32.xlu0 %v3357, 32
    %v3360 = vpop.permute.xlu0 %3359
    %v3362 = vadd.f32 %v3352, %v3360
    %v3363 = vtanh.pop %v3362
    %3365 = vrot.lane.b32.xlu0 %v3363, 64
    %v3366 = vpop.permute.xlu0 %3365
    %v3368 = vmul.f32 %v3350, %v3366
    %3370 = vrot.lane.b32.xlu0 %v3368, 32
    %v3371 = vpop.permute.xlu0 %3370
    %3374 = vrot.lane.b32.xlu0 %v3146, 64
    %v3375 = vpop.permute.xlu0 %3374
    %v3377 = vsel %vm186, %v3371, %v3375
    %v3379 = vsel %vm188, %v3377, 0
    %3381 = vmatprep.subr.mxu0 0.0
    %3382 = vmatpush1.msra.mxu0 %v49
    %3383 = vmatprep.subr.mxu0 0.0
    %3384 = vmatpush1.msra.mxu0 %v50
    %3385 = vmatprep.subr.mxu0 0.0
    %3386 = vmatpush1.msra.mxu0 %v51
    %3387 = vmatprep.subr.mxu0 0.0
    %3388 = vmatpush1.msra.mxu0 %v52
    %3389 = vmatprep.subr.mxu0 0.0
    %3390 = vmatpush1.msra.mxu0 %v53
    %3391 = vmatprep.subr.mxu0 0.0
    %3392 = vmatpush1.msra.mxu0 %v54
    %3393 = vmatprep.subr.mxu0 0.0
    %3394 = vmatpush1.msra.mxu0 %v55
    %3395 = vmatprep.subr.mxu0 0.0
    %3396 = vmatpush1.msra.mxu0 %v56
    %3397 = vmatprep.subr.mxu0 0.0
    %3398 = vmatpush1.msra.mxu0 0.0
    %3399 = vmatprep.subr.mxu0 0.0
    %3400 = vmatpush1.msra.mxu0 0.0
    %3401 = vmatprep.subr.mxu0 0.0
    %3402 = vmatpush1.msra.mxu0 0.0
    %3403 = vmatprep.subr.mxu0 0.0
    %3404 = vmatpush1.msra.mxu0 0.0
    %3405 = vmatprep.subr.mxu0 0.0
    %3406 = vmatpush1.msra.mxu0 0.0
    %3407 = vmatprep.subr.mxu0 0.0
    %3408 = vmatpush1.msra.mxu0 0.0
    %3409 = vmatprep.subr.mxu0 0.0
    %3410 = vmatpush1.msra.mxu0 0.0
    %3411 = vmatprep.subr.mxu0 0.0
    %3412 = vmatpush1.msra.mxu0 0.0
    %3413 = vmatprep.subr.mxu0 0.0
    %3414 = vmatpush1.msra.mxu0 0.0
    %3415 = vmatprep.subr.mxu0 0.0
    %3416 = vmatpush1.msra.mxu0 0.0
    %3417 = vmatprep.subr.mxu0 0.0
    %3418 = vmatpush1.msra.mxu0 0.0
    %3419 = vmatprep.subr.mxu0 0.0
    %3420 = vmatpush1.msra.mxu0 0.0
    %3421 = vmatprep.subr.mxu0 0.0
    %3422 = vmatpush1.msra.mxu0 0.0
    %3423 = vmatprep.subr.mxu0 0.0
    %3424 = vmatpush1.msra.mxu0 0.0
    %3425 = vmatprep.subr.mxu0 0.0
    %3426 = vmatpush1.msra.mxu0 0.0
    %3427 = vmatprep.subr.mxu0 0.0
    %3428 = vmatpush1.msra.mxu0 0.0
    %3429 = vmatprep.subr.mxu0 0.0
    %3430 = vmatpush1.msra.mxu0 0.0
    %3431 = vmatprep.subr.mxu0 0.0
    %3432 = vmatpush1.msra.mxu0 0.0
    %3433 = vmatprep.subr.mxu0 0.0
    %3434 = vmatpush1.msra.mxu0 0.0
    %3435 = vmatprep.subr.mxu0 0.0
    %3436 = vmatpush1.msra.mxu0 0.0
    %3437 = vmatprep.subr.mxu0 0.0
    %3438 = vmatpush1.msra.mxu0 0.0
    %3439 = vmatprep.subr.mxu0 0.0
    %3440 = vmatpush1.msra.mxu0 0.0
    %3441 = vmatprep.subr.mxu0 0.0
    %3442 = vmatpush1.msra.mxu0 0.0
    %3443 = vmatprep.subr.mxu0 0.0
    %3444 = vmatpush1.msra.mxu0 0.0
    %3445 = vmatprep.mubr.f32.mxu0 0.0
    %3446 = vmatmul.mubr.f32.gmra.mrb[0].mxu0 %v3379
    %v3447 = vpop.f32.mrb[0].mxu0
    %v3448 = vadd.f32 %v62, %v3447
    %v3449 = vpop.f32.mrb[0].mxu0
    %3450 = vdwg.mxu0
    %v3451 = vxor.u32 %v3448, 2147483648
    %v3452 = vmul.f32 %v3451, 1.442695
    %v3453 = vpow.pop %v3452
    %v3454 = vadd.f32 %v3453, 1.0
    %v3455 = vrcp.pop %v3454
    %v3456 = vmul.f32 1.0, %v3455
    %v3457 = vtanh.pop %v3448
    %v3458 = vmul.f32 %v3456, %v3140
    %3460 = vrot.lane.b32.xlu0 %v3457, 64
    %v3461 = vpop.permute.xlu0 %3460
    %v3463 = vmul.f32 %v3456, %v3461
    %3465 = vrot.lane.b32.xlu0 %v3463, 32
    %v3466 = vpop.permute.xlu0 %3465
    %v3468 = vadd.f32 %v3458, %v3466
    %v3469 = vtanh.pop %v3468
    %3471 = vrot.lane.b32.xlu0 %v3469, 64
    %v3472 = vpop.permute.xlu0 %3471
    %v3474 = vmul.f32 %v3456, %v3472
    %v3475 = vmax.f32 %v3474, 0.0
    %3477 = vrot.lane.b32.xlu0 %v3475, 32
    %v3478 = vpop.permute.xlu0 %3477
    %v3479 = vsel %vm186, %v3478, 0
    %3481 = vmatprep.subr.mxu0 0.0
    %3482 = vmatpush1.msra.mxu0 %v64
    %3483 = vmatprep.subr.mxu0 0.0
    %3484 = vmatpush1.msra.mxu0 %v65
    %3485 = vmatprep.subr.mxu0 0.0
    %3486 = vmatpush1.msra.mxu0 %v66
    %3487 = vmatprep.subr.mxu0 0.0
    %3488 = vmatpush1.msra.mxu0 %v67
    %3489 = vmatprep.subr.mxu0 0.0
    %3490 = vmatpush1.msra.mxu0 0.0
    %3491 = vmatprep.subr.mxu0 0.0
    %3492 = vmatpush1.msra.mxu0 0.0
    %3493 = vmatprep.subr.mxu0 0.0
    %3494 = vmatpush1.msra.mxu0 0.0
    %3495 = vmatprep.subr.mxu0 0.0
    %3496 = vmatpush1.msra.mxu0 0.0
    %3497 = vmatprep.subr.mxu0 0.0
    %3498 = vmatpush1.msra.mxu0 0.0
    %3499 = vmatprep.subr.mxu0 0.0
    %3500 = vmatpush1.msra.mxu0 0.0
    %3501 = vmatprep.subr.mxu0 0.0
    %3502 = vmatpush1.msra.mxu0 0.0
    %3503 = vmatprep.subr.mxu0 0.0
    %3504 = vmatpush1.msra.mxu0 0.0
    %3505 = vmatprep.subr.mxu0 0.0
    %3506 = vmatpush1.msra.mxu0 0.0
    %3507 = vmatprep.subr.mxu0 0.0
    %3508 = vmatpush1.msra.mxu0 0.0
    %3509 = vmatprep.subr.mxu0 0.0
    %3510 = vmatpush1.msra.mxu0 0.0
    %3511 = vmatprep.subr.mxu0 0.0
    %3512 = vmatpush1.msra.mxu0 0.0
    %3513 = vmatprep.subr.mxu0 0.0
    %3514 = vmatpush1.msra.mxu0 0.0
    %3515 = vmatprep.subr.mxu0 0.0
    %3516 = vmatpush1.msra.mxu0 0.0
    %3517 = vmatprep.subr.mxu0 0.0
    %3518 = vmatpush1.msra.mxu0 0.0
    %3519 = vmatprep.subr.mxu0 0.0
    %3520 = vmatpush1.msra.mxu0 0.0
    %3521 = vmatprep.subr.mxu0 0.0
    %3522 = vmatpush1.msra.mxu0 0.0
    %3523 = vmatprep.subr.mxu0 0.0
    %3524 = vmatpush1.msra.mxu0 0.0
    %3525 = vmatprep.subr.mxu0 0.0
    %3526 = vmatpush1.msra.mxu0 0.0
    %3527 = vmatprep.subr.mxu0 0.0
    %3528 = vmatpush1.msra.mxu0 0.0
    %3529 = vmatprep.subr.mxu0 0.0
    %3530 = vmatpush1.msra.mxu0 0.0
    %3531 = vmatprep.subr.mxu0 0.0
    %3532 = vmatpush1.msra.mxu0 0.0
    %3533 = vmatprep.subr.mxu0 0.0
    %3534 = vmatpush1.msra.mxu0 0.0
    %3535 = vmatprep.subr.mxu0 0.0
    %3536 = vmatpush1.msra.mxu0 0.0
    %3537 = vmatprep.subr.mxu0 0.0
    %3538 = vmatpush1.msra.mxu0 0.0
    %3539 = vmatprep.subr.mxu0 0.0
    %3540 = vmatpush1.msra.mxu0 0.0
    %3541 = vmatprep.subr.mxu0 0.0
    %3542 = vmatpush1.msra.mxu0 0.0
    %3543 = vmatprep.subr.mxu0 0.0
    %3544 = vmatpush1.msra.mxu0 0.0
    %3545 = vmatprep.mubr.f32.mxu0 0.0
    %3546 = vmatmul.mubr.f32.gmra.mrb[0].mxu0 %v3479
    %v3547 = vpop.f32.mrb[0].mxu0
    %v3548 = vadd.f32 %v73, %v3547
    %v3549 = vpop.f32.mrb[0].mxu0
    %3550 = vdwg.mxu0
    %v3551 = vmax.f32 %v3548, 0.0
    %v3552 = vand.u32 2147483647, %v3548
    %v3553 = vsub.f32 0.0, %v3552
    %v3554 = vmul.f32 %v3553, 1.442695
    %v3555 = vpow.pop %v3554
    %v3556 = vadd.f32 %v3555, 1.0
    %v3557 = vlog2.pop %v3556
    %v3558 = vmul.f32 %v3557, 0.6931472
    %v3559 = vmul.f32 -0.5, %v3555
    %v3560 = vadd.f32 %v3559, 1.0
    %v3561 = vmul.f32 %v3560, %v3555
    %v3562 = vand.u32 2147483647, %v3555
    %vm3563 = vcmp.lt.f32.partialorder %v3562, 0.0004427343
    %v3564 = vsel %vm3563, %v3561, %v3558
    %v3565 = vadd.f32 %v3551, %v3564
    %v3566 = vadd.f32 %v3565, 1e-06
    %3568 = vrot.lane.b32.xlu0 %v3548, 10
    %v3569 = vpop.permute.xlu0 %3568
    %vm3571 = vcmask 85072
    %3572 = vst.msk [vmem:[#allocation2] sm:$0xf] %vm3571, %v3569
    %3574 = vrot.lane.b32.xlu0 %v3566, 9
    %v3575 = vpop.permute.xlu0 %3574
    %3577 = vst.msk [vmem:[#allocation4] sm:$0xf] %vm3571, %v3575
    %v3578 = vld [vmem:[%s2] sm:$0xf]
    %3580 = vrot.lane.b32.xlu0 %v3578, 127
    %v3581 = vpop.permute.xlu0 %3580
    %v3583 = vmul.f32 %v3566, %v3581
    %3585 = vrot.lane.b32.xlu0 %v3583, 127
    %v3586 = vpop.permute.xlu0 %3585
    %v3588 = vadd.f32 %v3548, %v3586
    %3590 = vrot.lane.b32.xlu0 %v3588, 2
    %v3591 = vpop.permute.xlu0 %3590
    %3593 = vst.msk [vmem:[#allocation6] sm:$0xf] %vm1010, %v3591
    %s3594 = scalar_lea.vmem %s0, 44
    %v3595 = vld [vmem:[%s3594] sm:$0xf]
    %3596 = vrot.lane.b32.xlu0 %v3588, 4
    %v3597 = vpop.permute.xlu0 %3596
    %3599 = vrot.lane.b32.xlu0 %v3368, 37
    %v3600 = vpop.permute.xlu0 %3599
    %v3602 = vsel %vm76, %v3595, %v3597
    %v3603 = vsel %vm78, %v3602, %v3600
    %v3605 = vsel %vm80, %v3603, 0
    %3607 = vmatprep.subr.mxu0 0.0
    %3608 = vmatpush1.msra.mxu0 %v37
    %3609 = vmatprep.subr.mxu0 0.0
    %3610 = vmatpush1.msra.mxu0 %v38
    %3611 = vmatprep.subr.mxu0 0.0
    %3612 = vmatpush1.msra.mxu0 %v39
    %3613 = vmatprep.subr.mxu0 0.0
    %3614 = vmatpush1.msra.mxu0 %v40
    %3615 = vmatprep.subr.mxu0 0.0
    %3616 = vmatpush1.msra.mxu0 %v86
    %3617 = vmatprep.subr.mxu0 0.0
    %3618 = vmatpush1.msra.mxu0 0.0
    %3619 = vmatprep.subr.mxu0 0.0
    %3620 = vmatpush1.msra.mxu0 0.0
    %3621 = vmatprep.subr.mxu0 0.0
    %3622 = vmatpush1.msra.mxu0 0.0
    %3623 = vmatprep.subr.mxu0 0.0
    %3624 = vmatpush1.msra.mxu0 0.0
    %3625 = vmatprep.subr.mxu0 0.0
    %3626 = vmatpush1.msra.mxu0 0.0
    %3627 = vmatprep.subr.mxu0 0.0
    %3628 = vmatpush1.msra.mxu0 0.0
    %3629 = vmatprep.subr.mxu0 0.0
    %3630 = vmatpush1.msra.mxu0 0.0
    %3631 = vmatprep.subr.mxu0 0.0
    %3632 = vmatpush1.msra.mxu0 0.0
    %3633 = vmatprep.subr.mxu0 0.0
    %3634 = vmatpush1.msra.mxu0 0.0
    %3635 = vmatprep.subr.mxu0 0.0
    %3636 = vmatpush1.msra.mxu0 0.0
    %3637 = vmatprep.subr.mxu0 0.0
    %3638 = vmatpush1.msra.mxu0 0.0
    %3639 = vmatprep.subr.mxu0 0.0
    %3640 = vmatpush1.msra.mxu0 0.0
    %3641 = vmatprep.subr.mxu0 0.0
    %3642 = vmatpush1.msra.mxu0 0.0
    %3643 = vmatprep.subr.mxu0 0.0
    %3644 = vmatpush1.msra.mxu0 0.0
    %3645 = vmatprep.subr.mxu0 0.0
    %3646 = vmatpush1.msra.mxu0 0.0
    %3647 = vmatprep.subr.mxu0 0.0
    %3648 = vmatpush1.msra.mxu0 0.0
    %3649 = vmatprep.subr.mxu0 0.0
    %3650 = vmatpush1.msra.mxu0 0.0
    %3651 = vmatprep.subr.mxu0 0.0
    %3652 = vmatpush1.msra.mxu0 0.0
    %3653 = vmatprep.subr.mxu0 0.0
    %3654 = vmatpush1.msra.mxu0 0.0
    %3655 = vmatprep.subr.mxu0 0.0
    %3656 = vmatpush1.msra.mxu0 0.0
    %3657 = vmatprep.subr.mxu0 0.0
    %3658 = vmatpush1.msra.mxu0 0.0
    %3659 = vmatprep.subr.mxu0 0.0
    %3660 = vmatpush1.msra.mxu0 0.0
    %3661 = vmatprep.subr.mxu0 0.0
    %3662 = vmatpush1.msra.mxu0 0.0
    %3663 = vmatprep.subr.mxu0 0.0
    %3664 = vmatpush1.msra.mxu0 0.0
    %3665 = vmatprep.subr.mxu0 0.0
    %3666 = vmatpush1.msra.mxu0 0.0
    %3667 = vmatprep.subr.mxu0 0.0
    %3668 = vmatpush1.msra.mxu0 0.0
    %3669 = vmatprep.subr.mxu0 0.0
    %3670 = vmatpush1.msra.mxu0 0.0
    %3671 = vmatprep.mubr.f32.mxu0 0.0
    %3672 = vmatmul.mubr.f32.gmra.mrb[0].mxu0 %v3605
    %v3673 = vpop.f32.mrb[0].mxu0
    %v3674 = vadd.f32 %v47, %v3673
    %v3675 = vpop.f32.mrb[0].mxu0
    %3676 = vdwg.mxu0
    %v3677 = vxor.u32 %v3674, 2147483648
    %v3678 = vmul.f32 %v3677, 1.442695
    %v3679 = vpow.pop %v3678
    %v3680 = vadd.f32 %v3679, 1.0
    %v3681 = vrcp.pop %v3680
    %v3682 = vmul.f32 1.0, %v3681
    %v3683 = vtanh.pop %v3674
    %v3684 = vmul.f32 %v3682, %v3362
    %3686 = vrot.lane.b32.xlu0 %v3683, 64
    %v3687 = vpop.permute.xlu0 %3686
    %v3689 = vmul.f32 %v3682, %v3687
    %3691 = vrot.lane.b32.xlu0 %v3689, 32
    %v3692 = vpop.permute.xlu0 %3691
    %v3694 = vadd.f32 %v3684, %v3692
    %v3695 = vtanh.pop %v3694
    %3697 = vrot.lane.b32.xlu0 %v3695, 64
    %v3698 = vpop.permute.xlu0 %3697
    %v3700 = vmul.f32 %v3682, %v3698
    %3702 = vrot.lane.b32.xlu0 %v3700, 32
    %v3703 = vpop.permute.xlu0 %3702
    %3706 = vrot.lane.b32.xlu0 %v3474, 64
    %v3707 = vpop.permute.xlu0 %3706
    %v3709 = vsel %vm186, %v3703, %v3707
    %v3711 = vsel %vm188, %v3709, 0
    %3713 = vmatprep.subr.mxu0 0.0
    %3714 = vmatpush1.msra.mxu0 %v49
    %3715 = vmatprep.subr.mxu0 0.0
    %3716 = vmatpush1.msra.mxu0 %v50
    %3717 = vmatprep.subr.mxu0 0.0
    %3718 = vmatpush1.msra.mxu0 %v51
    %3719 = vmatprep.subr.mxu0 0.0
    %3720 = vmatpush1.msra.mxu0 %v52
    %3721 = vmatprep.subr.mxu0 0.0
    %3722 = vmatpush1.msra.mxu0 %v53
    %3723 = vmatprep.subr.mxu0 0.0
    %3724 = vmatpush1.msra.mxu0 %v54
    %3725 = vmatprep.subr.mxu0 0.0
    %3726 = vmatpush1.msra.mxu0 %v55
    %3727 = vmatprep.subr.mxu0 0.0
    %3728 = vmatpush1.msra.mxu0 %v56
    %3729 = vmatprep.subr.mxu0 0.0
    %3730 = vmatpush1.msra.mxu0 0.0
    %3731 = vmatprep.subr.mxu0 0.0
    %3732 = vmatpush1.msra.mxu0 0.0
    %3733 = vmatprep.subr.mxu0 0.0
    %3734 = vmatpush1.msra.mxu0 0.0
    %3735 = vmatprep.subr.mxu0 0.0
    %3736 = vmatpush1.msra.mxu0 0.0
    %3737 = vmatprep.subr.mxu0 0.0
    %3738 = vmatpush1.msra.mxu0 0.0
    %3739 = vmatprep.subr.mxu0 0.0
    %3740 = vmatpush1.msra.mxu0 0.0
    %3741 = vmatprep.subr.mxu0 0.0
    %3742 = vmatpush1.msra.mxu0 0.0
    %3743 = vmatprep.subr.mxu0 0.0
    %3744 = vmatpush1.msra.mxu0 0.0
    %3745 = vmatprep.subr.mxu0 0.0
    %3746 = vmatpush1.msra.mxu0 0.0
    %3747 = vmatprep.subr.mxu0 0.0
    %3748 = vmatpush1.msra.mxu0 0.0
    %3749 = vmatprep.subr.mxu0 0.0
    %3750 = vmatpush1.msra.mxu0 0.0
    %3751 = vmatprep.subr.mxu0 0.0
    %3752 = vmatpush1.msra.mxu0 0.0
    %3753 = vmatprep.subr.mxu0 0.0
    %3754 = vmatpush1.msra.mxu0 0.0
    %3755 = vmatprep.subr.mxu0 0.0
    %3756 = vmatpush1.msra.mxu0 0.0
    %3757 = vmatprep.subr.mxu0 0.0
    %3758 = vmatpush1.msra.mxu0 0.0
    %3759 = vmatprep.subr.mxu0 0.0
    %3760 = vmatpush1.msra.mxu0 0.0
    %3761 = vmatprep.subr.mxu0 0.0
    %3762 = vmatpush1.msra.mxu0 0.0
    %3763 = vmatprep.subr.mxu0 0.0
    %3764 = vmatpush1.msra.mxu0 0.0
    %3765 = vmatprep.subr.mxu0 0.0
    %3766 = vmatpush1.msra.mxu0 0.0
    %3767 = vmatprep.subr.mxu0 0.0
    %3768 = vmatpush1.msra.mxu0 0.0
    %3769 = vmatprep.subr.mxu0 0.0
    %3770 = vmatpush1.msra.mxu0 0.0
    %3771 = vmatprep.subr.mxu0 0.0
    %3772 = vmatpush1.msra.mxu0 0.0
    %3773 = vmatprep.subr.mxu0 0.0
    %3774 = vmatpush1.msra.mxu0 0.0
    %3775 = vmatprep.subr.mxu0 0.0
    %3776 = vmatpush1.msra.mxu0 0.0
    %3777 = vmatprep.mubr.f32.mxu0 0.0
    %3778 = vmatmul.mubr.f32.gmra.mrb[0].mxu0 %v3711
    %v3779 = vpop.f32.mrb[0].mxu0
    %v3780 = vadd.f32 %v62, %v3779
    %v3781 = vpop.f32.mrb[0].mxu0
    %3782 = vdwg.mxu0
    %v3783 = vxor.u32 %v3780, 2147483648
    %v3784 = vmul.f32 %v3783, 1.442695
    %v3785 = vpow.pop %v3784
    %v3786 = vadd.f32 %v3785, 1.0
    %v3787 = vrcp.pop %v3786
    %v3788 = vmul.f32 1.0, %v3787
    %v3789 = vtanh.pop %v3780
    %v3790 = vmul.f32 %v3788, %v3468
    %3792 = vrot.lane.b32.xlu0 %v3789, 64
    %v3793 = vpop.permute.xlu0 %3792
    %v3795 = vmul.f32 %v3788, %v3793
    %3797 = vrot.lane.b32.xlu0 %v3795, 32
    %v3798 = vpop.permute.xlu0 %3797
    %v3800 = vadd.f32 %v3790, %v3798
    %v3801 = vtanh.pop %v3800
    %3803 = vrot.lane.b32.xlu0 %v3801, 64
    %v3804 = vpop.permute.xlu0 %3803
    %v3806 = vmul.f32 %v3788, %v3804
    %v3807 = vmax.f32 %v3806, 0.0
    %3809 = vrot.lane.b32.xlu0 %v3807, 32
    %v3810 = vpop.permute.xlu0 %3809
    %v3811 = vsel %vm186, %v3810, 0
    %3813 = vmatprep.subr.mxu0 0.0
    %3814 = vmatpush1.msra.mxu0 %v64
    %3815 = vmatprep.subr.mxu0 0.0
    %3816 = vmatpush1.msra.mxu0 %v65
    %3817 = vmatprep.subr.mxu0 0.0
    %3818 = vmatpush1.msra.mxu0 %v66
    %3819 = vmatprep.subr.mxu0 0.0
    %3820 = vmatpush1.msra.mxu0 %v67
    %3821 = vmatprep.subr.mxu0 0.0
    %3822 = vmatpush1.msra.mxu0 0.0
    %3823 = vmatprep.subr.mxu0 0.0
    %3824 = vmatpush1.msra.mxu0 0.0
    %3825 = vmatprep.subr.mxu0 0.0
    %3826 = vmatpush1.msra.mxu0 0.0
    %3827 = vmatprep.subr.mxu0 0.0
    %3828 = vmatpush1.msra.mxu0 0.0
    %3829 = vmatprep.subr.mxu0 0.0
    %3830 = vmatpush1.msra.mxu0 0.0
    %3831 = vmatprep.subr.mxu0 0.0
    %3832 = vmatpush1.msra.mxu0 0.0
    %3833 = vmatprep.subr.mxu0 0.0
    %3834 = vmatpush1.msra.mxu0 0.0
    %3835 = vmatprep.subr.mxu0 0.0
    %3836 = vmatpush1.msra.mxu0 0.0
    %3837 = vmatprep.subr.mxu0 0.0
    %3838 = vmatpush1.msra.mxu0 0.0
    %3839 = vmatprep.subr.mxu0 0.0
    %3840 = vmatpush1.msra.mxu0 0.0
    %3841 = vmatprep.subr.mxu0 0.0
    %3842 = vmatpush1.msra.mxu0 0.0
    %3843 = vmatprep.subr.mxu0 0.0
    %3844 = vmatpush1.msra.mxu0 0.0
    %3845 = vmatprep.subr.mxu0 0.0
    %3846 = vmatpush1.msra.mxu0 0.0
    %3847 = vmatprep.subr.mxu0 0.0
    %3848 = vmatpush1.msra.mxu0 0.0
    %3849 = vmatprep.subr.mxu0 0.0
    %3850 = vmatpush1.msra.mxu0 0.0
    %3851 = vmatprep.subr.mxu0 0.0
    %3852 = vmatpush1.msra.mxu0 0.0
    %3853 = vmatprep.subr.mxu0 0.0
    %3854 = vmatpush1.msra.mxu0 0.0
    %3855 = vmatprep.subr.mxu0 0.0
    %3856 = vmatpush1.msra.mxu0 0.0
    %3857 = vmatprep.subr.mxu0 0.0
    %3858 = vmatpush1.msra.mxu0 0.0
    %3859 = vmatprep.subr.mxu0 0.0
    %3860 = vmatpush1.msra.mxu0 0.0
    %3861 = vmatprep.subr.mxu0 0.0
    %3862 = vmatpush1.msra.mxu0 0.0
    %3863 = vmatprep.subr.mxu0 0.0
    %3864 = vmatpush1.msra.mxu0 0.0
    %3865 = vmatprep.subr.mxu0 0.0
    %3866 = vmatpush1.msra.mxu0 0.0
    %3867 = vmatprep.subr.mxu0 0.0
    %3868 = vmatpush1.msra.mxu0 0.0
    %3869 = vmatprep.subr.mxu0 0.0
    %3870 = vmatpush1.msra.mxu0 0.0
    %3871 = vmatprep.subr.mxu0 0.0
    %3872 = vmatpush1.msra.mxu0 0.0
    %3873 = vmatprep.subr.mxu0 0.0
    %3874 = vmatpush1.msra.mxu0 0.0
    %3875 = vmatprep.subr.mxu0 0.0
    %3876 = vmatpush1.msra.mxu0 0.0
    %3877 = vmatprep.mubr.f32.mxu0 0.0
    %3878 = vmatmul.mubr.f32.gmra.mrb[0].mxu0 %v3811
    %v3879 = vpop.f32.mrb[0].mxu0
    %v3880 = vadd.f32 %v73, %v3879
    %v3881 = vpop.f32.mrb[0].mxu0
    %3882 = vdwg.mxu0
    %v3883 = vmax.f32 %v3880, 0.0
    %v3884 = vand.u32 2147483647, %v3880
    %v3885 = vsub.f32 0.0, %v3884
    %v3886 = vmul.f32 %v3885, 1.442695
    %v3887 = vpow.pop %v3886
    %v3888 = vadd.f32 %v3887, 1.0
    %v3889 = vlog2.pop %v3888
    %v3890 = vmul.f32 %v3889, 0.6931472
    %v3891 = vmul.f32 -0.5, %v3887
    %v3892 = vadd.f32 %v3891, 1.0
    %v3893 = vmul.f32 %v3892, %v3887
    %v3894 = vand.u32 2147483647, %v3887
    %vm3895 = vcmp.lt.f32.partialorder %v3894, 0.0004427343
    %v3896 = vsel %vm3895, %v3893, %v3890
    %v3897 = vadd.f32 %v3883, %v3896
    %v3898 = vadd.f32 %v3897, 1e-06
    %3900 = vrot.lane.b32.xlu0 %v3880, 11
    %v3901 = vpop.permute.xlu0 %3900
    %vm3903 = vcmask 93272
    %3904 = vst.msk [vmem:[#allocation2] sm:$0xf] %vm3903, %v3901
    %3906 = vrot.lane.b32.xlu0 %v3898, 10
    %v3907 = vpop.permute.xlu0 %3906
    %3909 = vst.msk [vmem:[#allocation4] sm:$0xf] %vm3903, %v3907
    %v3910 = vld [vmem:[%s2] sm:$0xf]
    %3912 = vrot.lane.b32.xlu0 %v3910, 126
    %v3913 = vpop.permute.xlu0 %3912
    %v3915 = vmul.f32 %v3898, %v3913
    %3917 = vrot.lane.b32.xlu0 %v3915, 127
    %v3918 = vpop.permute.xlu0 %3917
    %v3920 = vadd.f32 %v3880, %v3918
    %3922 = vrot.lane.b32.xlu0 %v3920, 3
    %v3923 = vpop.permute.xlu0 %3922
    %3925 = vst.msk [vmem:[#allocation6] sm:$0xf] %vm1328, %v3923
    // Predicated region
    $region38: #{tpu_custom_call.1} parent=1 // pred_check
      _
    $region39: #{tpu_custom_call.1} parent=1 // pred_check_branch
      %3927 = sbr.rel (0) target = $region41
    $region40: #{tpu_custom_call.1} parent=1 // pred_region
      %s3929 = ssub.s32 64, 64
      %3930 = vsyncadd [#allocation3], %s3929
      %s3932 = sshll.u32 [#allocation2], 4
      %s3933 = int_to_ptr.vmem [resolvable:$true] %s3932
      %3935 = dma.vmem_to_hbm [thread:$0]  %s3933, 64, %s9, [#allocation3]
    $region41: #{tpu_custom_call.1} parent=1 // pred_fallthru
      _
    // Predicated region
    $region42: #{tpu_custom_call.1} parent=1 // pred_check
      _
    $region43: #{tpu_custom_call.1} parent=1 // pred_check_branch
      %3937 = sbr.rel (0) target = $region45
    $region44: #{tpu_custom_call.1} parent=1 // pred_region
      %s3939 = ssub.s32 64, 64
      %3940 = vsyncadd [#allocation5], %s3939
      %s3942 = sshll.u32 [#allocation4], 4
      %s3943 = int_to_ptr.vmem [resolvable:$true] %s3942
      %3945 = dma.vmem_to_hbm [thread:$0]  %s3943, 64, %s10, [#allocation5]
    $region45: #{tpu_custom_call.1} parent=1 // pred_fallthru
      _
    // Predicated region
    $region46: #{tpu_custom_call.1} parent=1 // pred_check
      _
    $region47: #{tpu_custom_call.1} parent=1 // pred_check_branch
      %3947 = sbr.rel (0) target = $region49
    $region48: #{tpu_custom_call.1} parent=1 // pred_region
      %s3949 = ssub.s32 64, 64
      %3950 = vsyncadd [#allocation5], %s3949
      %s3952 = sshll.u32 [#allocation6], 4
      %s3953 = int_to_ptr.vmem [resolvable:$true] %s3952
      %3955 = dma.vmem_to_hbm [thread:$0]  %s3953, 64, %s11, [#allocation5]
    $region49: #{tpu_custom_call.1} parent=1 // pred_fallthru
      _
    // Predicated region
    $region50: #{tpu_custom_call.1} parent=1 // pred_check
      _
    $region51: #{tpu_custom_call.1} parent=1 // pred_check_branch
      %3957 = sbr.rel (0) target = $region53
    $region52: #{tpu_custom_call.1} parent=1 // pred_region
      %3958 = dma.done [#allocation3], 64
    $region53: #{tpu_custom_call.1} parent=1 // pred_fallthru
      _
    // Predicated region
    $region54: #{tpu_custom_call.1} parent=1 // pred_check
      _
    $region55: #{tpu_custom_call.1} parent=1 // pred_check_branch
      %3960 = sbr.rel (0) target = $region57
    $region56: #{tpu_custom_call.1} parent=1 // pred_region
      %3961 = dma.done [#allocation5], 64
    $region57: #{tpu_custom_call.1} parent=1 // pred_fallthru
      _
    // Predicated region
    $region58: #{tpu_custom_call.1} parent=1 // pred_check
      _
    $region59: #{tpu_custom_call.1} parent=1 // pred_check_branch
      %3963 = sbr.rel (0) target = $region61
    $region60: #{tpu_custom_call.1} parent=1 // pred_region
      %3964 = dma.done [#allocation5], 64
    $region61: #{tpu_custom_call.1} parent=1 // pred_fallthru
      _
    %3965 = vsyncpa [#allocation3], 1
    %3966 = vsyncpa [#allocation5], 1

</llo_original>
